<compile_context>
chip_gen: v5e
topology: v5e:2x2
jax: 0.10.0
libtpu: 0.0.40
codegen_flags: <defaults>
</compile_context>

<pallas_src>
import functools

import jax
import jax.numpy as jnp
from jax.experimental import pallas as pl
from jax.experimental.pallas import tpu as pltpu

# ----------------------- model configuration (small) -----------------------
IMG = 32            # image spatial size (HxW)
C_IN = 3            # image channels
PATCH = 8           # patch size (conv kernel == stride)
GRID = IMG // PATCH
WIDTH = 32          # transformer width (hidden)
HEADS = 4
HEAD_DIM = WIDTH // HEADS
LAYERS = 2
EMBED = 16          # CLIP image embedding dim (analog of CHANNELS[name])
NUM_CLASSES = 1
SEQ = GRID * GRID + 1          # +1 for the class token
PATCH_DIM = C_IN * PATCH * PATCH
MLP_DIM = 4 * WIDTH
LN_EPS = 1e-5
ATTN_SCALE = float(HEAD_DIM) ** -0.5


# ------------------------------ fused kernel --------------------------------
def _layernorm(x, g, b):
    """LayerNorm over the last dim (torch nn.LayerNorm semantics), f32."""
    mu = jnp.mean(x, axis=-1, keepdims=True)
    xc = x - mu
    var = jnp.mean(xc * xc, axis=-1, keepdims=True)
    return xc * jax.lax.rsqrt(var + LN_EPS) * g + b


def _clip_fused_kernel(
    # per-sample input
    patches_ref,                                  # (1, SEQ, PATCH_DIM), row 0 == 0
    # global weights
    conv_w_ref,                                   # (PATCH_DIM, WIDTH)
    pos_cls_ref,                                  # (SEQ, WIDTH)  pos emb (+cls emb in row 0)
    ln_pre_g_ref, ln_pre_b_ref,                   # (1, WIDTH)
    ln_post_g_ref, ln_post_b_ref,                 # (1, WIDTH)
    proj_ref,                                     # (WIDTH, EMBED)
    fc_w_ref, fc_b_ref,                           # (EMBED, NUM_CLASSES), (1, NUM_CLASSES)
    # stacked per-layer weights
    ln1_g_ref, ln1_b_ref,                         # (L, 1, WIDTH)
    wq_ref, wk_ref, wv_ref,                       # (L, H, WIDTH, HEAD_DIM)
    bq_ref, bk_ref, bv_ref,                       # (L, H, 1, HEAD_DIM)
    wo_ref,                                       # (L, H, HEAD_DIM, WIDTH)
    bo_ref,                                       # (L, 1, WIDTH)
    ln2_g_ref, ln2_b_ref,                         # (L, 1, WIDTH)
    wfc_ref, bfc_ref,                             # (L, WIDTH, MLP_DIM), (L, 1, MLP_DIM)
    wpr_ref, bpr_ref,                             # (L, MLP_DIM, WIDTH), (L, 1, WIDTH)
    # outputs
    feat_ref,                                     # (1, 1, EMBED)
    logit_ref,                                    # (1, 1, NUM_CLASSES)
):
    f32 = jnp.float32

    # Patch embedding (Conv2d(stride=patch, bias=False) as a matmul).  Row 0 of
    # `patches` is zero; its embedding is the class embedding, pre-added into
    # row 0 of pos_cls.
    patches = patches_ref[0]                                          # (SEQ, PATCH_DIM)
    h = jnp.dot(patches, conv_w_ref[...], preferred_element_type=f32)  # (SEQ, WIDTH)
    h = h + pos_cls_ref[...]
    h = _layernorm(h, ln_pre_g_ref[...], ln_pre_b_ref[...])

    # TODO(synk): keep f32 MXU inputs at this toy WIDTH=32; switch weight/activation
    # operands to bf16 (f32 accumulate) when scaling to real CLIP widths on v6e/v7x.
    for l in range(LAYERS):
        # ---------------- multi-head self-attention ----------------
        xn = _layernorm(h, ln1_g_ref[l], ln1_b_ref[l])                 # (SEQ, WIDTH)
        o = jnp.zeros((SEQ, WIDTH), f32)
        for hd in range(HEADS):                                        # unrolled, all in VMEM
            q = jnp.dot(xn, wq_ref[l, hd], preferred_element_type=f32) + bq_ref[l, hd]
            k = jnp.dot(xn, wk_ref[l, hd], preferred_element_type=f32) + bk_ref[l, hd]
            v = jnp.dot(xn, wv_ref[l, hd], preferred_element_type=f32) + bv_ref[l, hd]
            s = jnp.dot(q, k.T, preferred_element_type=f32) * ATTN_SCALE   # (SEQ, SEQ)
            s = s - jnp.max(s, axis=-1, keepdims=True)
            p = jnp.exp(s)
            p = p * pl.reciprocal(jnp.sum(p, axis=-1, keepdims=True), approx=True)
            oh = jnp.dot(p, v, preferred_element_type=f32)                 # (SEQ, HEAD_DIM)
            # Fold out_proj into the head loop: concat(oh) @ Wo == sum_h oh @ Wo[h]
            o = o + jnp.dot(oh, wo_ref[l, hd], preferred_element_type=f32)
        h = h + o + bo_ref[l]

        # ---------------- MLP with QuickGELU ----------------
        xn = _layernorm(h, ln2_g_ref[l], ln2_b_ref[l])
        m = jnp.dot(xn, wfc_ref[l], preferred_element_type=f32) + bfc_ref[l]   # (SEQ, 4W)
        m = m * jax.nn.sigmoid(1.702 * m)                                      # QuickGELU
        m = jnp.dot(m, wpr_ref[l], preferred_element_type=f32) + bpr_ref[l]
        h = h + m

    # ---------------- head: ln_post -> proj -> fc ----------------
    cls_tok = h[0:1, :]                                                # (1, WIDTH)
    cls_tok = _layernorm(cls_tok, ln_post_g_ref[...], ln_post_b_ref[...])
    feat = jnp.dot(cls_tok, proj_ref[...], preferred_element_type=f32)  # (1, EMBED)
    feat_ref[0] = feat.astype(feat_ref.dtype)
    logit = jnp.dot(feat, fc_w_ref[...], preferred_element_type=f32) + fc_b_ref[...]
    logit_ref[0] = logit.astype(logit_ref.dtype)


# ----------------------------- parameter init -------------------------------
def init_params(key):
    """Deterministic synthetic weights, stored in kernel-friendly layouts:
    (K, N) matmul layout, attention weights pre-split per head, layers stacked."""
    keys = iter(jax.random.split(key, 32))
    nrm = lambda shape, s=0.02: (s * jax.random.normal(next(keys), shape)).astype(jnp.float32)
    zeros = lambda shape: jnp.zeros(shape, jnp.float32)
    ones = lambda shape: jnp.ones(shape, jnp.float32)
    L, H, W, Dh = LAYERS, HEADS, WIDTH, HEAD_DIM
    return {
        # Conv2d(C_IN, WIDTH, k=PATCH, s=PATCH, bias=False), pre-flattened (C*ph*pw, WIDTH)
        "conv_w": nrm((PATCH_DIM, WIDTH)),
        "class_embedding": nrm((WIDTH,)),
        "positional_embedding": nrm((SEQ, WIDTH)),
        "ln_pre_g": ones((1, WIDTH)), "ln_pre_b": zeros((1, WIDTH)),
        "ln_post_g": ones((1, WIDTH)), "ln_post_b": zeros((1, WIDTH)),
        "proj": nrm((WIDTH, EMBED)),                         # visual.proj
        "fc_w": nrm((EMBED, NUM_CLASSES)),                   # nn.Linear(EMBED, 1), (K, N)
        "fc_b": zeros((1, NUM_CLASSES)),
        # Transformer layers (stacked over leading layer axis).
        "ln1_g": ones((L, 1, W)), "ln1_b": zeros((L, 1, W)),
        "wq": nrm((L, H, W, Dh)), "wk": nrm((L, H, W, Dh)), "wv": nrm((L, H, W, Dh)),
        "bq": zeros((L, H, 1, Dh)), "bk": zeros((L, H, 1, Dh)), "bv": zeros((L, H, 1, Dh)),
        "wo": nrm((L, H, Dh, W)), "bo": zeros((L, 1, W)),
        "ln2_g": ones((L, 1, W)), "ln2_b": zeros((L, 1, W)),
        "wfc": nrm((L, W, MLP_DIM)), "bfc": zeros((L, 1, MLP_DIM)),
        "wpr": nrm((L, MLP_DIM, W)), "bpr": zeros((L, 1, W)),
    }


# ------------------------------ forward pass --------------------------------
def clip_forward(params, x):
    """x: (B, C, H, W) float32 NCHW.  Returns (features (B,EMBED), logits (B,NUM_CLASSES))."""
    B, C, H, W = x.shape
    gh, gw = H // PATCH, W // PATCH

    # Patchify (matches Conv2d(stride=patch) element ordering: C, ph, pw) -- glue on input.
    patches = x.reshape(B, C, gh, PATCH, gw, PATCH)
    patches = patches.transpose(0, 2, 4, 1, 3, 5).reshape(B, gh * gw, PATCH_DIM)
    # Row 0 = class-token slot (zero patch); its embedding lives in pos_cls row 0.
    patches = jnp.concatenate(
        [jnp.zeros((B, 1, PATCH_DIM), patches.dtype), patches], axis=1).astype(jnp.float32)
    pos_cls = params["positional_embedding"].at[0].add(params["class_embedding"])

    global_inputs = [
        params["conv_w"], pos_cls,
        params["ln_pre_g"], params["ln_pre_b"],
        params["ln_post_g"], params["ln_post_b"],
        params["proj"], params["fc_w"], params["fc_b"],
        params["ln1_g"], params["ln1_b"],
        params["wq"], params["wk"], params["wv"],
        params["bq"], params["bk"], params["bv"],
        params["wo"], params["bo"],
        params["ln2_g"], params["ln2_b"],
        params["wfc"], params["bfc"], params["wpr"], params["bpr"],
    ]

    def _const_spec(a):
        nd = a.ndim
        return pl.BlockSpec(a.shape, lambda b, _nd=nd: (0,) * _nd)

    in_specs = [pl.BlockSpec((1, SEQ, PATCH_DIM), lambda b: (b, 0, 0))]
    in_specs += [_const_spec(a) for a in global_inputs]

    out_shape = (
        jax.ShapeDtypeStruct((B, 1, EMBED), jnp.float32),
        jax.ShapeDtypeStruct((B, 1, NUM_CLASSES), jnp.float32),
    )
    out_specs = (
        pl.BlockSpec((1, 1, EMBED), lambda b: (b, 0, 0)),
        pl.BlockSpec((1, 1, NUM_CLASSES), lambda b: (b, 0, 0)),
    )

    feat, logits = pl.pallas_call(
        _clip_fused_kernel,
        out_shape=out_shape,
        grid=(B,),
        in_specs=in_specs,
        out_specs=out_specs,
        compiler_params=pltpu.CompilerParams(
            dimension_semantics=("parallel",)),     # batch axis -> 2 TCs on v7x
    )(patches, *global_inputs)

    return feat.reshape(B, EMBED), logits.reshape(B, NUM_CLASSES)


def clip_model_forward(params, x, return_feature=False):
    features, logits = clip_forward(params, x)
    if return_feature:
        return features
    return logits


# ---------------------------------- main -------------------------------------
if __name__ == "__main__":
    key = jax.random.PRNGKey(0)
    k_param, k_x = jax.random.split(key)
    params = init_params(k_param)
    x = jax.random.normal(k_x, (2, C_IN, IMG, IMG), dtype=jnp.float32)   # NCHW input

    fwd = jax.jit(functools.partial(clip_model_forward, return_feature=False))
    out = fwd(params, x)
    jax.block_until_ready(out)
    assert out.shape == (2, NUM_CLASSES), out.shape

    feat = jax.jit(functools.partial(clip_model_forward, return_feature=True))(params, x)
    jax.block_until_ready(feat)
    assert feat.shape == (2, EMBED), feat.shape

    print("KERNEL_OK")
</pallas_src>

<mosaic_0001>
module attributes {stable_mosaic.version = 11 : i64} {
  func.func @_clip_fused_kernel(%arg0: i32, %arg1: memref<1x17x192xf32, #tpu.memory_space<vmem>>, %arg2: memref<192x32xf32, #tpu.memory_space<vmem>>, %arg3: memref<17x32xf32, #tpu.memory_space<vmem>>, %arg4: memref<1x32xf32, #tpu.memory_space<vmem>>, %arg5: memref<1x32xf32, #tpu.memory_space<vmem>>, %arg6: memref<1x32xf32, #tpu.memory_space<vmem>>, %arg7: memref<1x32xf32, #tpu.memory_space<vmem>>, %arg8: memref<32x16xf32, #tpu.memory_space<vmem>>, %arg9: memref<16x1xf32, #tpu.memory_space<vmem>>, %arg10: memref<1x1xf32, #tpu.memory_space<vmem>>, %arg11: memref<2x1x32xf32, #tpu.memory_space<vmem>>, %arg12: memref<2x1x32xf32, #tpu.memory_space<vmem>>, %arg13: memref<2x4x32x8xf32, #tpu.memory_space<vmem>>, %arg14: memref<2x4x32x8xf32, #tpu.memory_space<vmem>>, %arg15: memref<2x4x32x8xf32, #tpu.memory_space<vmem>>, %arg16: memref<2x4x1x8xf32, #tpu.memory_space<vmem>>, %arg17: memref<2x4x1x8xf32, #tpu.memory_space<vmem>>, %arg18: memref<2x4x1x8xf32, #tpu.memory_space<vmem>>, %arg19: memref<2x4x8x32xf32, #tpu.memory_space<vmem>>, %arg20: memref<2x1x32xf32, #tpu.memory_space<vmem>>, %arg21: memref<2x1x32xf32, #tpu.memory_space<vmem>>, %arg22: memref<2x1x32xf32, #tpu.memory_space<vmem>>, %arg23: memref<2x32x128xf32, #tpu.memory_space<vmem>>, %arg24: memref<2x1x128xf32, #tpu.memory_space<vmem>>, %arg25: memref<2x128x32xf32, #tpu.memory_space<vmem>>, %arg26: memref<2x1x32xf32, #tpu.memory_space<vmem>>, %arg27: memref<1x1x16xf32, #tpu.memory_space<vmem>>, %arg28: memref<1x1x1xf32, #tpu.memory_space<vmem>>) attributes {dimension_semantics = [#tpu.dimension_semantics<parallel>], iteration_bounds = array<i64: 2>, scalar_prefetch = 0 : i64, scratch_operands = 0 : i64, tpu.core_type = #tpu.core_type<tc>, window_params = [{transform_indices = @transform_0, window_bounds = array<i64: 1, 17, 192>}, {pipeline_mode = #tpu.pipeline_mode<synchronous>, transform_indices = @transform_1, window_bounds = array<i64: 192, 32>}, {pipeline_mode = #tpu.pipeline_mode<synchronous>, transform_indices = @transform_2, window_bounds = array<i64: 17, 32>}, {pipeline_mode = #tpu.pipeline_mode<synchronous>, transform_indices = @transform_3, window_bounds = array<i64: 1, 32>}, {pipeline_mode = #tpu.pipeline_mode<synchronous>, transform_indices = @transform_4, window_bounds = array<i64: 1, 32>}, {pipeline_mode = #tpu.pipeline_mode<synchronous>, transform_indices = @transform_5, window_bounds = array<i64: 1, 32>}, {pipeline_mode = #tpu.pipeline_mode<synchronous>, transform_indices = @transform_6, window_bounds = array<i64: 1, 32>}, {pipeline_mode = #tpu.pipeline_mode<synchronous>, transform_indices = @transform_7, window_bounds = array<i64: 32, 16>}, {pipeline_mode = #tpu.pipeline_mode<synchronous>, transform_indices = @transform_8, window_bounds = array<i64: 16, 1>}, {pipeline_mode = #tpu.pipeline_mode<synchronous>, transform_indices = @transform_9, window_bounds = array<i64: 1, 1>}, {pipeline_mode = #tpu.pipeline_mode<synchronous>, transform_indices = @transform_10, window_bounds = array<i64: 2, 1, 32>}, {pipeline_mode = #tpu.pipeline_mode<synchronous>, transform_indices = @transform_11, window_bounds = array<i64: 2, 1, 32>}, {pipeline_mode = #tpu.pipeline_mode<synchronous>, transform_indices = @transform_12, window_bounds = array<i64: 2, 4, 32, 8>}, {pipeline_mode = #tpu.pipeline_mode<synchronous>, transform_indices = @transform_13, window_bounds = array<i64: 2, 4, 32, 8>}, {pipeline_mode = #tpu.pipeline_mode<synchronous>, transform_indices = @transform_14, window_bounds = array<i64: 2, 4, 32, 8>}, {pipeline_mode = #tpu.pipeline_mode<synchronous>, transform_indices = @transform_15, window_bounds = array<i64: 2, 4, 1, 8>}, {pipeline_mode = #tpu.pipeline_mode<synchronous>, transform_indices = @transform_16, window_bounds = array<i64: 2, 4, 1, 8>}, {pipeline_mode = #tpu.pipeline_mode<synchronous>, transform_indices = @transform_17, window_bounds = array<i64: 2, 4, 1, 8>}, {pipeline_mode = #tpu.pipeline_mode<synchronous>, transform_indices = @transform_18, window_bounds = array<i64: 2, 4, 8, 32>}, {pipeline_mode = #tpu.pipeline_mode<synchronous>, transform_indices = @transform_19, window_bounds = array<i64: 2, 1, 32>}, {pipeline_mode = #tpu.pipeline_mode<synchronous>, transform_indices = @transform_20, window_bounds = array<i64: 2, 1, 32>}, {pipeline_mode = #tpu.pipeline_mode<synchronous>, transform_indices = @transform_21, window_bounds = array<i64: 2, 1, 32>}, {pipeline_mode = #tpu.pipeline_mode<synchronous>, transform_indices = @transform_22, window_bounds = array<i64: 2, 32, 128>}, {pipeline_mode = #tpu.pipeline_mode<synchronous>, transform_indices = @transform_23, window_bounds = array<i64: 2, 1, 128>}, {pipeline_mode = #tpu.pipeline_mode<synchronous>, transform_indices = @transform_24, window_bounds = array<i64: 2, 128, 32>}, {pipeline_mode = #tpu.pipeline_mode<synchronous>, transform_indices = @transform_25, window_bounds = array<i64: 2, 1, 32>}, {transform_indices = @transform_26, window_bounds = array<i64: 1, 1, 16>}, {transform_indices = @transform_27, window_bounds = array<i64: 1, 1, 1>}]} {
    %c0 = arith.constant 0 : index
    %c0_0 = arith.constant 0 : index
    %c0_1 = arith.constant 0 : index
    %0 = vector.load %arg1[%c0, %c0_0, %c0_1] : memref<1x17x192xf32, #tpu.memory_space<vmem>>, vector<1x17x192xf32>
    %1 = vector.shape_cast %0 : vector<1x17x192xf32> to vector<17x192xf32>
    %c0_2 = arith.constant 0 : index
    %c0_3 = arith.constant 0 : index
    %2 = vector.load %arg2[%c0_2, %c0_3] : memref<192x32xf32, #tpu.memory_space<vmem>>, vector<192x32xf32>
    %cst = arith.constant dense<0.000000e+00> : vector<17x32xf32>
    %3 = tpu.matmul %1, %2, %cst {dimension_numbers = #tpu.dot_dimension_numbers<[1], [0], [0], [1], [0, 0, 1, 1], [], []>} : vector<17x192xf32>, vector<192x32xf32>, vector<17x32xf32> -> vector<17x32xf32>
    %c0_4 = arith.constant 0 : index
    %c0_5 = arith.constant 0 : index
    %4 = vector.load %arg3[%c0_4, %c0_5] : memref<17x32xf32, #tpu.memory_space<vmem>>, vector<17x32xf32>
    %5 = arith.addf %3, %4 : vector<17x32xf32>
    %c0_6 = arith.constant 0 : index
    %c0_7 = arith.constant 0 : index
    %6 = vector.load %arg4[%c0_6, %c0_7] : memref<1x32xf32, #tpu.memory_space<vmem>>, vector<1x32xf32>
    %c0_8 = arith.constant 0 : index
    %c0_9 = arith.constant 0 : index
    %7 = vector.load %arg5[%c0_8, %c0_9] : memref<1x32xf32, #tpu.memory_space<vmem>>, vector<1x32xf32>
    %cst_10 = arith.constant dense<0.000000e+00> : vector<17xf32>
    %8 = vector.multi_reduction <add>, %5, %cst_10 [1] : vector<17x32xf32> to vector<17xf32>
    %9 = vector.shape_cast %8 : vector<17xf32> to vector<17x1xf32>
    %cst_11 = arith.constant 3.200000e+01 : f32
    %10 = vector.broadcast %cst_11 : f32 to vector<17x1xf32>
    %11 = arith.divf %9, %10 : vector<17x1xf32>
    %12 = vector.broadcast %11 : vector<17x1xf32> to vector<17x32xf32>
    %13 = arith.subf %5, %12 : vector<17x32xf32>
    %14 = arith.mulf %13, %13 : vector<17x32xf32>
    %cst_12 = arith.constant dense<0.000000e+00> : vector<17xf32>
    %15 = vector.multi_reduction <add>, %14, %cst_12 [1] : vector<17x32xf32> to vector<17xf32>
    %16 = vector.shape_cast %15 : vector<17xf32> to vector<17x1xf32>
    %cst_13 = arith.constant 3.200000e+01 : f32
    %17 = vector.broadcast %cst_13 : f32 to vector<17x1xf32>
    %18 = arith.divf %16, %17 : vector<17x1xf32>
    %cst_14 = arith.constant 9.99999974E-6 : f32
    %19 = vector.broadcast %cst_14 : f32 to vector<17x1xf32>
    %20 = arith.addf %18, %19 : vector<17x1xf32>
    %21 = math.rsqrt %20 : vector<17x1xf32>
    %22 = vector.broadcast %21 : vector<17x1xf32> to vector<17x32xf32>
    %23 = arith.mulf %13, %22 : vector<17x32xf32>
    %24 = vector.broadcast %6 : vector<1x32xf32> to vector<17x32xf32>
    %25 = arith.mulf %23, %24 : vector<17x32xf32>
    %26 = vector.broadcast %7 : vector<1x32xf32> to vector<17x32xf32>
    %27 = arith.addf %25, %26 : vector<17x32xf32>
    %c0_15 = arith.constant 0 : index
    %c0_16 = arith.constant 0 : index
    %c0_17 = arith.constant 0 : index
    %28 = vector.load %arg11[%c0_15, %c0_16, %c0_17] : memref<2x1x32xf32, #tpu.memory_space<vmem>>, vector<1x1x32xf32>
    %29 = vector.shape_cast %28 : vector<1x1x32xf32> to vector<1x32xf32>
    %c0_18 = arith.constant 0 : index
    %c0_19 = arith.constant 0 : index
    %c0_20 = arith.constant 0 : index
    %30 = vector.load %arg12[%c0_18, %c0_19, %c0_20] : memref<2x1x32xf32, #tpu.memory_space<vmem>>, vector<1x1x32xf32>
    %31 = vector.shape_cast %30 : vector<1x1x32xf32> to vector<1x32xf32>
    %cst_21 = arith.constant dense<0.000000e+00> : vector<17xf32>
    %32 = vector.multi_reduction <add>, %27, %cst_21 [1] : vector<17x32xf32> to vector<17xf32>
    %33 = vector.shape_cast %32 : vector<17xf32> to vector<17x1xf32>
    %cst_22 = arith.constant 3.200000e+01 : f32
    %34 = vector.broadcast %cst_22 : f32 to vector<17x1xf32>
    %35 = arith.divf %33, %34 : vector<17x1xf32>
    %36 = vector.broadcast %35 : vector<17x1xf32> to vector<17x32xf32>
    %37 = arith.subf %27, %36 : vector<17x32xf32>
    %38 = arith.mulf %37, %37 : vector<17x32xf32>
    %cst_23 = arith.constant dense<0.000000e+00> : vector<17xf32>
    %39 = vector.multi_reduction <add>, %38, %cst_23 [1] : vector<17x32xf32> to vector<17xf32>
    %40 = vector.shape_cast %39 : vector<17xf32> to vector<17x1xf32>
    %cst_24 = arith.constant 3.200000e+01 : f32
    %41 = vector.broadcast %cst_24 : f32 to vector<17x1xf32>
    %42 = arith.divf %40, %41 : vector<17x1xf32>
    %cst_25 = arith.constant 9.99999974E-6 : f32
    %43 = vector.broadcast %cst_25 : f32 to vector<17x1xf32>
    %44 = arith.addf %42, %43 : vector<17x1xf32>
    %45 = math.rsqrt %44 : vector<17x1xf32>
    %46 = vector.broadcast %45 : vector<17x1xf32> to vector<17x32xf32>
    %47 = arith.mulf %37, %46 : vector<17x32xf32>
    %48 = vector.broadcast %29 : vector<1x32xf32> to vector<17x32xf32>
    %49 = arith.mulf %47, %48 : vector<17x32xf32>
    %50 = vector.broadcast %31 : vector<1x32xf32> to vector<17x32xf32>
    %51 = arith.addf %49, %50 : vector<17x32xf32>
    %cst_26 = arith.constant 0.000000e+00 : f32
    %52 = vector.broadcast %cst_26 : f32 to vector<17x32xf32>
    %c0_27 = arith.constant 0 : index
    %c0_28 = arith.constant 0 : index
    %c0_29 = arith.constant 0 : index
    %c0_30 = arith.constant 0 : index
    %53 = vector.load %arg13[%c0_27, %c0_28, %c0_29, %c0_30] : memref<2x4x32x8xf32, #tpu.memory_space<vmem>>, vector<1x1x32x8xf32>
    %54 = vector.shape_cast %53 : vector<1x1x32x8xf32> to vector<32x8xf32>
    %cst_31 = arith.constant dense<0.000000e+00> : vector<17x8xf32>
    %55 = tpu.matmul %51, %54, %cst_31 {dimension_numbers = #tpu.dot_dimension_numbers<[1], [0], [0], [1], [0, 0, 1, 1], [], []>} : vector<17x32xf32>, vector<32x8xf32>, vector<17x8xf32> -> vector<17x8xf32>
    %c0_32 = arith.constant 0 : index
    %c0_33 = arith.constant 0 : index
    %c0_34 = arith.constant 0 : index
    %c0_35 = arith.constant 0 : index
    %56 = vector.load %arg16[%c0_32, %c0_33, %c0_34, %c0_35] : memref<2x4x1x8xf32, #tpu.memory_space<vmem>>, vector<1x1x1x8xf32>
    %57 = vector.shape_cast %56 : vector<1x1x1x8xf32> to vector<1x8xf32>
    %58 = vector.broadcast %57 : vector<1x8xf32> to vector<17x8xf32>
    %59 = arith.addf %55, %58 : vector<17x8xf32>
    %c0_36 = arith.constant 0 : index
    %c0_37 = arith.constant 0 : index
    %c0_38 = arith.constant 0 : index
    %c0_39 = arith.constant 0 : index
    %60 = vector.load %arg14[%c0_36, %c0_37, %c0_38, %c0_39] : memref<2x4x32x8xf32, #tpu.memory_space<vmem>>, vector<1x1x32x8xf32>
    %61 = vector.shape_cast %60 : vector<1x1x32x8xf32> to vector<32x8xf32>
    %cst_40 = arith.constant dense<0.000000e+00> : vector<17x8xf32>
    %62 = tpu.matmul %51, %61, %cst_40 {dimension_numbers = #tpu.dot_dimension_numbers<[1], [0], [0], [1], [0, 0, 1, 1], [], []>} : vector<17x32xf32>, vector<32x8xf32>, vector<17x8xf32> -> vector<17x8xf32>
    %c0_41 = arith.constant 0 : index
    %c0_42 = arith.constant 0 : index
    %c0_43 = arith.constant 0 : index
    %c0_44 = arith.constant 0 : index
    %63 = vector.load %arg17[%c0_41, %c0_42, %c0_43, %c0_44] : memref<2x4x1x8xf32, #tpu.memory_space<vmem>>, vector<1x1x1x8xf32>
    %64 = vector.shape_cast %63 : vector<1x1x1x8xf32> to vector<1x8xf32>
    %65 = vector.broadcast %64 : vector<1x8xf32> to vector<17x8xf32>
    %66 = arith.addf %62, %65 : vector<17x8xf32>
    %c0_45 = arith.constant 0 : index
    %c0_46 = arith.constant 0 : index
    %c0_47 = arith.constant 0 : index
    %c0_48 = arith.constant 0 : index
    %67 = vector.load %arg15[%c0_45, %c0_46, %c0_47, %c0_48] : memref<2x4x32x8xf32, #tpu.memory_space<vmem>>, vector<1x1x32x8xf32>
    %68 = vector.shape_cast %67 : vector<1x1x32x8xf32> to vector<32x8xf32>
    %cst_49 = arith.constant dense<0.000000e+00> : vector<17x8xf32>
    %69 = tpu.matmul %51, %68, %cst_49 {dimension_numbers = #tpu.dot_dimension_numbers<[1], [0], [0], [1], [0, 0, 1, 1], [], []>} : vector<17x32xf32>, vector<32x8xf32>, vector<17x8xf32> -> vector<17x8xf32>
    %c0_50 = arith.constant 0 : index
    %c0_51 = arith.constant 0 : index
    %c0_52 = arith.constant 0 : index
    %c0_53 = arith.constant 0 : index
    %70 = vector.load %arg18[%c0_50, %c0_51, %c0_52, %c0_53] : memref<2x4x1x8xf32, #tpu.memory_space<vmem>>, vector<1x1x1x8xf32>
    %71 = vector.shape_cast %70 : vector<1x1x1x8xf32> to vector<1x8xf32>
    %72 = vector.broadcast %71 : vector<1x8xf32> to vector<17x8xf32>
    %73 = arith.addf %69, %72 : vector<17x8xf32>
    %74 = tpu.transpose %66, [1, 0] : vector<17x8xf32> -> vector<8x17xf32>
    %cst_54 = arith.constant dense<0.000000e+00> : vector<17x17xf32>
    %75 = tpu.matmul %59, %74, %cst_54 {dimension_numbers = #tpu.dot_dimension_numbers<[1], [0], [0], [1], [0, 0, 1, 1], [], []>} : vector<17x8xf32>, vector<8x17xf32>, vector<17x17xf32> -> vector<17x17xf32>
    %cst_55 = arith.constant 0.353553385 : f32
    %76 = vector.broadcast %cst_55 : f32 to vector<17x17xf32>
    %77 = arith.mulf %75, %76 : vector<17x17xf32>
    %cst_56 = arith.constant dense<0xFF800000> : vector<17xf32>
    %78 = vector.multi_reduction <maximumf>, %77, %cst_56 [1] : vector<17x17xf32> to vector<17xf32>
    %79 = vector.shape_cast %78 : vector<17xf32> to vector<17x1xf32>
    %80 = vector.broadcast %79 : vector<17x1xf32> to vector<17x17xf32>
    %81 = arith.subf %77, %80 : vector<17x17xf32>
    %82 = math.exp %81 : vector<17x17xf32>
    %cst_57 = arith.constant dense<0.000000e+00> : vector<17xf32>
    %83 = vector.multi_reduction <add>, %82, %cst_57 [1] : vector<17x17xf32> to vector<17xf32>
    %84 = vector.shape_cast %83 : vector<17xf32> to vector<17x1xf32>
    %85 = tpu.reciprocal %84 {approx = true} : vector<17x1xf32> -> vector<17x1xf32>
    %86 = vector.broadcast %85 : vector<17x1xf32> to vector<17x17xf32>
    %87 = arith.mulf %82, %86 : vector<17x17xf32>
    %cst_58 = arith.constant dense<0.000000e+00> : vector<17x8xf32>
    %88 = tpu.matmul %87, %73, %cst_58 {dimension_numbers = #tpu.dot_dimension_numbers<[1], [0], [0], [1], [0, 0, 1, 1], [], []>} : vector<17x17xf32>, vector<17x8xf32>, vector<17x8xf32> -> vector<17x8xf32>
    %c0_59 = arith.constant 0 : index
    %c0_60 = arith.constant 0 : index
    %c0_61 = arith.constant 0 : index
    %c0_62 = arith.constant 0 : index
    %89 = vector.load %arg19[%c0_59, %c0_60, %c0_61, %c0_62] : memref<2x4x8x32xf32, #tpu.memory_space<vmem>>, vector<1x1x8x32xf32>
    %90 = vector.shape_cast %89 : vector<1x1x8x32xf32> to vector<8x32xf32>
    %cst_63 = arith.constant dense<0.000000e+00> : vector<17x32xf32>
    %91 = tpu.matmul %88, %90, %cst_63 {dimension_numbers = #tpu.dot_dimension_numbers<[1], [0], [0], [1], [0, 0, 1, 1], [], []>} : vector<17x8xf32>, vector<8x32xf32>, vector<17x32xf32> -> vector<17x32xf32>
    %92 = arith.addf %52, %91 : vector<17x32xf32>
    %c0_64 = arith.constant 0 : index
    %c1 = arith.constant 1 : index
    %c0_65 = arith.constant 0 : index
    %c0_66 = arith.constant 0 : index
    %93 = vector.load %arg13[%c0_64, %c1, %c0_65, %c0_66] : memref<2x4x32x8xf32, #tpu.memory_space<vmem>>, vector<1x1x32x8xf32>
    %94 = vector.shape_cast %93 : vector<1x1x32x8xf32> to vector<32x8xf32>
    %cst_67 = arith.constant dense<0.000000e+00> : vector<17x8xf32>
    %95 = tpu.matmul %51, %94, %cst_67 {dimension_numbers = #tpu.dot_dimension_numbers<[1], [0], [0], [1], [0, 0, 1, 1], [], []>} : vector<17x32xf32>, vector<32x8xf32>, vector<17x8xf32> -> vector<17x8xf32>
    %c0_68 = arith.constant 0 : index
    %c1_69 = arith.constant 1 : index
    %c0_70 = arith.constant 0 : index
    %c0_71 = arith.constant 0 : index
    %96 = vector.load %arg16[%c0_68, %c1_69, %c0_70, %c0_71] : memref<2x4x1x8xf32, #tpu.memory_space<vmem>>, vector<1x1x1x8xf32>
    %97 = vector.shape_cast %96 : vector<1x1x1x8xf32> to vector<1x8xf32>
    %98 = vector.broadcast %97 : vector<1x8xf32> to vector<17x8xf32>
    %99 = arith.addf %95, %98 : vector<17x8xf32>
    %c0_72 = arith.constant 0 : index
    %c1_73 = arith.constant 1 : index
    %c0_74 = arith.constant 0 : index
    %c0_75 = arith.constant 0 : index
    %100 = vector.load %arg14[%c0_72, %c1_73, %c0_74, %c0_75] : memref<2x4x32x8xf32, #tpu.memory_space<vmem>>, vector<1x1x32x8xf32>
    %101 = vector.shape_cast %100 : vector<1x1x32x8xf32> to vector<32x8xf32>
    %cst_76 = arith.constant dense<0.000000e+00> : vector<17x8xf32>
    %102 = tpu.matmul %51, %101, %cst_76 {dimension_numbers = #tpu.dot_dimension_numbers<[1], [0], [0], [1], [0, 0, 1, 1], [], []>} : vector<17x32xf32>, vector<32x8xf32>, vector<17x8xf32> -> vector<17x8xf32>
    %c0_77 = arith.constant 0 : index
    %c1_78 = arith.constant 1 : index
    %c0_79 = arith.constant 0 : index
    %c0_80 = arith.constant 0 : index
    %103 = vector.load %arg17[%c0_77, %c1_78, %c0_79, %c0_80] : memref<2x4x1x8xf32, #tpu.memory_space<vmem>>, vector<1x1x1x8xf32>
    %104 = vector.shape_cast %103 : vector<1x1x1x8xf32> to vector<1x8xf32>
    %105 = vector.broadcast %104 : vector<1x8xf32> to vector<17x8xf32>
    %106 = arith.addf %102, %105 : vector<17x8xf32>
    %c0_81 = arith.constant 0 : index
    %c1_82 = arith.constant 1 : index
    %c0_83 = arith.constant 0 : index
    %c0_84 = arith.constant 0 : index
    %107 = vector.load %arg15[%c0_81, %c1_82, %c0_83, %c0_84] : memref<2x4x32x8xf32, #tpu.memory_space<vmem>>, vector<1x1x32x8xf32>
    %108 = vector.shape_cast %107 : vector<1x1x32x8xf32> to vector<32x8xf32>
    %cst_85 = arith.constant dense<0.000000e+00> : vector<17x8xf32>
    %109 = tpu.matmul %51, %108, %cst_85 {dimension_numbers = #tpu.dot_dimension_numbers<[1], [0], [0], [1], [0, 0, 1, 1], [], []>} : vector<17x32xf32>, vector<32x8xf32>, vector<17x8xf32> -> vector<17x8xf32>
    %c0_86 = arith.constant 0 : index
    %c1_87 = arith.constant 1 : index
    %c0_88 = arith.constant 0 : index
    %c0_89 = arith.constant 0 : index
    %110 = vector.load %arg18[%c0_86, %c1_87, %c0_88, %c0_89] : memref<2x4x1x8xf32, #tpu.memory_space<vmem>>, vector<1x1x1x8xf32>
    %111 = vector.shape_cast %110 : vector<1x1x1x8xf32> to vector<1x8xf32>
    %112 = vector.broadcast %111 : vector<1x8xf32> to vector<17x8xf32>
    %113 = arith.addf %109, %112 : vector<17x8xf32>
    %114 = tpu.transpose %106, [1, 0] : vector<17x8xf32> -> vector<8x17xf32>
    %cst_90 = arith.constant dense<0.000000e+00> : vector<17x17xf32>
    %115 = tpu.matmul %99, %114, %cst_90 {dimension_numbers = #tpu.dot_dimension_numbers<[1], [0], [0], [1], [0, 0, 1, 1], [], []>} : vector<17x8xf32>, vector<8x17xf32>, vector<17x17xf32> -> vector<17x17xf32>
    %cst_91 = arith.constant 0.353553385 : f32
    %116 = vector.broadcast %cst_91 : f32 to vector<17x17xf32>
    %117 = arith.mulf %115, %116 : vector<17x17xf32>
    %cst_92 = arith.constant dense<0xFF800000> : vector<17xf32>
    %118 = vector.multi_reduction <maximumf>, %117, %cst_92 [1] : vector<17x17xf32> to vector<17xf32>
    %119 = vector.shape_cast %118 : vector<17xf32> to vector<17x1xf32>
    %120 = vector.broadcast %119 : vector<17x1xf32> to vector<17x17xf32>
    %121 = arith.subf %117, %120 : vector<17x17xf32>
    %122 = math.exp %121 : vector<17x17xf32>
    %cst_93 = arith.constant dense<0.000000e+00> : vector<17xf32>
    %123 = vector.multi_reduction <add>, %122, %cst_93 [1] : vector<17x17xf32> to vector<17xf32>
    %124 = vector.shape_cast %123 : vector<17xf32> to vector<17x1xf32>
    %125 = tpu.reciprocal %124 {approx = true} : vector<17x1xf32> -> vector<17x1xf32>
    %126 = vector.broadcast %125 : vector<17x1xf32> to vector<17x17xf32>
    %127 = arith.mulf %122, %126 : vector<17x17xf32>
    %cst_94 = arith.constant dense<0.000000e+00> : vector<17x8xf32>
    %128 = tpu.matmul %127, %113, %cst_94 {dimension_numbers = #tpu.dot_dimension_numbers<[1], [0], [0], [1], [0, 0, 1, 1], [], []>} : vector<17x17xf32>, vector<17x8xf32>, vector<17x8xf32> -> vector<17x8xf32>
    %c0_95 = arith.constant 0 : index
    %c1_96 = arith.constant 1 : index
    %c0_97 = arith.constant 0 : index
    %c0_98 = arith.constant 0 : index
    %129 = vector.load %arg19[%c0_95, %c1_96, %c0_97, %c0_98] : memref<2x4x8x32xf32, #tpu.memory_space<vmem>>, vector<1x1x8x32xf32>
    %130 = vector.shape_cast %129 : vector<1x1x8x32xf32> to vector<8x32xf32>
    %cst_99 = arith.constant dense<0.000000e+00> : vector<17x32xf32>
    %131 = tpu.matmul %128, %130, %cst_99 {dimension_numbers = #tpu.dot_dimension_numbers<[1], [0], [0], [1], [0, 0, 1, 1], [], []>} : vector<17x8xf32>, vector<8x32xf32>, vector<17x32xf32> -> vector<17x32xf32>
    %132 = arith.addf %92, %131 : vector<17x32xf32>
    %c0_100 = arith.constant 0 : index
    %c2 = arith.constant 2 : index
    %c0_101 = arith.constant 0 : index
    %c0_102 = arith.constant 0 : index
    %133 = vector.load %arg13[%c0_100, %c2, %c0_101, %c0_102] : memref<2x4x32x8xf32, #tpu.memory_space<vmem>>, vector<1x1x32x8xf32>
    %134 = vector.shape_cast %133 : vector<1x1x32x8xf32> to vector<32x8xf32>
    %cst_103 = arith.constant dense<0.000000e+00> : vector<17x8xf32>
    %135 = tpu.matmul %51, %134, %cst_103 {dimension_numbers = #tpu.dot_dimension_numbers<[1], [0], [0], [1], [0, 0, 1, 1], [], []>} : vector<17x32xf32>, vector<32x8xf32>, vector<17x8xf32> -> vector<17x8xf32>
    %c0_104 = arith.constant 0 : index
    %c2_105 = arith.constant 2 : index
    %c0_106 = arith.constant 0 : index
    %c0_107 = arith.constant 0 : index
    %136 = vector.load %arg16[%c0_104, %c2_105, %c0_106, %c0_107] : memref<2x4x1x8xf32, #tpu.memory_space<vmem>>, vector<1x1x1x8xf32>
    %137 = vector.shape_cast %136 : vector<1x1x1x8xf32> to vector<1x8xf32>
    %138 = vector.broadcast %137 : vector<1x8xf32> to vector<17x8xf32>
    %139 = arith.addf %135, %138 : vector<17x8xf32>
    %c0_108 = arith.constant 0 : index
    %c2_109 = arith.constant 2 : index
    %c0_110 = arith.constant 0 : index
    %c0_111 = arith.constant 0 : index
    %140 = vector.load %arg14[%c0_108, %c2_109, %c0_110, %c0_111] : memref<2x4x32x8xf32, #tpu.memory_space<vmem>>, vector<1x1x32x8xf32>
    %141 = vector.shape_cast %140 : vector<1x1x32x8xf32> to vector<32x8xf32>
    %cst_112 = arith.constant dense<0.000000e+00> : vector<17x8xf32>
    %142 = tpu.matmul %51, %141, %cst_112 {dimension_numbers = #tpu.dot_dimension_numbers<[1], [0], [0], [1], [0, 0, 1, 1], [], []>} : vector<17x32xf32>, vector<32x8xf32>, vector<17x8xf32> -> vector<17x8xf32>
    %c0_113 = arith.constant 0 : index
    %c2_114 = arith.constant 2 : index
    %c0_115 = arith.constant 0 : index
    %c0_116 = arith.constant 0 : index
    %143 = vector.load %arg17[%c0_113, %c2_114, %c0_115, %c0_116] : memref<2x4x1x8xf32, #tpu.memory_space<vmem>>, vector<1x1x1x8xf32>
    %144 = vector.shape_cast %143 : vector<1x1x1x8xf32> to vector<1x8xf32>
    %145 = vector.broadcast %144 : vector<1x8xf32> to vector<17x8xf32>
    %146 = arith.addf %142, %145 : vector<17x8xf32>
    %c0_117 = arith.constant 0 : index
    %c2_118 = arith.constant 2 : index
    %c0_119 = arith.constant 0 : index
    %c0_120 = arith.constant 0 : index
    %147 = vector.load %arg15[%c0_117, %c2_118, %c0_119, %c0_120] : memref<2x4x32x8xf32, #tpu.memory_space<vmem>>, vector<1x1x32x8xf32>
    %148 = vector.shape_cast %147 : vector<1x1x32x8xf32> to vector<32x8xf32>
    %cst_121 = arith.constant dense<0.000000e+00> : vector<17x8xf32>
    %149 = tpu.matmul %51, %148, %cst_121 {dimension_numbers = #tpu.dot_dimension_numbers<[1], [0], [0], [1], [0, 0, 1, 1], [], []>} : vector<17x32xf32>, vector<32x8xf32>, vector<17x8xf32> -> vector<17x8xf32>
    %c0_122 = arith.constant 0 : index
    %c2_123 = arith.constant 2 : index
    %c0_124 = arith.constant 0 : index
    %c0_125 = arith.constant 0 : index
    %150 = vector.load %arg18[%c0_122, %c2_123, %c0_124, %c0_125] : memref<2x4x1x8xf32, #tpu.memory_space<vmem>>, vector<1x1x1x8xf32>
    %151 = vector.shape_cast %150 : vector<1x1x1x8xf32> to vector<1x8xf32>
    %152 = vector.broadcast %151 : vector<1x8xf32> to vector<17x8xf32>
    %153 = arith.addf %149, %152 : vector<17x8xf32>
    %154 = tpu.transpose %146, [1, 0] : vector<17x8xf32> -> vector<8x17xf32>
    %cst_126 = arith.constant dense<0.000000e+00> : vector<17x17xf32>
    %155 = tpu.matmul %139, %154, %cst_126 {dimension_numbers = #tpu.dot_dimension_numbers<[1], [0], [0], [1], [0, 0, 1, 1], [], []>} : vector<17x8xf32>, vector<8x17xf32>, vector<17x17xf32> -> vector<17x17xf32>
    %cst_127 = arith.constant 0.353553385 : f32
    %156 = vector.broadcast %cst_127 : f32 to vector<17x17xf32>
    %157 = arith.mulf %155, %156 : vector<17x17xf32>
    %cst_128 = arith.constant dense<0xFF800000> : vector<17xf32>
    %158 = vector.multi_reduction <maximumf>, %157, %cst_128 [1] : vector<17x17xf32> to vector<17xf32>
    %159 = vector.shape_cast %158 : vector<17xf32> to vector<17x1xf32>
    %160 = vector.broadcast %159 : vector<17x1xf32> to vector<17x17xf32>
    %161 = arith.subf %157, %160 : vector<17x17xf32>
    %162 = math.exp %161 : vector<17x17xf32>
    %cst_129 = arith.constant dense<0.000000e+00> : vector<17xf32>
    %163 = vector.multi_reduction <add>, %162, %cst_129 [1] : vector<17x17xf32> to vector<17xf32>
    %164 = vector.shape_cast %163 : vector<17xf32> to vector<17x1xf32>
    %165 = tpu.reciprocal %164 {approx = true} : vector<17x1xf32> -> vector<17x1xf32>
    %166 = vector.broadcast %165 : vector<17x1xf32> to vector<17x17xf32>
    %167 = arith.mulf %162, %166 : vector<17x17xf32>
    %cst_130 = arith.constant dense<0.000000e+00> : vector<17x8xf32>
    %168 = tpu.matmul %167, %153, %cst_130 {dimension_numbers = #tpu.dot_dimension_numbers<[1], [0], [0], [1], [0, 0, 1, 1], [], []>} : vector<17x17xf32>, vector<17x8xf32>, vector<17x8xf32> -> vector<17x8xf32>
    %c0_131 = arith.constant 0 : index
    %c2_132 = arith.constant 2 : index
    %c0_133 = arith.constant 0 : index
    %c0_134 = arith.constant 0 : index
    %169 = vector.load %arg19[%c0_131, %c2_132, %c0_133, %c0_134] : memref<2x4x8x32xf32, #tpu.memory_space<vmem>>, vector<1x1x8x32xf32>
    %170 = vector.shape_cast %169 : vector<1x1x8x32xf32> to vector<8x32xf32>
    %cst_135 = arith.constant dense<0.000000e+00> : vector<17x32xf32>
    %171 = tpu.matmul %168, %170, %cst_135 {dimension_numbers = #tpu.dot_dimension_numbers<[1], [0], [0], [1], [0, 0, 1, 1], [], []>} : vector<17x8xf32>, vector<8x32xf32>, vector<17x32xf32> -> vector<17x32xf32>
    %172 = arith.addf %132, %171 : vector<17x32xf32>
    %c0_136 = arith.constant 0 : index
    %c3 = arith.constant 3 : index
    %c0_137 = arith.constant 0 : index
    %c0_138 = arith.constant 0 : index
    %173 = vector.load %arg13[%c0_136, %c3, %c0_137, %c0_138] : memref<2x4x32x8xf32, #tpu.memory_space<vmem>>, vector<1x1x32x8xf32>
    %174 = vector.shape_cast %173 : vector<1x1x32x8xf32> to vector<32x8xf32>
    %cst_139 = arith.constant dense<0.000000e+00> : vector<17x8xf32>
    %175 = tpu.matmul %51, %174, %cst_139 {dimension_numbers = #tpu.dot_dimension_numbers<[1], [0], [0], [1], [0, 0, 1, 1], [], []>} : vector<17x32xf32>, vector<32x8xf32>, vector<17x8xf32> -> vector<17x8xf32>
    %c0_140 = arith.constant 0 : index
    %c3_141 = arith.constant 3 : index
    %c0_142 = arith.constant 0 : index
    %c0_143 = arith.constant 0 : index
    %176 = vector.load %arg16[%c0_140, %c3_141, %c0_142, %c0_143] : memref<2x4x1x8xf32, #tpu.memory_space<vmem>>, vector<1x1x1x8xf32>
    %177 = vector.shape_cast %176 : vector<1x1x1x8xf32> to vector<1x8xf32>
    %178 = vector.broadcast %177 : vector<1x8xf32> to vector<17x8xf32>
    %179 = arith.addf %175, %178 : vector<17x8xf32>
    %c0_144 = arith.constant 0 : index
    %c3_145 = arith.constant 3 : index
    %c0_146 = arith.constant 0 : index
    %c0_147 = arith.constant 0 : index
    %180 = vector.load %arg14[%c0_144, %c3_145, %c0_146, %c0_147] : memref<2x4x32x8xf32, #tpu.memory_space<vmem>>, vector<1x1x32x8xf32>
    %181 = vector.shape_cast %180 : vector<1x1x32x8xf32> to vector<32x8xf32>
    %cst_148 = arith.constant dense<0.000000e+00> : vector<17x8xf32>
    %182 = tpu.matmul %51, %181, %cst_148 {dimension_numbers = #tpu.dot_dimension_numbers<[1], [0], [0], [1], [0, 0, 1, 1], [], []>} : vector<17x32xf32>, vector<32x8xf32>, vector<17x8xf32> -> vector<17x8xf32>
    %c0_149 = arith.constant 0 : index
    %c3_150 = arith.constant 3 : index
    %c0_151 = arith.constant 0 : index
    %c0_152 = arith.constant 0 : index
    %183 = vector.load %arg17[%c0_149, %c3_150, %c0_151, %c0_152] : memref<2x4x1x8xf32, #tpu.memory_space<vmem>>, vector<1x1x1x8xf32>
    %184 = vector.shape_cast %183 : vector<1x1x1x8xf32> to vector<1x8xf32>
    %185 = vector.broadcast %184 : vector<1x8xf32> to vector<17x8xf32>
    %186 = arith.addf %182, %185 : vector<17x8xf32>
    %c0_153 = arith.constant 0 : index
    %c3_154 = arith.constant 3 : index
    %c0_155 = arith.constant 0 : index
    %c0_156 = arith.constant 0 : index
    %187 = vector.load %arg15[%c0_153, %c3_154, %c0_155, %c0_156] : memref<2x4x32x8xf32, #tpu.memory_space<vmem>>, vector<1x1x32x8xf32>
    %188 = vector.shape_cast %187 : vector<1x1x32x8xf32> to vector<32x8xf32>
    %cst_157 = arith.constant dense<0.000000e+00> : vector<17x8xf32>
    %189 = tpu.matmul %51, %188, %cst_157 {dimension_numbers = #tpu.dot_dimension_numbers<[1], [0], [0], [1], [0, 0, 1, 1], [], []>} : vector<17x32xf32>, vector<32x8xf32>, vector<17x8xf32> -> vector<17x8xf32>
    %c0_158 = arith.constant 0 : index
    %c3_159 = arith.constant 3 : index
    %c0_160 = arith.constant 0 : index
    %c0_161 = arith.constant 0 : index
    %190 = vector.load %arg18[%c0_158, %c3_159, %c0_160, %c0_161] : memref<2x4x1x8xf32, #tpu.memory_space<vmem>>, vector<1x1x1x8xf32>
    %191 = vector.shape_cast %190 : vector<1x1x1x8xf32> to vector<1x8xf32>
    %192 = vector.broadcast %191 : vector<1x8xf32> to vector<17x8xf32>
    %193 = arith.addf %189, %192 : vector<17x8xf32>
    %194 = tpu.transpose %186, [1, 0] : vector<17x8xf32> -> vector<8x17xf32>
    %cst_162 = arith.constant dense<0.000000e+00> : vector<17x17xf32>
    %195 = tpu.matmul %179, %194, %cst_162 {dimension_numbers = #tpu.dot_dimension_numbers<[1], [0], [0], [1], [0, 0, 1, 1], [], []>} : vector<17x8xf32>, vector<8x17xf32>, vector<17x17xf32> -> vector<17x17xf32>
    %cst_163 = arith.constant 0.353553385 : f32
    %196 = vector.broadcast %cst_163 : f32 to vector<17x17xf32>
    %197 = arith.mulf %195, %196 : vector<17x17xf32>
    %cst_164 = arith.constant dense<0xFF800000> : vector<17xf32>
    %198 = vector.multi_reduction <maximumf>, %197, %cst_164 [1] : vector<17x17xf32> to vector<17xf32>
    %199 = vector.shape_cast %198 : vector<17xf32> to vector<17x1xf32>
    %200 = vector.broadcast %199 : vector<17x1xf32> to vector<17x17xf32>
    %201 = arith.subf %197, %200 : vector<17x17xf32>
    %202 = math.exp %201 : vector<17x17xf32>
    %cst_165 = arith.constant dense<0.000000e+00> : vector<17xf32>
    %203 = vector.multi_reduction <add>, %202, %cst_165 [1] : vector<17x17xf32> to vector<17xf32>
    %204 = vector.shape_cast %203 : vector<17xf32> to vector<17x1xf32>
    %205 = tpu.reciprocal %204 {approx = true} : vector<17x1xf32> -> vector<17x1xf32>
    %206 = vector.broadcast %205 : vector<17x1xf32> to vector<17x17xf32>
    %207 = arith.mulf %202, %206 : vector<17x17xf32>
    %cst_166 = arith.constant dense<0.000000e+00> : vector<17x8xf32>
    %208 = tpu.matmul %207, %193, %cst_166 {dimension_numbers = #tpu.dot_dimension_numbers<[1], [0], [0], [1], [0, 0, 1, 1], [], []>} : vector<17x17xf32>, vector<17x8xf32>, vector<17x8xf32> -> vector<17x8xf32>
    %c0_167 = arith.constant 0 : index
    %c3_168 = arith.constant 3 : index
    %c0_169 = arith.constant 0 : index
    %c0_170 = arith.constant 0 : index
    %209 = vector.load %arg19[%c0_167, %c3_168, %c0_169, %c0_170] : memref<2x4x8x32xf32, #tpu.memory_space<vmem>>, vector<1x1x8x32xf32>
    %210 = vector.shape_cast %209 : vector<1x1x8x32xf32> to vector<8x32xf32>
    %cst_171 = arith.constant dense<0.000000e+00> : vector<17x32xf32>
    %211 = tpu.matmul %208, %210, %cst_171 {dimension_numbers = #tpu.dot_dimension_numbers<[1], [0], [0], [1], [0, 0, 1, 1], [], []>} : vector<17x8xf32>, vector<8x32xf32>, vector<17x32xf32> -> vector<17x32xf32>
    %212 = arith.addf %172, %211 : vector<17x32xf32>
    %213 = arith.addf %27, %212 : vector<17x32xf32>
    %c0_172 = arith.constant 0 : index
    %c0_173 = arith.constant 0 : index
    %c0_174 = arith.constant 0 : index
    %214 = vector.load %arg20[%c0_172, %c0_173, %c0_174] : memref<2x1x32xf32, #tpu.memory_space<vmem>>, vector<1x1x32xf32>
    %215 = vector.shape_cast %214 : vector<1x1x32xf32> to vector<1x32xf32>
    %216 = vector.broadcast %215 : vector<1x32xf32> to vector<17x32xf32>
    %217 = arith.addf %213, %216 : vector<17x32xf32>
    %c0_175 = arith.constant 0 : index
    %c0_176 = arith.constant 0 : index
    %c0_177 = arith.constant 0 : index
    %218 = vector.load %arg21[%c0_175, %c0_176, %c0_177] : memref<2x1x32xf32, #tpu.memory_space<vmem>>, vector<1x1x32xf32>
    %219 = vector.shape_cast %218 : vector<1x1x32xf32> to vector<1x32xf32>
    %c0_178 = arith.constant 0 : index
    %c0_179 = arith.constant 0 : index
    %c0_180 = arith.constant 0 : index
    %220 = vector.load %arg22[%c0_178, %c0_179, %c0_180] : memref<2x1x32xf32, #tpu.memory_space<vmem>>, vector<1x1x32xf32>
    %221 = vector.shape_cast %220 : vector<1x1x32xf32> to vector<1x32xf32>
    %cst_181 = arith.constant dense<0.000000e+00> : vector<17xf32>
    %222 = vector.multi_reduction <add>, %217, %cst_181 [1] : vector<17x32xf32> to vector<17xf32>
    %223 = vector.shape_cast %222 : vector<17xf32> to vector<17x1xf32>
    %cst_182 = arith.constant 3.200000e+01 : f32
    %224 = vector.broadcast %cst_182 : f32 to vector<17x1xf32>
    %225 = arith.divf %223, %224 : vector<17x1xf32>
    %226 = vector.broadcast %225 : vector<17x1xf32> to vector<17x32xf32>
    %227 = arith.subf %217, %226 : vector<17x32xf32>
    %228 = arith.mulf %227, %227 : vector<17x32xf32>
    %cst_183 = arith.constant dense<0.000000e+00> : vector<17xf32>
    %229 = vector.multi_reduction <add>, %228, %cst_183 [1] : vector<17x32xf32> to vector<17xf32>
    %230 = vector.shape_cast %229 : vector<17xf32> to vector<17x1xf32>
    %cst_184 = arith.constant 3.200000e+01 : f32
    %231 = vector.broadcast %cst_184 : f32 to vector<17x1xf32>
    %232 = arith.divf %230, %231 : vector<17x1xf32>
    %cst_185 = arith.constant 9.99999974E-6 : f32
    %233 = vector.broadcast %cst_185 : f32 to vector<17x1xf32>
    %234 = arith.addf %232, %233 : vector<17x1xf32>
    %235 = math.rsqrt %234 : vector<17x1xf32>
    %236 = vector.broadcast %235 : vector<17x1xf32> to vector<17x32xf32>
    %237 = arith.mulf %227, %236 : vector<17x32xf32>
    %238 = vector.broadcast %219 : vector<1x32xf32> to vector<17x32xf32>
    %239 = arith.mulf %237, %238 : vector<17x32xf32>
    %240 = vector.broadcast %221 : vector<1x32xf32> to vector<17x32xf32>
    %241 = arith.addf %239, %240 : vector<17x32xf32>
    %c0_186 = arith.constant 0 : index
    %c0_187 = arith.constant 0 : index
    %c0_188 = arith.constant 0 : index
    %242 = vector.load %arg23[%c0_186, %c0_187, %c0_188] : memref<2x32x128xf32, #tpu.memory_space<vmem>>, vector<1x32x128xf32>
    %243 = vector.shape_cast %242 : vector<1x32x128xf32> to vector<32x128xf32>
    %cst_189 = arith.constant dense<0.000000e+00> : vector<17x128xf32>
    %244 = tpu.matmul %241, %243, %cst_189 {dimension_numbers = #tpu.dot_dimension_numbers<[1], [0], [0], [1], [0, 0, 1, 1], [], []>} : vector<17x32xf32>, vector<32x128xf32>, vector<17x128xf32> -> vector<17x128xf32>
    %c0_190 = arith.constant 0 : index
    %c0_191 = arith.constant 0 : index
    %c0_192 = arith.constant 0 : index
    %245 = vector.load %arg24[%c0_190, %c0_191, %c0_192] : memref<2x1x128xf32, #tpu.memory_space<vmem>>, vector<1x1x128xf32>
    %246 = vector.shape_cast %245 : vector<1x1x128xf32> to vector<1x128xf32>
    %247 = vector.broadcast %246 : vector<1x128xf32> to vector<17x128xf32>
    %248 = arith.addf %244, %247 : vector<17x128xf32>
    %cst_193 = arith.constant 1.702000e+00 : f32
    %249 = vector.broadcast %cst_193 : f32 to vector<17x128xf32>
    %250 = arith.mulf %249, %248 : vector<17x128xf32>
    %251 = arith.negf %250 : vector<17x128xf32>
    %252 = math.exp %251 : vector<17x128xf32>
    %cst_194 = arith.constant 1.000000e+00 : f32
    %253 = vector.broadcast %cst_194 : f32 to vector<17x128xf32>
    %254 = arith.addf %253, %252 : vector<17x128xf32>
    %255 = arith.divf %253, %254 : vector<17x128xf32>
    %256 = arith.mulf %248, %255 : vector<17x128xf32>
    %c0_195 = arith.constant 0 : index
    %c0_196 = arith.constant 0 : index
    %c0_197 = arith.constant 0 : index
    %257 = vector.load %arg25[%c0_195, %c0_196, %c0_197] : memref<2x128x32xf32, #tpu.memory_space<vmem>>, vector<1x128x32xf32>
    %258 = vector.shape_cast %257 : vector<1x128x32xf32> to vector<128x32xf32>
    %cst_198 = arith.constant dense<0.000000e+00> : vector<17x32xf32>
    %259 = tpu.matmul %256, %258, %cst_198 {dimension_numbers = #tpu.dot_dimension_numbers<[1], [0], [0], [1], [0, 0, 1, 1], [], []>} : vector<17x128xf32>, vector<128x32xf32>, vector<17x32xf32> -> vector<17x32xf32>
    %c0_199 = arith.constant 0 : index
    %c0_200 = arith.constant 0 : index
    %c0_201 = arith.constant 0 : index
    %260 = vector.load %arg26[%c0_199, %c0_200, %c0_201] : memref<2x1x32xf32, #tpu.memory_space<vmem>>, vector<1x1x32xf32>
    %261 = vector.shape_cast %260 : vector<1x1x32xf32> to vector<1x32xf32>
    %262 = vector.broadcast %261 : vector<1x32xf32> to vector<17x32xf32>
    %263 = arith.addf %259, %262 : vector<17x32xf32>
    %264 = arith.addf %217, %263 : vector<17x32xf32>
    %c1_202 = arith.constant 1 : index
    %c0_203 = arith.constant 0 : index
    %c0_204 = arith.constant 0 : index
    %265 = vector.load %arg11[%c1_202, %c0_203, %c0_204] : memref<2x1x32xf32, #tpu.memory_space<vmem>>, vector<1x1x32xf32>
    %266 = vector.shape_cast %265 : vector<1x1x32xf32> to vector<1x32xf32>
    %c1_205 = arith.constant 1 : index
    %c0_206 = arith.constant 0 : index
    %c0_207 = arith.constant 0 : index
    %267 = vector.load %arg12[%c1_205, %c0_206, %c0_207] : memref<2x1x32xf32, #tpu.memory_space<vmem>>, vector<1x1x32xf32>
    %268 = vector.shape_cast %267 : vector<1x1x32xf32> to vector<1x32xf32>
    %cst_208 = arith.constant dense<0.000000e+00> : vector<17xf32>
    %269 = vector.multi_reduction <add>, %264, %cst_208 [1] : vector<17x32xf32> to vector<17xf32>
    %270 = vector.shape_cast %269 : vector<17xf32> to vector<17x1xf32>
    %cst_209 = arith.constant 3.200000e+01 : f32
    %271 = vector.broadcast %cst_209 : f32 to vector<17x1xf32>
    %272 = arith.divf %270, %271 : vector<17x1xf32>
    %273 = vector.broadcast %272 : vector<17x1xf32> to vector<17x32xf32>
    %274 = arith.subf %264, %273 : vector<17x32xf32>
    %275 = arith.mulf %274, %274 : vector<17x32xf32>
    %cst_210 = arith.constant dense<0.000000e+00> : vector<17xf32>
    %276 = vector.multi_reduction <add>, %275, %cst_210 [1] : vector<17x32xf32> to vector<17xf32>
    %277 = vector.shape_cast %276 : vector<17xf32> to vector<17x1xf32>
    %cst_211 = arith.constant 3.200000e+01 : f32
    %278 = vector.broadcast %cst_211 : f32 to vector<17x1xf32>
    %279 = arith.divf %277, %278 : vector<17x1xf32>
    %cst_212 = arith.constant 9.99999974E-6 : f32
    %280 = vector.broadcast %cst_212 : f32 to vector<17x1xf32>
    %281 = arith.addf %279, %280 : vector<17x1xf32>
    %282 = math.rsqrt %281 : vector<17x1xf32>
    %283 = vector.broadcast %282 : vector<17x1xf32> to vector<17x32xf32>
    %284 = arith.mulf %274, %283 : vector<17x32xf32>
    %285 = vector.broadcast %266 : vector<1x32xf32> to vector<17x32xf32>
    %286 = arith.mulf %284, %285 : vector<17x32xf32>
    %287 = vector.broadcast %268 : vector<1x32xf32> to vector<17x32xf32>
    %288 = arith.addf %286, %287 : vector<17x32xf32>
    %cst_213 = arith.constant 0.000000e+00 : f32
    %289 = vector.broadcast %cst_213 : f32 to vector<17x32xf32>
    %c1_214 = arith.constant 1 : index
    %c0_215 = arith.constant 0 : index
    %c0_216 = arith.constant 0 : index
    %c0_217 = arith.constant 0 : index
    %290 = vector.load %arg13[%c1_214, %c0_215, %c0_216, %c0_217] : memref<2x4x32x8xf32, #tpu.memory_space<vmem>>, vector<1x1x32x8xf32>
    %291 = vector.shape_cast %290 : vector<1x1x32x8xf32> to vector<32x8xf32>
    %cst_218 = arith.constant dense<0.000000e+00> : vector<17x8xf32>
    %292 = tpu.matmul %288, %291, %cst_218 {dimension_numbers = #tpu.dot_dimension_numbers<[1], [0], [0], [1], [0, 0, 1, 1], [], []>} : vector<17x32xf32>, vector<32x8xf32>, vector<17x8xf32> -> vector<17x8xf32>
    %c1_219 = arith.constant 1 : index
    %c0_220 = arith.constant 0 : index
    %c0_221 = arith.constant 0 : index
    %c0_222 = arith.constant 0 : index
    %293 = vector.load %arg16[%c1_219, %c0_220, %c0_221, %c0_222] : memref<2x4x1x8xf32, #tpu.memory_space<vmem>>, vector<1x1x1x8xf32>
    %294 = vector.shape_cast %293 : vector<1x1x1x8xf32> to vector<1x8xf32>
    %295 = vector.broadcast %294 : vector<1x8xf32> to vector<17x8xf32>
    %296 = arith.addf %292, %295 : vector<17x8xf32>
    %c1_223 = arith.constant 1 : index
    %c0_224 = arith.constant 0 : index
    %c0_225 = arith.constant 0 : index
    %c0_226 = arith.constant 0 : index
    %297 = vector.load %arg14[%c1_223, %c0_224, %c0_225, %c0_226] : memref<2x4x32x8xf32, #tpu.memory_space<vmem>>, vector<1x1x32x8xf32>
    %298 = vector.shape_cast %297 : vector<1x1x32x8xf32> to vector<32x8xf32>
    %cst_227 = arith.constant dense<0.000000e+00> : vector<17x8xf32>
    %299 = tpu.matmul %288, %298, %cst_227 {dimension_numbers = #tpu.dot_dimension_numbers<[1], [0], [0], [1], [0, 0, 1, 1], [], []>} : vector<17x32xf32>, vector<32x8xf32>, vector<17x8xf32> -> vector<17x8xf32>
    %c1_228 = arith.constant 1 : index
    %c0_229 = arith.constant 0 : index
    %c0_230 = arith.constant 0 : index
    %c0_231 = arith.constant 0 : index
    %300 = vector.load %arg17[%c1_228, %c0_229, %c0_230, %c0_231] : memref<2x4x1x8xf32, #tpu.memory_space<vmem>>, vector<1x1x1x8xf32>
    %301 = vector.shape_cast %300 : vector<1x1x1x8xf32> to vector<1x8xf32>
    %302 = vector.broadcast %301 : vector<1x8xf32> to vector<17x8xf32>
    %303 = arith.addf %299, %302 : vector<17x8xf32>
    %c1_232 = arith.constant 1 : index
    %c0_233 = arith.constant 0 : index
    %c0_234 = arith.constant 0 : index
    %c0_235 = arith.constant 0 : index
    %304 = vector.load %arg15[%c1_232, %c0_233, %c0_234, %c0_235] : memref<2x4x32x8xf32, #tpu.memory_space<vmem>>, vector<1x1x32x8xf32>
    %305 = vector.shape_cast %304 : vector<1x1x32x8xf32> to vector<32x8xf32>
    %cst_236 = arith.constant dense<0.000000e+00> : vector<17x8xf32>
    %306 = tpu.matmul %288, %305, %cst_236 {dimension_numbers = #tpu.dot_dimension_numbers<[1], [0], [0], [1], [0, 0, 1, 1], [], []>} : vector<17x32xf32>, vector<32x8xf32>, vector<17x8xf32> -> vector<17x8xf32>
    %c1_237 = arith.constant 1 : index
    %c0_238 = arith.constant 0 : index
    %c0_239 = arith.constant 0 : index
    %c0_240 = arith.constant 0 : index
    %307 = vector.load %arg18[%c1_237, %c0_238, %c0_239, %c0_240] : memref<2x4x1x8xf32, #tpu.memory_space<vmem>>, vector<1x1x1x8xf32>
    %308 = vector.shape_cast %307 : vector<1x1x1x8xf32> to vector<1x8xf32>
    %309 = vector.broadcast %308 : vector<1x8xf32> to vector<17x8xf32>
    %310 = arith.addf %306, %309 : vector<17x8xf32>
    %311 = tpu.transpose %303, [1, 0] : vector<17x8xf32> -> vector<8x17xf32>
    %cst_241 = arith.constant dense<0.000000e+00> : vector<17x17xf32>
    %312 = tpu.matmul %296, %311, %cst_241 {dimension_numbers = #tpu.dot_dimension_numbers<[1], [0], [0], [1], [0, 0, 1, 1], [], []>} : vector<17x8xf32>, vector<8x17xf32>, vector<17x17xf32> -> vector<17x17xf32>
    %cst_242 = arith.constant 0.353553385 : f32
    %313 = vector.broadcast %cst_242 : f32 to vector<17x17xf32>
    %314 = arith.mulf %312, %313 : vector<17x17xf32>
    %cst_243 = arith.constant dense<0xFF800000> : vector<17xf32>
    %315 = vector.multi_reduction <maximumf>, %314, %cst_243 [1] : vector<17x17xf32> to vector<17xf32>
    %316 = vector.shape_cast %315 : vector<17xf32> to vector<17x1xf32>
    %317 = vector.broadcast %316 : vector<17x1xf32> to vector<17x17xf32>
    %318 = arith.subf %314, %317 : vector<17x17xf32>
    %319 = math.exp %318 : vector<17x17xf32>
    %cst_244 = arith.constant dense<0.000000e+00> : vector<17xf32>
    %320 = vector.multi_reduction <add>, %319, %cst_244 [1] : vector<17x17xf32> to vector<17xf32>
    %321 = vector.shape_cast %320 : vector<17xf32> to vector<17x1xf32>
    %322 = tpu.reciprocal %321 {approx = true} : vector<17x1xf32> -> vector<17x1xf32>
    %323 = vector.broadcast %322 : vector<17x1xf32> to vector<17x17xf32>
    %324 = arith.mulf %319, %323 : vector<17x17xf32>
    %cst_245 = arith.constant dense<0.000000e+00> : vector<17x8xf32>
    %325 = tpu.matmul %324, %310, %cst_245 {dimension_numbers = #tpu.dot_dimension_numbers<[1], [0], [0], [1], [0, 0, 1, 1], [], []>} : vector<17x17xf32>, vector<17x8xf32>, vector<17x8xf32> -> vector<17x8xf32>
    %c1_246 = arith.constant 1 : index
    %c0_247 = arith.constant 0 : index
    %c0_248 = arith.constant 0 : index
    %c0_249 = arith.constant 0 : index
    %326 = vector.load %arg19[%c1_246, %c0_247, %c0_248, %c0_249] : memref<2x4x8x32xf32, #tpu.memory_space<vmem>>, vector<1x1x8x32xf32>
    %327 = vector.shape_cast %326 : vector<1x1x8x32xf32> to vector<8x32xf32>
    %cst_250 = arith.constant dense<0.000000e+00> : vector<17x32xf32>
    %328 = tpu.matmul %325, %327, %cst_250 {dimension_numbers = #tpu.dot_dimension_numbers<[1], [0], [0], [1], [0, 0, 1, 1], [], []>} : vector<17x8xf32>, vector<8x32xf32>, vector<17x32xf32> -> vector<17x32xf32>
    %329 = arith.addf %289, %328 : vector<17x32xf32>
    %c1_251 = arith.constant 1 : index
    %c1_252 = arith.constant 1 : index
    %c0_253 = arith.constant 0 : index
    %c0_254 = arith.constant 0 : index
    %330 = vector.load %arg13[%c1_251, %c1_252, %c0_253, %c0_254] : memref<2x4x32x8xf32, #tpu.memory_space<vmem>>, vector<1x1x32x8xf32>
    %331 = vector.shape_cast %330 : vector<1x1x32x8xf32> to vector<32x8xf32>
    %cst_255 = arith.constant dense<0.000000e+00> : vector<17x8xf32>
    %332 = tpu.matmul %288, %331, %cst_255 {dimension_numbers = #tpu.dot_dimension_numbers<[1], [0], [0], [1], [0, 0, 1, 1], [], []>} : vector<17x32xf32>, vector<32x8xf32>, vector<17x8xf32> -> vector<17x8xf32>
    %c1_256 = arith.constant 1 : index
    %c1_257 = arith.constant 1 : index
    %c0_258 = arith.constant 0 : index
    %c0_259 = arith.constant 0 : index
    %333 = vector.load %arg16[%c1_256, %c1_257, %c0_258, %c0_259] : memref<2x4x1x8xf32, #tpu.memory_space<vmem>>, vector<1x1x1x8xf32>
    %334 = vector.shape_cast %333 : vector<1x1x1x8xf32> to vector<1x8xf32>
    %335 = vector.broadcast %334 : vector<1x8xf32> to vector<17x8xf32>
    %336 = arith.addf %332, %335 : vector<17x8xf32>
    %c1_260 = arith.constant 1 : index
    %c1_261 = arith.constant 1 : index
    %c0_262 = arith.constant 0 : index
    %c0_263 = arith.constant 0 : index
    %337 = vector.load %arg14[%c1_260, %c1_261, %c0_262, %c0_263] : memref<2x4x32x8xf32, #tpu.memory_space<vmem>>, vector<1x1x32x8xf32>
    %338 = vector.shape_cast %337 : vector<1x1x32x8xf32> to vector<32x8xf32>
    %cst_264 = arith.constant dense<0.000000e+00> : vector<17x8xf32>
    %339 = tpu.matmul %288, %338, %cst_264 {dimension_numbers = #tpu.dot_dimension_numbers<[1], [0], [0], [1], [0, 0, 1, 1], [], []>} : vector<17x32xf32>, vector<32x8xf32>, vector<17x8xf32> -> vector<17x8xf32>
    %c1_265 = arith.constant 1 : index
    %c1_266 = arith.constant 1 : index
    %c0_267 = arith.constant 0 : index
    %c0_268 = arith.constant 0 : index
    %340 = vector.load %arg17[%c1_265, %c1_266, %c0_267, %c0_268] : memref<2x4x1x8xf32, #tpu.memory_space<vmem>>, vector<1x1x1x8xf32>
    %341 = vector.shape_cast %340 : vector<1x1x1x8xf32> to vector<1x8xf32>
    %342 = vector.broadcast %341 : vector<1x8xf32> to vector<17x8xf32>
    %343 = arith.addf %339, %342 : vector<17x8xf32>
    %c1_269 = arith.constant 1 : index
    %c1_270 = arith.constant 1 : index
    %c0_271 = arith.constant 0 : index
    %c0_272 = arith.constant 0 : index
    %344 = vector.load %arg15[%c1_269, %c1_270, %c0_271, %c0_272] : memref<2x4x32x8xf32, #tpu.memory_space<vmem>>, vector<1x1x32x8xf32>
    %345 = vector.shape_cast %344 : vector<1x1x32x8xf32> to vector<32x8xf32>
    %cst_273 = arith.constant dense<0.000000e+00> : vector<17x8xf32>
    %346 = tpu.matmul %288, %345, %cst_273 {dimension_numbers = #tpu.dot_dimension_numbers<[1], [0], [0], [1], [0, 0, 1, 1], [], []>} : vector<17x32xf32>, vector<32x8xf32>, vector<17x8xf32> -> vector<17x8xf32>
    %c1_274 = arith.constant 1 : index
    %c1_275 = arith.constant 1 : index
    %c0_276 = arith.constant 0 : index
    %c0_277 = arith.constant 0 : index
    %347 = vector.load %arg18[%c1_274, %c1_275, %c0_276, %c0_277] : memref<2x4x1x8xf32, #tpu.memory_space<vmem>>, vector<1x1x1x8xf32>
    %348 = vector.shape_cast %347 : vector<1x1x1x8xf32> to vector<1x8xf32>
    %349 = vector.broadcast %348 : vector<1x8xf32> to vector<17x8xf32>
    %350 = arith.addf %346, %349 : vector<17x8xf32>
    %351 = tpu.transpose %343, [1, 0] : vector<17x8xf32> -> vector<8x17xf32>
    %cst_278 = arith.constant dense<0.000000e+00> : vector<17x17xf32>
    %352 = tpu.matmul %336, %351, %cst_278 {dimension_numbers = #tpu.dot_dimension_numbers<[1], [0], [0], [1], [0, 0, 1, 1], [], []>} : vector<17x8xf32>, vector<8x17xf32>, vector<17x17xf32> -> vector<17x17xf32>
    %cst_279 = arith.constant 0.353553385 : f32
    %353 = vector.broadcast %cst_279 : f32 to vector<17x17xf32>
    %354 = arith.mulf %352, %353 : vector<17x17xf32>
    %cst_280 = arith.constant dense<0xFF800000> : vector<17xf32>
    %355 = vector.multi_reduction <maximumf>, %354, %cst_280 [1] : vector<17x17xf32> to vector<17xf32>
    %356 = vector.shape_cast %355 : vector<17xf32> to vector<17x1xf32>
    %357 = vector.broadcast %356 : vector<17x1xf32> to vector<17x17xf32>
    %358 = arith.subf %354, %357 : vector<17x17xf32>
    %359 = math.exp %358 : vector<17x17xf32>
    %cst_281 = arith.constant dense<0.000000e+00> : vector<17xf32>
    %360 = vector.multi_reduction <add>, %359, %cst_281 [1] : vector<17x17xf32> to vector<17xf32>
    %361 = vector.shape_cast %360 : vector<17xf32> to vector<17x1xf32>
    %362 = tpu.reciprocal %361 {approx = true} : vector<17x1xf32> -> vector<17x1xf32>
    %363 = vector.broadcast %362 : vector<17x1xf32> to vector<17x17xf32>
    %364 = arith.mulf %359, %363 : vector<17x17xf32>
    %cst_282 = arith.constant dense<0.000000e+00> : vector<17x8xf32>
    %365 = tpu.matmul %364, %350, %cst_282 {dimension_numbers = #tpu.dot_dimension_numbers<[1], [0], [0], [1], [0, 0, 1, 1], [], []>} : vector<17x17xf32>, vector<17x8xf32>, vector<17x8xf32> -> vector<17x8xf32>
    %c1_283 = arith.constant 1 : index
    %c1_284 = arith.constant 1 : index
    %c0_285 = arith.constant 0 : index
    %c0_286 = arith.constant 0 : index
    %366 = vector.load %arg19[%c1_283, %c1_284, %c0_285, %c0_286] : memref<2x4x8x32xf32, #tpu.memory_space<vmem>>, vector<1x1x8x32xf32>
    %367 = vector.shape_cast %366 : vector<1x1x8x32xf32> to vector<8x32xf32>
    %cst_287 = arith.constant dense<0.000000e+00> : vector<17x32xf32>
    %368 = tpu.matmul %365, %367, %cst_287 {dimension_numbers = #tpu.dot_dimension_numbers<[1], [0], [0], [1], [0, 0, 1, 1], [], []>} : vector<17x8xf32>, vector<8x32xf32>, vector<17x32xf32> -> vector<17x32xf32>
    %369 = arith.addf %329, %368 : vector<17x32xf32>
    %c1_288 = arith.constant 1 : index
    %c2_289 = arith.constant 2 : index
    %c0_290 = arith.constant 0 : index
    %c0_291 = arith.constant 0 : index
    %370 = vector.load %arg13[%c1_288, %c2_289, %c0_290, %c0_291] : memref<2x4x32x8xf32, #tpu.memory_space<vmem>>, vector<1x1x32x8xf32>
    %371 = vector.shape_cast %370 : vector<1x1x32x8xf32> to vector<32x8xf32>
    %cst_292 = arith.constant dense<0.000000e+00> : vector<17x8xf32>
    %372 = tpu.matmul %288, %371, %cst_292 {dimension_numbers = #tpu.dot_dimension_numbers<[1], [0], [0], [1], [0, 0, 1, 1], [], []>} : vector<17x32xf32>, vector<32x8xf32>, vector<17x8xf32> -> vector<17x8xf32>
    %c1_293 = arith.constant 1 : index
    %c2_294 = arith.constant 2 : index
    %c0_295 = arith.constant 0 : index
    %c0_296 = arith.constant 0 : index
    %373 = vector.load %arg16[%c1_293, %c2_294, %c0_295, %c0_296] : memref<2x4x1x8xf32, #tpu.memory_space<vmem>>, vector<1x1x1x8xf32>
    %374 = vector.shape_cast %373 : vector<1x1x1x8xf32> to vector<1x8xf32>
    %375 = vector.broadcast %374 : vector<1x8xf32> to vector<17x8xf32>
    %376 = arith.addf %372, %375 : vector<17x8xf32>
    %c1_297 = arith.constant 1 : index
    %c2_298 = arith.constant 2 : index
    %c0_299 = arith.constant 0 : index
    %c0_300 = arith.constant 0 : index
    %377 = vector.load %arg14[%c1_297, %c2_298, %c0_299, %c0_300] : memref<2x4x32x8xf32, #tpu.memory_space<vmem>>, vector<1x1x32x8xf32>
    %378 = vector.shape_cast %377 : vector<1x1x32x8xf32> to vector<32x8xf32>
    %cst_301 = arith.constant dense<0.000000e+00> : vector<17x8xf32>
    %379 = tpu.matmul %288, %378, %cst_301 {dimension_numbers = #tpu.dot_dimension_numbers<[1], [0], [0], [1], [0, 0, 1, 1], [], []>} : vector<17x32xf32>, vector<32x8xf32>, vector<17x8xf32> -> vector<17x8xf32>
    %c1_302 = arith.constant 1 : index
    %c2_303 = arith.constant 2 : index
    %c0_304 = arith.constant 0 : index
    %c0_305 = arith.constant 0 : index
    %380 = vector.load %arg17[%c1_302, %c2_303, %c0_304, %c0_305] : memref<2x4x1x8xf32, #tpu.memory_space<vmem>>, vector<1x1x1x8xf32>
    %381 = vector.shape_cast %380 : vector<1x1x1x8xf32> to vector<1x8xf32>
    %382 = vector.broadcast %381 : vector<1x8xf32> to vector<17x8xf32>
    %383 = arith.addf %379, %382 : vector<17x8xf32>
    %c1_306 = arith.constant 1 : index
    %c2_307 = arith.constant 2 : index
    %c0_308 = arith.constant 0 : index
    %c0_309 = arith.constant 0 : index
    %384 = vector.load %arg15[%c1_306, %c2_307, %c0_308, %c0_309] : memref<2x4x32x8xf32, #tpu.memory_space<vmem>>, vector<1x1x32x8xf32>
    %385 = vector.shape_cast %384 : vector<1x1x32x8xf32> to vector<32x8xf32>
    %cst_310 = arith.constant dense<0.000000e+00> : vector<17x8xf32>
    %386 = tpu.matmul %288, %385, %cst_310 {dimension_numbers = #tpu.dot_dimension_numbers<[1], [0], [0], [1], [0, 0, 1, 1], [], []>} : vector<17x32xf32>, vector<32x8xf32>, vector<17x8xf32> -> vector<17x8xf32>
    %c1_311 = arith.constant 1 : index
    %c2_312 = arith.constant 2 : index
    %c0_313 = arith.constant 0 : index
    %c0_314 = arith.constant 0 : index
    %387 = vector.load %arg18[%c1_311, %c2_312, %c0_313, %c0_314] : memref<2x4x1x8xf32, #tpu.memory_space<vmem>>, vector<1x1x1x8xf32>
    %388 = vector.shape_cast %387 : vector<1x1x1x8xf32> to vector<1x8xf32>
    %389 = vector.broadcast %388 : vector<1x8xf32> to vector<17x8xf32>
    %390 = arith.addf %386, %389 : vector<17x8xf32>
    %391 = tpu.transpose %383, [1, 0] : vector<17x8xf32> -> vector<8x17xf32>
    %cst_315 = arith.constant dense<0.000000e+00> : vector<17x17xf32>
    %392 = tpu.matmul %376, %391, %cst_315 {dimension_numbers = #tpu.dot_dimension_numbers<[1], [0], [0], [1], [0, 0, 1, 1], [], []>} : vector<17x8xf32>, vector<8x17xf32>, vector<17x17xf32> -> vector<17x17xf32>
    %cst_316 = arith.constant 0.353553385 : f32
    %393 = vector.broadcast %cst_316 : f32 to vector<17x17xf32>
    %394 = arith.mulf %392, %393 : vector<17x17xf32>
    %cst_317 = arith.constant dense<0xFF800000> : vector<17xf32>
    %395 = vector.multi_reduction <maximumf>, %394, %cst_317 [1] : vector<17x17xf32> to vector<17xf32>
    %396 = vector.shape_cast %395 : vector<17xf32> to vector<17x1xf32>
    %397 = vector.broadcast %396 : vector<17x1xf32> to vector<17x17xf32>
    %398 = arith.subf %394, %397 : vector<17x17xf32>
    %399 = math.exp %398 : vector<17x17xf32>
    %cst_318 = arith.constant dense<0.000000e+00> : vector<17xf32>
    %400 = vector.multi_reduction <add>, %399, %cst_318 [1] : vector<17x17xf32> to vector<17xf32>
    %401 = vector.shape_cast %400 : vector<17xf32> to vector<17x1xf32>
    %402 = tpu.reciprocal %401 {approx = true} : vector<17x1xf32> -> vector<17x1xf32>
    %403 = vector.broadcast %402 : vector<17x1xf32> to vector<17x17xf32>
    %404 = arith.mulf %399, %403 : vector<17x17xf32>
    %cst_319 = arith.constant dense<0.000000e+00> : vector<17x8xf32>
    %405 = tpu.matmul %404, %390, %cst_319 {dimension_numbers = #tpu.dot_dimension_numbers<[1], [0], [0], [1], [0, 0, 1, 1], [], []>} : vector<17x17xf32>, vector<17x8xf32>, vector<17x8xf32> -> vector<17x8xf32>
    %c1_320 = arith.constant 1 : index
    %c2_321 = arith.constant 2 : index
    %c0_322 = arith.constant 0 : index
    %c0_323 = arith.constant 0 : index
    %406 = vector.load %arg19[%c1_320, %c2_321, %c0_322, %c0_323] : memref<2x4x8x32xf32, #tpu.memory_space<vmem>>, vector<1x1x8x32xf32>
    %407 = vector.shape_cast %406 : vector<1x1x8x32xf32> to vector<8x32xf32>
    %cst_324 = arith.constant dense<0.000000e+00> : vector<17x32xf32>
    %408 = tpu.matmul %405, %407, %cst_324 {dimension_numbers = #tpu.dot_dimension_numbers<[1], [0], [0], [1], [0, 0, 1, 1], [], []>} : vector<17x8xf32>, vector<8x32xf32>, vector<17x32xf32> -> vector<17x32xf32>
    %409 = arith.addf %369, %408 : vector<17x32xf32>
    %c1_325 = arith.constant 1 : index
    %c3_326 = arith.constant 3 : index
    %c0_327 = arith.constant 0 : index
    %c0_328 = arith.constant 0 : index
    %410 = vector.load %arg13[%c1_325, %c3_326, %c0_327, %c0_328] : memref<2x4x32x8xf32, #tpu.memory_space<vmem>>, vector<1x1x32x8xf32>
    %411 = vector.shape_cast %410 : vector<1x1x32x8xf32> to vector<32x8xf32>
    %cst_329 = arith.constant dense<0.000000e+00> : vector<17x8xf32>
    %412 = tpu.matmul %288, %411, %cst_329 {dimension_numbers = #tpu.dot_dimension_numbers<[1], [0], [0], [1], [0, 0, 1, 1], [], []>} : vector<17x32xf32>, vector<32x8xf32>, vector<17x8xf32> -> vector<17x8xf32>
    %c1_330 = arith.constant 1 : index
    %c3_331 = arith.constant 3 : index
    %c0_332 = arith.constant 0 : index
    %c0_333 = arith.constant 0 : index
    %413 = vector.load %arg16[%c1_330, %c3_331, %c0_332, %c0_333] : memref<2x4x1x8xf32, #tpu.memory_space<vmem>>, vector<1x1x1x8xf32>
    %414 = vector.shape_cast %413 : vector<1x1x1x8xf32> to vector<1x8xf32>
    %415 = vector.broadcast %414 : vector<1x8xf32> to vector<17x8xf32>
    %416 = arith.addf %412, %415 : vector<17x8xf32>
    %c1_334 = arith.constant 1 : index
    %c3_335 = arith.constant 3 : index
    %c0_336 = arith.constant 0 : index
    %c0_337 = arith.constant 0 : index
    %417 = vector.load %arg14[%c1_334, %c3_335, %c0_336, %c0_337] : memref<2x4x32x8xf32, #tpu.memory_space<vmem>>, vector<1x1x32x8xf32>
    %418 = vector.shape_cast %417 : vector<1x1x32x8xf32> to vector<32x8xf32>
    %cst_338 = arith.constant dense<0.000000e+00> : vector<17x8xf32>
    %419 = tpu.matmul %288, %418, %cst_338 {dimension_numbers = #tpu.dot_dimension_numbers<[1], [0], [0], [1], [0, 0, 1, 1], [], []>} : vector<17x32xf32>, vector<32x8xf32>, vector<17x8xf32> -> vector<17x8xf32>
    %c1_339 = arith.constant 1 : index
    %c3_340 = arith.constant 3 : index
    %c0_341 = arith.constant 0 : index
    %c0_342 = arith.constant 0 : index
    %420 = vector.load %arg17[%c1_339, %c3_340, %c0_341, %c0_342] : memref<2x4x1x8xf32, #tpu.memory_space<vmem>>, vector<1x1x1x8xf32>
    %421 = vector.shape_cast %420 : vector<1x1x1x8xf32> to vector<1x8xf32>
    %422 = vector.broadcast %421 : vector<1x8xf32> to vector<17x8xf32>
    %423 = arith.addf %419, %422 : vector<17x8xf32>
    %c1_343 = arith.constant 1 : index
    %c3_344 = arith.constant 3 : index
    %c0_345 = arith.constant 0 : index
    %c0_346 = arith.constant 0 : index
    %424 = vector.load %arg15[%c1_343, %c3_344, %c0_345, %c0_346] : memref<2x4x32x8xf32, #tpu.memory_space<vmem>>, vector<1x1x32x8xf32>
    %425 = vector.shape_cast %424 : vector<1x1x32x8xf32> to vector<32x8xf32>
    %cst_347 = arith.constant dense<0.000000e+00> : vector<17x8xf32>
    %426 = tpu.matmul %288, %425, %cst_347 {dimension_numbers = #tpu.dot_dimension_numbers<[1], [0], [0], [1], [0, 0, 1, 1], [], []>} : vector<17x32xf32>, vector<32x8xf32>, vector<17x8xf32> -> vector<17x8xf32>
    %c1_348 = arith.constant 1 : index
    %c3_349 = arith.constant 3 : index
    %c0_350 = arith.constant 0 : index
    %c0_351 = arith.constant 0 : index
    %427 = vector.load %arg18[%c1_348, %c3_349, %c0_350, %c0_351] : memref<2x4x1x8xf32, #tpu.memory_space<vmem>>, vector<1x1x1x8xf32>
    %428 = vector.shape_cast %427 : vector<1x1x1x8xf32> to vector<1x8xf32>
    %429 = vector.broadcast %428 : vector<1x8xf32> to vector<17x8xf32>
    %430 = arith.addf %426, %429 : vector<17x8xf32>
    %431 = tpu.transpose %423, [1, 0] : vector<17x8xf32> -> vector<8x17xf32>
    %cst_352 = arith.constant dense<0.000000e+00> : vector<17x17xf32>
    %432 = tpu.matmul %416, %431, %cst_352 {dimension_numbers = #tpu.dot_dimension_numbers<[1], [0], [0], [1], [0, 0, 1, 1], [], []>} : vector<17x8xf32>, vector<8x17xf32>, vector<17x17xf32> -> vector<17x17xf32>
    %cst_353 = arith.constant 0.353553385 : f32
    %433 = vector.broadcast %cst_353 : f32 to vector<17x17xf32>
    %434 = arith.mulf %432, %433 : vector<17x17xf32>
    %cst_354 = arith.constant dense<0xFF800000> : vector<17xf32>
    %435 = vector.multi_reduction <maximumf>, %434, %cst_354 [1] : vector<17x17xf32> to vector<17xf32>
    %436 = vector.shape_cast %435 : vector<17xf32> to vector<17x1xf32>
    %437 = vector.broadcast %436 : vector<17x1xf32> to vector<17x17xf32>
    %438 = arith.subf %434, %437 : vector<17x17xf32>
    %439 = math.exp %438 : vector<17x17xf32>
    %cst_355 = arith.constant dense<0.000000e+00> : vector<17xf32>
    %440 = vector.multi_reduction <add>, %439, %cst_355 [1] : vector<17x17xf32> to vector<17xf32>
    %441 = vector.shape_cast %440 : vector<17xf32> to vector<17x1xf32>
    %442 = tpu.reciprocal %441 {approx = true} : vector<17x1xf32> -> vector<17x1xf32>
    %443 = vector.broadcast %442 : vector<17x1xf32> to vector<17x17xf32>
    %444 = arith.mulf %439, %443 : vector<17x17xf32>
    %cst_356 = arith.constant dense<0.000000e+00> : vector<17x8xf32>
    %445 = tpu.matmul %444, %430, %cst_356 {dimension_numbers = #tpu.dot_dimension_numbers<[1], [0], [0], [1], [0, 0, 1, 1], [], []>} : vector<17x17xf32>, vector<17x8xf32>, vector<17x8xf32> -> vector<17x8xf32>
    %c1_357 = arith.constant 1 : index
    %c3_358 = arith.constant 3 : index
    %c0_359 = arith.constant 0 : index
    %c0_360 = arith.constant 0 : index
    %446 = vector.load %arg19[%c1_357, %c3_358, %c0_359, %c0_360] : memref<2x4x8x32xf32, #tpu.memory_space<vmem>>, vector<1x1x8x32xf32>
    %447 = vector.shape_cast %446 : vector<1x1x8x32xf32> to vector<8x32xf32>
    %cst_361 = arith.constant dense<0.000000e+00> : vector<17x32xf32>
    %448 = tpu.matmul %445, %447, %cst_361 {dimension_numbers = #tpu.dot_dimension_numbers<[1], [0], [0], [1], [0, 0, 1, 1], [], []>} : vector<17x8xf32>, vector<8x32xf32>, vector<17x32xf32> -> vector<17x32xf32>
    %449 = arith.addf %409, %448 : vector<17x32xf32>
    %450 = arith.addf %264, %449 : vector<17x32xf32>
    %c1_362 = arith.constant 1 : index
    %c0_363 = arith.constant 0 : index
    %c0_364 = arith.constant 0 : index
    %451 = vector.load %arg20[%c1_362, %c0_363, %c0_364] : memref<2x1x32xf32, #tpu.memory_space<vmem>>, vector<1x1x32xf32>
    %452 = vector.shape_cast %451 : vector<1x1x32xf32> to vector<1x32xf32>
    %453 = vector.broadcast %452 : vector<1x32xf32> to vector<17x32xf32>
    %454 = arith.addf %450, %453 : vector<17x32xf32>
    %c1_365 = arith.constant 1 : index
    %c0_366 = arith.constant 0 : index
    %c0_367 = arith.constant 0 : index
    %455 = vector.load %arg21[%c1_365, %c0_366, %c0_367] : memref<2x1x32xf32, #tpu.memory_space<vmem>>, vector<1x1x32xf32>
    %456 = vector.shape_cast %455 : vector<1x1x32xf32> to vector<1x32xf32>
    %c1_368 = arith.constant 1 : index
    %c0_369 = arith.constant 0 : index
    %c0_370 = arith.constant 0 : index
    %457 = vector.load %arg22[%c1_368, %c0_369, %c0_370] : memref<2x1x32xf32, #tpu.memory_space<vmem>>, vector<1x1x32xf32>
    %458 = vector.shape_cast %457 : vector<1x1x32xf32> to vector<1x32xf32>
    %cst_371 = arith.constant dense<0.000000e+00> : vector<17xf32>
    %459 = vector.multi_reduction <add>, %454, %cst_371 [1] : vector<17x32xf32> to vector<17xf32>
    %460 = vector.shape_cast %459 : vector<17xf32> to vector<17x1xf32>
    %cst_372 = arith.constant 3.200000e+01 : f32
    %461 = vector.broadcast %cst_372 : f32 to vector<17x1xf32>
    %462 = arith.divf %460, %461 : vector<17x1xf32>
    %463 = vector.broadcast %462 : vector<17x1xf32> to vector<17x32xf32>
    %464 = arith.subf %454, %463 : vector<17x32xf32>
    %465 = arith.mulf %464, %464 : vector<17x32xf32>
    %cst_373 = arith.constant dense<0.000000e+00> : vector<17xf32>
    %466 = vector.multi_reduction <add>, %465, %cst_373 [1] : vector<17x32xf32> to vector<17xf32>
    %467 = vector.shape_cast %466 : vector<17xf32> to vector<17x1xf32>
    %cst_374 = arith.constant 3.200000e+01 : f32
    %468 = vector.broadcast %cst_374 : f32 to vector<17x1xf32>
    %469 = arith.divf %467, %468 : vector<17x1xf32>
    %cst_375 = arith.constant 9.99999974E-6 : f32
    %470 = vector.broadcast %cst_375 : f32 to vector<17x1xf32>
    %471 = arith.addf %469, %470 : vector<17x1xf32>
    %472 = math.rsqrt %471 : vector<17x1xf32>
    %473 = vector.broadcast %472 : vector<17x1xf32> to vector<17x32xf32>
    %474 = arith.mulf %464, %473 : vector<17x32xf32>
    %475 = vector.broadcast %456 : vector<1x32xf32> to vector<17x32xf32>
    %476 = arith.mulf %474, %475 : vector<17x32xf32>
    %477 = vector.broadcast %458 : vector<1x32xf32> to vector<17x32xf32>
    %478 = arith.addf %476, %477 : vector<17x32xf32>
    %c1_376 = arith.constant 1 : index
    %c0_377 = arith.constant 0 : index
    %c0_378 = arith.constant 0 : index
    %479 = vector.load %arg23[%c1_376, %c0_377, %c0_378] : memref<2x32x128xf32, #tpu.memory_space<vmem>>, vector<1x32x128xf32>
    %480 = vector.shape_cast %479 : vector<1x32x128xf32> to vector<32x128xf32>
    %cst_379 = arith.constant dense<0.000000e+00> : vector<17x128xf32>
    %481 = tpu.matmul %478, %480, %cst_379 {dimension_numbers = #tpu.dot_dimension_numbers<[1], [0], [0], [1], [0, 0, 1, 1], [], []>} : vector<17x32xf32>, vector<32x128xf32>, vector<17x128xf32> -> vector<17x128xf32>
    %c1_380 = arith.constant 1 : index
    %c0_381 = arith.constant 0 : index
    %c0_382 = arith.constant 0 : index
    %482 = vector.load %arg24[%c1_380, %c0_381, %c0_382] : memref<2x1x128xf32, #tpu.memory_space<vmem>>, vector<1x1x128xf32>
    %483 = vector.shape_cast %482 : vector<1x1x128xf32> to vector<1x128xf32>
    %484 = vector.broadcast %483 : vector<1x128xf32> to vector<17x128xf32>
    %485 = arith.addf %481, %484 : vector<17x128xf32>
    %cst_383 = arith.constant 1.702000e+00 : f32
    %486 = vector.broadcast %cst_383 : f32 to vector<17x128xf32>
    %487 = arith.mulf %486, %485 : vector<17x128xf32>
    %488 = arith.negf %487 : vector<17x128xf32>
    %489 = math.exp %488 : vector<17x128xf32>
    %cst_384 = arith.constant 1.000000e+00 : f32
    %490 = vector.broadcast %cst_384 : f32 to vector<17x128xf32>
    %491 = arith.addf %490, %489 : vector<17x128xf32>
    %492 = arith.divf %490, %491 : vector<17x128xf32>
    %493 = arith.mulf %485, %492 : vector<17x128xf32>
    %c1_385 = arith.constant 1 : index
    %c0_386 = arith.constant 0 : index
    %c0_387 = arith.constant 0 : index
    %494 = vector.load %arg25[%c1_385, %c0_386, %c0_387] : memref<2x128x32xf32, #tpu.memory_space<vmem>>, vector<1x128x32xf32>
    %495 = vector.shape_cast %494 : vector<1x128x32xf32> to vector<128x32xf32>
    %cst_388 = arith.constant dense<0.000000e+00> : vector<17x32xf32>
    %496 = tpu.matmul %493, %495, %cst_388 {dimension_numbers = #tpu.dot_dimension_numbers<[1], [0], [0], [1], [0, 0, 1, 1], [], []>} : vector<17x128xf32>, vector<128x32xf32>, vector<17x32xf32> -> vector<17x32xf32>
    %c1_389 = arith.constant 1 : index
    %c0_390 = arith.constant 0 : index
    %c0_391 = arith.constant 0 : index
    %497 = vector.load %arg26[%c1_389, %c0_390, %c0_391] : memref<2x1x32xf32, #tpu.memory_space<vmem>>, vector<1x1x32xf32>
    %498 = vector.shape_cast %497 : vector<1x1x32xf32> to vector<1x32xf32>
    %499 = vector.broadcast %498 : vector<1x32xf32> to vector<17x32xf32>
    %500 = arith.addf %496, %499 : vector<17x32xf32>
    %501 = arith.addf %454, %500 : vector<17x32xf32>
    %502 = vector.extract_strided_slice %501 {offsets = [0, 0], sizes = [1, 32], strides = [1, 1]} : vector<17x32xf32> to vector<1x32xf32>
    %c0_392 = arith.constant 0 : index
    %c0_393 = arith.constant 0 : index
    %503 = vector.load %arg6[%c0_392, %c0_393] : memref<1x32xf32, #tpu.memory_space<vmem>>, vector<1x32xf32>
    %c0_394 = arith.constant 0 : index
    %c0_395 = arith.constant 0 : index
    %504 = vector.load %arg7[%c0_394, %c0_395] : memref<1x32xf32, #tpu.memory_space<vmem>>, vector<1x32xf32>
    %cst_396 = arith.constant dense<0.000000e+00> : vector<1xf32>
    %505 = vector.multi_reduction <add>, %502, %cst_396 [1] : vector<1x32xf32> to vector<1xf32>
    %506 = vector.shape_cast %505 : vector<1xf32> to vector<1x1xf32>
    %cst_397 = arith.constant 3.200000e+01 : f32
    %507 = vector.broadcast %cst_397 : f32 to vector<1x1xf32>
    %508 = arith.divf %506, %507 : vector<1x1xf32>
    %509 = vector.broadcast %508 : vector<1x1xf32> to vector<1x32xf32>
    %510 = arith.subf %502, %509 : vector<1x32xf32>
    %511 = arith.mulf %510, %510 : vector<1x32xf32>
    %cst_398 = arith.constant dense<0.000000e+00> : vector<1xf32>
    %512 = vector.multi_reduction <add>, %511, %cst_398 [1] : vector<1x32xf32> to vector<1xf32>
    %513 = vector.shape_cast %512 : vector<1xf32> to vector<1x1xf32>
    %cst_399 = arith.constant 3.200000e+01 : f32
    %514 = vector.broadcast %cst_399 : f32 to vector<1x1xf32>
    %515 = arith.divf %513, %514 : vector<1x1xf32>
    %cst_400 = arith.constant 9.99999974E-6 : f32
    %516 = vector.broadcast %cst_400 : f32 to vector<1x1xf32>
    %517 = arith.addf %515, %516 : vector<1x1xf32>
    %518 = math.rsqrt %517 : vector<1x1xf32>
    %519 = vector.broadcast %518 : vector<1x1xf32> to vector<1x32xf32>
    %520 = arith.mulf %510, %519 : vector<1x32xf32>
    %521 = arith.mulf %520, %503 : vector<1x32xf32>
    %522 = arith.addf %521, %504 : vector<1x32xf32>
    %c0_401 = arith.constant 0 : index
    %c0_402 = arith.constant 0 : index
    %523 = vector.load %arg8[%c0_401, %c0_402] : memref<32x16xf32, #tpu.memory_space<vmem>>, vector<32x16xf32>
    %cst_403 = arith.constant dense<0.000000e+00> : vector<1x16xf32>
    %524 = tpu.matmul %522, %523, %cst_403 {dimension_numbers = #tpu.dot_dimension_numbers<[1], [0], [0], [1], [0, 0, 1, 1], [], []>} : vector<1x32xf32>, vector<32x16xf32>, vector<1x16xf32> -> vector<1x16xf32>
    %c0_404 = arith.constant 0 : index
    %c0_405 = arith.constant 0 : index
    %c0_406 = arith.constant 0 : index
    %525 = vector.load %arg27[%c0_404, %c0_405, %c0_406] : memref<1x1x16xf32, #tpu.memory_space<vmem>>, vector<1x1x16xf32>
    %526 = vector.shape_cast %525 : vector<1x1x16xf32> to vector<1x16xf32>
    %527 = vector.shape_cast %524 : vector<1x16xf32> to vector<1x1x16xf32>
    tpu.vector_store %arg27[%c0_404, %c0_405, %c0_406], %527 {strides = array<i32>} : memref<1x1x16xf32, #tpu.memory_space<vmem>>, vector<1x1x16xf32>,
    %c0_407 = arith.constant 0 : index
    %c0_408 = arith.constant 0 : index
    %528 = vector.load %arg9[%c0_407, %c0_408] : memref<16x1xf32, #tpu.memory_space<vmem>>, vector<16x1xf32>
    %cst_409 = arith.constant dense<0.000000e+00> : vector<1x1xf32>
    %529 = tpu.matmul %524, %528, %cst_409 {dimension_numbers = #tpu.dot_dimension_numbers<[1], [0], [0], [1], [0, 0, 1, 1], [], []>} : vector<1x16xf32>, vector<16x1xf32>, vector<1x1xf32> -> vector<1x1xf32>
    %c0_410 = arith.constant 0 : index
    %c0_411 = arith.constant 0 : index
    %530 = vector.load %arg10[%c0_410, %c0_411] : memref<1x1xf32, #tpu.memory_space<vmem>>, vector<1x1xf32>
    %531 = arith.addf %529, %530 : vector<1x1xf32>
    %c0_412 = arith.constant 0 : index
    %c0_413 = arith.constant 0 : index
    %c0_414 = arith.constant 0 : index
    %532 = vector.load %arg28[%c0_412, %c0_413, %c0_414] : memref<1x1x1xf32, #tpu.memory_space<vmem>>, vector<1x1x1xf32>
    %533 = vector.shape_cast %532 : vector<1x1x1xf32> to vector<1x1xf32>
    %534 = vector.shape_cast %531 : vector<1x1xf32> to vector<1x1x1xf32>
    tpu.vector_store %arg28[%c0_412, %c0_413, %c0_414], %534 {strides = array<i32>} : memref<1x1x1xf32, #tpu.memory_space<vmem>>, vector<1x1x1xf32>,
    return
  }
  func.func @transform_0(%arg0: i32) -> (i32, i32, i32) {
    %c0_i32 = arith.constant 0 : i32
    %c0_i32_0 = arith.constant 0 : i32
    %c0_i32_1 = arith.constant 0 : i32
    return %arg0, %c0_i32, %c0_i32_0 : i32, i32, i32
  }
  func.func @transform_1(%arg0: i32) -> (i32, i32) {
    %c0_i32 = arith.constant 0 : i32
    %c0_i32_0 = arith.constant 0 : i32
    %c0_i32_1 = arith.constant 0 : i32
    return %c0_i32, %c0_i32_0 : i32, i32
  }
  func.func @transform_2(%arg0: i32) -> (i32, i32) {
    %c0_i32 = arith.constant 0 : i32
    %c0_i32_0 = arith.constant 0 : i32
    %c0_i32_1 = arith.constant 0 : i32
    return %c0_i32, %c0_i32_0 : i32, i32
  }
  func.func @transform_3(%arg0: i32) -> (i32, i32) {
    %c0_i32 = arith.constant 0 : i32
    %c0_i32_0 = arith.constant 0 : i32
    %c0_i32_1 = arith.constant 0 : i32
    return %c0_i32, %c0_i32_0 : i32, i32
  }
  func.func @transform_4(%arg0: i32) -> (i32, i32) {
    %c0_i32 = arith.constant 0 : i32
    %c0_i32_0 = arith.constant 0 : i32
    %c0_i32_1 = arith.constant 0 : i32
    return %c0_i32, %c0_i32_0 : i32, i32
  }
  func.func @transform_5(%arg0: i32) -> (i32, i32) {
    %c0_i32 = arith.constant 0 : i32
    %c0_i32_0 = arith.constant 0 : i32
    %c0_i32_1 = arith.constant 0 : i32
    return %c0_i32, %c0_i32_0 : i32, i32
  }
  func.func @transform_6(%arg0: i32) -> (i32, i32) {
    %c0_i32 = arith.constant 0 : i32
    %c0_i32_0 = arith.constant 0 : i32
    %c0_i32_1 = arith.constant 0 : i32
    return %c0_i32, %c0_i32_0 : i32, i32
  }
  func.func @transform_7(%arg0: i32) -> (i32, i32) {
    %c0_i32 = arith.constant 0 : i32
    %c0_i32_0 = arith.constant 0 : i32
    %c0_i32_1 = arith.constant 0 : i32
    return %c0_i32, %c0_i32_0 : i32, i32
  }
  func.func @transform_8(%arg0: i32) -> (i32, i32) {
    %c0_i32 = arith.constant 0 : i32
    %c0_i32_0 = arith.constant 0 : i32
    %c0_i32_1 = arith.constant 0 : i32
    return %c0_i32, %c0_i32_0 : i32, i32
  }
  func.func @transform_9(%arg0: i32) -> (i32, i32) {
    %c0_i32 = arith.constant 0 : i32
    %c0_i32_0 = arith.constant 0 : i32
    %c0_i32_1 = arith.constant 0 : i32
    return %c0_i32, %c0_i32_0 : i32, i32
  }
  func.func @transform_10(%arg0: i32) -> (i32, i32, i32) {
    %c0_i32 = arith.constant 0 : i32
    %c0_i32_0 = arith.constant 0 : i32
    %c0_i32_1 = arith.constant 0 : i32
    %c0_i32_2 = arith.constant 0 : i32
    return %c0_i32, %c0_i32_0, %c0_i32_1 : i32, i32, i32
  }
  func.func @transform_11(%arg0: i32) -> (i32, i32, i32) {
    %c0_i32 = arith.constant 0 : i32
    %c0_i32_0 = arith.constant 0 : i32
    %c0_i32_1 = arith.constant 0 : i32
    %c0_i32_2 = arith.constant 0 : i32
    return %c0_i32, %c0_i32_0, %c0_i32_1 : i32, i32, i32
  }
  func.func @transform_12(%arg0: i32) -> (i32, i32, i32, i32) {
    %c0_i32 = arith.constant 0 : i32
    %c0_i32_0 = arith.constant 0 : i32
    %c0_i32_1 = arith.constant 0 : i32
    %c0_i32_2 = arith.constant 0 : i32
    %c0_i32_3 = arith.constant 0 : i32
    return %c0_i32, %c0_i32_0, %c0_i32_1, %c0_i32_2 : i32, i32, i32, i32
  }
  func.func @transform_13(%arg0: i32) -> (i32, i32, i32, i32) {
    %c0_i32 = arith.constant 0 : i32
    %c0_i32_0 = arith.constant 0 : i32
    %c0_i32_1 = arith.constant 0 : i32
    %c0_i32_2 = arith.constant 0 : i32
    %c0_i32_3 = arith.constant 0 : i32
    return %c0_i32, %c0_i32_0, %c0_i32_1, %c0_i32_2 : i32, i32, i32, i32
  }
  func.func @transform_14(%arg0: i32) -> (i32, i32, i32, i32) {
    %c0_i32 = arith.constant 0 : i32
    %c0_i32_0 = arith.constant 0 : i32
    %c0_i32_1 = arith.constant 0 : i32
    %c0_i32_2 = arith.constant 0 : i32
    %c0_i32_3 = arith.constant 0 : i32
    return %c0_i32, %c0_i32_0, %c0_i32_1, %c0_i32_2 : i32, i32, i32, i32
  }
  func.func @transform_15(%arg0: i32) -> (i32, i32, i32, i32) {
    %c0_i32 = arith.constant 0 : i32
    %c0_i32_0 = arith.constant 0 : i32
    %c0_i32_1 = arith.constant 0 : i32
    %c0_i32_2 = arith.constant 0 : i32
    %c0_i32_3 = arith.constant 0 : i32
    return %c0_i32, %c0_i32_0, %c0_i32_1, %c0_i32_2 : i32, i32, i32, i32
  }
  func.func @transform_16(%arg0: i32) -> (i32, i32, i32, i32) {
    %c0_i32 = arith.constant 0 : i32
    %c0_i32_0 = arith.constant 0 : i32
    %c0_i32_1 = arith.constant 0 : i32
    %c0_i32_2 = arith.constant 0 : i32
    %c0_i32_3 = arith.constant 0 : i32
    return %c0_i32, %c0_i32_0, %c0_i32_1, %c0_i32_2 : i32, i32, i32, i32
  }
  func.func @transform_17(%arg0: i32) -> (i32, i32, i32, i32) {
    %c0_i32 = arith.constant 0 : i32
    %c0_i32_0 = arith.constant 0 : i32
    %c0_i32_1 = arith.constant 0 : i32
    %c0_i32_2 = arith.constant 0 : i32
    %c0_i32_3 = arith.constant 0 : i32
    return %c0_i32, %c0_i32_0, %c0_i32_1, %c0_i32_2 : i32, i32, i32, i32
  }
  func.func @transform_18(%arg0: i32) -> (i32, i32, i32, i32) {
    %c0_i32 = arith.constant 0 : i32
    %c0_i32_0 = arith.constant 0 : i32
    %c0_i32_1 = arith.constant 0 : i32
    %c0_i32_2 = arith.constant 0 : i32
    %c0_i32_3 = arith.constant 0 : i32
    return %c0_i32, %c0_i32_0, %c0_i32_1, %c0_i32_2 : i32, i32, i32, i32
  }
  func.func @transform_19(%arg0: i32) -> (i32, i32, i32) {
    %c0_i32 = arith.constant 0 : i32
    %c0_i32_0 = arith.constant 0 : i32
    %c0_i32_1 = arith.constant 0 : i32
    %c0_i32_2 = arith.constant 0 : i32
    return %c0_i32, %c0_i32_0, %c0_i32_1 : i32, i32, i32
  }
  func.func @transform_20(%arg0: i32) -> (i32, i32, i32) {
    %c0_i32 = arith.constant 0 : i32
    %c0_i32_0 = arith.constant 0 : i32
    %c0_i32_1 = arith.constant 0 : i32
    %c0_i32_2 = arith.constant 0 : i32
    return %c0_i32, %c0_i32_0, %c0_i32_1 : i32, i32, i32
  }
  func.func @transform_21(%arg0: i32) -> (i32, i32, i32) {
    %c0_i32 = arith.constant 0 : i32
    %c0_i32_0 = arith.constant 0 : i32
    %c0_i32_1 = arith.constant 0 : i32
    %c0_i32_2 = arith.constant 0 : i32
    return %c0_i32, %c0_i32_0, %c0_i32_1 : i32, i32, i32
  }
  func.func @transform_22(%arg0: i32) -> (i32, i32, i32) {
    %c0_i32 = arith.constant 0 : i32
    %c0_i32_0 = arith.constant 0 : i32
    %c0_i32_1 = arith.constant 0 : i32
    %c0_i32_2 = arith.constant 0 : i32
    return %c0_i32, %c0_i32_0, %c0_i32_1 : i32, i32, i32
  }
  func.func @transform_23(%arg0: i32) -> (i32, i32, i32) {
    %c0_i32 = arith.constant 0 : i32
    %c0_i32_0 = arith.constant 0 : i32
    %c0_i32_1 = arith.constant 0 : i32
    %c0_i32_2 = arith.constant 0 : i32
    return %c0_i32, %c0_i32_0, %c0_i32_1 : i32, i32, i32
  }
  func.func @transform_24(%arg0: i32) -> (i32, i32, i32) {
    %c0_i32 = arith.constant 0 : i32
    %c0_i32_0 = arith.constant 0 : i32
    %c0_i32_1 = arith.constant 0 : i32
    %c0_i32_2 = arith.constant 0 : i32
    return %c0_i32, %c0_i32_0, %c0_i32_1 : i32, i32, i32
  }
  func.func @transform_25(%arg0: i32) -> (i32, i32, i32) {
    %c0_i32 = arith.constant 0 : i32
    %c0_i32_0 = arith.constant 0 : i32
    %c0_i32_1 = arith.constant 0 : i32
    %c0_i32_2 = arith.constant 0 : i32
    return %c0_i32, %c0_i32_0, %c0_i32_1 : i32, i32, i32
  }
  func.func @transform_26(%arg0: i32) -> (i32, i32, i32) {
    %c0_i32 = arith.constant 0 : i32
    %c0_i32_0 = arith.constant 0 : i32
    %c0_i32_1 = arith.constant 0 : i32
    return %arg0, %c0_i32, %c0_i32_0 : i32, i32, i32
  }
  func.func @transform_27(%arg0: i32) -> (i32, i32, i32) {
    %c0_i32 = arith.constant 0 : i32
    %c0_i32_0 = arith.constant 0 : i32
    %c0_i32_1 = arith.constant 0 : i32
    return %arg0, %c0_i32, %c0_i32_0 : i32, i32, i32
  }
}

</mosaic_0001>

<llo_original>
// kernel: clip_model_forward.1
$region0: #{clip_model_forward.1}
  #allocation0 [shape = 'u32[]', space=smem, size = 0x4, offset = 0x4, fixed_abs, tag = 'smem constant byte address 0x4 - core index']
  #allocation1 [shape = 'u32[72,128]{1,0:T(1,128)}', space=vmem, size = 0x9000, scoped, tag = 'internal scratch']
  #allocation2 [shape = 'f32[1,1]{1,0:T(1,128)S(1)}', space=vmem, size = 0x200, scoped, tag = 'scoped memory for clip_model_forward.1']
  %s0 = inlined_call_operand.vmem [shape: f32[2,17,192], index: 0, kind: input, shape index: {}]
  %s1 = inlined_call_operand.vmem [shape: f32[192,32], index: 1, kind: input, shape index: {}]
  %s2 = inlined_call_operand.vmem [shape: f32[17,32], index: 2, kind: input, shape index: {}]
  %s3 = inlined_call_operand.vmem [shape: f32[1,32], index: 3, kind: input, shape index: {}]
  %s4 = inlined_call_operand.vmem [shape: f32[1,32], index: 4, kind: input, shape index: {}]
  %s5 = inlined_call_operand.vmem [shape: f32[1,32], index: 5, kind: input, shape index: {}]
  %s6 = inlined_call_operand.vmem [shape: f32[1,32], index: 6, kind: input, shape index: {}]
  %s7 = inlined_call_operand.vmem [shape: f32[32,16], index: 7, kind: input, shape index: {}]
  %s8 = inlined_call_operand.vmem [shape: f32[16,1], index: 8, kind: input, shape index: {}]
  %s9 = inlined_call_operand.<no memory space> [shape: f32[1,1], index: 9, kind: input, shape index: {}]
  %s10 = inlined_call_operand.vmem [shape: f32[2,1,32], index: 10, kind: input, shape index: {}]
  %s11 = inlined_call_operand.vmem [shape: f32[2,1,32], index: 11, kind: input, shape index: {}]
  %s12 = inlined_call_operand.vmem [shape: f32[2,4,32,8], index: 12, kind: input, shape index: {}]
  %s13 = inlined_call_operand.vmem [shape: f32[2,4,32,8], index: 13, kind: input, shape index: {}]
  %s14 = inlined_call_operand.vmem [shape: f32[2,4,32,8], index: 14, kind: input, shape index: {}]
  %s15 = inlined_call_operand.vmem [shape: f32[2,4,1,8], index: 15, kind: input, shape index: {}]
  %s16 = inlined_call_operand.vmem [shape: f32[2,4,1,8], index: 16, kind: input, shape index: {}]
  %s17 = inlined_call_operand.vmem [shape: f32[2,4,1,8], index: 17, kind: input, shape index: {}]
  %s18 = inlined_call_operand.vmem [shape: f32[2,4,8,32], index: 18, kind: input, shape index: {}]
  %s19 = inlined_call_operand.vmem [shape: f32[2,1,32], index: 19, kind: input, shape index: {}]
  %s20 = inlined_call_operand.vmem [shape: f32[2,1,32], index: 20, kind: input, shape index: {}]
  %s21 = inlined_call_operand.vmem [shape: f32[2,1,32], index: 21, kind: input, shape index: {}]
  %s22 = inlined_call_operand.vmem [shape: f32[2,32,128], index: 22, kind: input, shape index: {}]
  %s23 = inlined_call_operand.vmem [shape: f32[2,1,128], index: 23, kind: input, shape index: {}]
  %s24 = inlined_call_operand.vmem [shape: f32[2,128,32], index: 24, kind: input, shape index: {}]
  %s25 = inlined_call_operand.vmem [shape: f32[2,1,32], index: 25, kind: input, shape index: {}]
  %s26 = inlined_call_operand.hbm [shape: f32[2,1,16], index: 26, kind: output, shape index: {0}]
  %s27 = inlined_call_operand.vmem [shape: f32[2,1,1], index: 27, kind: output, shape index: {1}]
  %28 = xla_tuple %s26, %s27
  %s29 = sld [smem:[#allocation0]]
  $region145: #{clip_model_forward.1} parent=0
    _
  %s31 = ssub.s32 1, %s29
  %s32 = scalar_select 0, %s31, %s29
  %v33 = vstv %s9
  %34 = vst [vmem:[#allocation2] sm:$0x1] %v33
  $region1: #{clip_model_forward.1} parent=0
    #allocation3 [shape = 'u8[1024]{0}', space=vmem, size = 0x400, scoped, tag = 'output window, operand 0']
    #allocation4 [shape = 's32[2]{0}', space=sflag, size = 0x8, scoped, tag = 'scoped memory for clip_model_forward.1']
    %35 = vsyncpa [#allocation4], 0
    %s36 = scalar_lea.sflag [#allocation4], 1
    %37 = vsyncpa %s36, 0
    loop: start=0, step=1, limit=4
    $region2: #{clip_model_forward.1} parent=1 // loop_pre_header
      _
    $region3: #{clip_model_forward.1} parent=1 // loop_header
      %s39 = sphi 0, %s43
      %p40 = scmp.ge.s32.totalorder %s39, 4
      %s49 = sphi 0, %s51
      %s52 = sphi 0, %s49
      %s53 = sphi 0, %s52
      %s69 = sphi 0, %s53
      %s73 = sphi 0, %s73
      %s75 = sphi 0, %s73
      %s76 = sphi 0, %s75
      %s90 = sphi 0, %s76
      %s94 = sphi 0, %s94
      %s96 = sphi 0, %s94
      %s97 = sphi 0, %s96
      %s111 = sphi 0, %s97
      %s115 = sphi 0, %s115
      %s117 = sphi 0, %s115
      %s118 = sphi 0, %s117
      %s132 = sphi 0, %s118
      %s136 = sphi 0, %s136
      %s138 = sphi 0, %s136
      %s139 = sphi 0, %s138
      %s153 = sphi 0, %s139
      %s157 = sphi 0, %s157
      %s159 = sphi 0, %s157
      %s160 = sphi 0, %s159
      %s174 = sphi 0, %s160
      %s178 = sphi 0, %s178
      %s180 = sphi 0, %s178
      %s181 = sphi 0, %s180
      %s195 = sphi 0, %s181
      %s199 = sphi 0, %s199
      %s201 = sphi 0, %s199
      %s202 = sphi 0, %s201
      %s216 = sphi 0, %s202
      %s220 = sphi 0, %s220
      %s222 = sphi 0, %s220
      %s223 = sphi 0, %s222
      %s237 = sphi 0, %s223
      %s241 = sphi 0, %s241
      %s243 = sphi 0, %s241
      %s244 = sphi 0, %s243
      %s258 = sphi 0, %s244
      %s262 = sphi 0, %s262
      %s264 = sphi 0, %s262
      %s265 = sphi 0, %s264
      %s279 = sphi 0, %s265
      %s283 = sphi 0, %s283
      %s285 = sphi 0, %s283
      %s286 = sphi 0, %s285
      %s300 = sphi 0, %s286
      %s304 = sphi 0, %s304
      %s306 = sphi 0, %s304
      %s307 = sphi 0, %s306
      %s321 = sphi 0, %s307
      %s325 = sphi 0, %s325
      %s327 = sphi 0, %s325
      %s328 = sphi 0, %s327
      %s342 = sphi 0, %s328
      %s346 = sphi 0, %s346
      %s348 = sphi 0, %s346
      %s349 = sphi 0, %s348
      %s363 = sphi 0, %s349
      %s367 = sphi 0, %s367
      %s369 = sphi 0, %s367
      %s370 = sphi 0, %s369
      %s384 = sphi 0, %s370
      %s388 = sphi 0, %s388
      %s390 = sphi 0, %s388
      %s391 = sphi 0, %s390
      %s405 = sphi 0, %s391
      %s409 = sphi 0, %s409
      %s411 = sphi 0, %s409
      %s412 = sphi 0, %s411
      %s426 = sphi 0, %s412
      %s430 = sphi 0, %s430
      %s432 = sphi 0, %s430
      %s433 = sphi 0, %s432
      %s447 = sphi 0, %s433
      %s451 = sphi 0, %s451
      %s453 = sphi 0, %s451
      %s454 = sphi 0, %s453
      %s468 = sphi 0, %s454
      %s472 = sphi 0, %s472
      %s474 = sphi 0, %s472
      %s475 = sphi 0, %s474
      %s489 = sphi 0, %s475
      %s493 = sphi 0, %s493
      %s495 = sphi 0, %s493
      %s496 = sphi 0, %s495
      %s510 = sphi 0, %s496
      %s514 = sphi 0, %s514
      %s516 = sphi 0, %s514
      %s517 = sphi 0, %s516
      %s531 = sphi 0, %s517
      %s535 = sphi 0, %s535
      %s537 = sphi 0, %s535
      %s538 = sphi 0, %s537
      %s552 = sphi 0, %s538
      %s556 = sphi 0, %s556
      %s558 = sphi 0, %s556
      %s559 = sphi 0, %s558
      %s573 = sphi 0, %s559
      %s577 = sphi 0, %s577
      %s579 = sphi 0, %s577
      %s580 = sphi 0, %s579
      %s594 = sphi 0, %s580
      %s600 = sphi 0, %s602
      %s603 = sphi 0, %s600
      %s604 = sphi 0, %s603
      %s620 = sphi 0, %s604
      %s626 = sphi 0, %s628
      %s629 = sphi 0, %s626
      %s630 = sphi 0, %s629
      %s646 = sphi 0, %s630
    $region4: #{clip_model_forward.1} parent=1 // loop_header_branch
      %42 = sbr.rel (%p40) target = $region8
    $region5: #{clip_model_forward.1} parent=1 // loop_body
      %s44 = ssub.s32 %s39, 1
      %s45 = ssub.s32 %s39, 2
      %s46 = sadd.s32 %s39, 1
      %s47 = ssub.s32 %s39, %s46
      %p48 = scmp.eq.s32.totalorder %s47, 0
      %s50 = sadd.s32 %s49, 1
      %s51 = scalar_select %p48, %s49, %s50
      %p54 = pneg %p48
      %p55 = scmp.eq.s32.totalorder %s39, 1
      %p56 = por %p54, %p55
      %p57 = scmp.ne.s32.totalorder %s49, %s52
      %p58 = scmp.eq.s32.totalorder %s39, 0
      %p59 = por %p57, %p58
      %p60 = scmp.ne.s32.totalorder %s49, %s52
      %p61 = scmp.eq.s32.totalorder %s44, 1
      %p62 = por %p60, %p61
      %p63 = scmp.ne.s32.totalorder %s52, %s53
      %p64 = scmp.eq.s32.totalorder %s44, 0
      %p65 = por %p63, %p64
      %p66 = scmp.ne.s32.totalorder %s52, %s53
      %p67 = scmp.eq.s32.totalorder %s45, 1
      %p68 = por %p66, %p67
      %p70 = scmp.ne.s32.totalorder %s53, %s69
      %p71 = scmp.eq.s32.totalorder %s45, 0
      %p72 = por %p70, %p71
      %s74 = sadd.s32 %s73, 1
      %p77 = scmp.eq.s32.totalorder %s39, 1
      %p78 = scmp.ne.s32.totalorder %s73, %s75
      %p79 = scmp.eq.s32.totalorder %s39, 0
      %p80 = por %p78, %p79
      %p81 = scmp.ne.s32.totalorder %s73, %s75
      %p82 = scmp.eq.s32.totalorder %s44, 1
      %p83 = por %p81, %p82
      %p84 = scmp.ne.s32.totalorder %s75, %s76
      %p85 = scmp.eq.s32.totalorder %s44, 0
      %p86 = por %p84, %p85
      %p87 = scmp.ne.s32.totalorder %s75, %s76
      %p88 = scmp.eq.s32.totalorder %s45, 1
      %p89 = por %p87, %p88
      %p91 = scmp.ne.s32.totalorder %s76, %s90
      %p92 = scmp.eq.s32.totalorder %s45, 0
      %p93 = por %p91, %p92
      %s95 = sadd.s32 %s94, 1
      %p98 = scmp.eq.s32.totalorder %s39, 1
      %p99 = scmp.ne.s32.totalorder %s94, %s96
      %p100 = scmp.eq.s32.totalorder %s39, 0
      %p101 = por %p99, %p100
      %p102 = scmp.ne.s32.totalorder %s94, %s96
      %p103 = scmp.eq.s32.totalorder %s44, 1
      %p104 = por %p102, %p103
      %p105 = scmp.ne.s32.totalorder %s96, %s97
      %p106 = scmp.eq.s32.totalorder %s44, 0
      %p107 = por %p105, %p106
      %p108 = scmp.ne.s32.totalorder %s96, %s97
      %p109 = scmp.eq.s32.totalorder %s45, 1
      %p110 = por %p108, %p109
      %p112 = scmp.ne.s32.totalorder %s97, %s111
      %p113 = scmp.eq.s32.totalorder %s45, 0
      %p114 = por %p112, %p113
      %s116 = sadd.s32 %s115, 1
      %p119 = scmp.eq.s32.totalorder %s39, 1
      %p120 = scmp.ne.s32.totalorder %s115, %s117
      %p121 = scmp.eq.s32.totalorder %s39, 0
      %p122 = por %p120, %p121
      %p123 = scmp.ne.s32.totalorder %s115, %s117
      %p124 = scmp.eq.s32.totalorder %s44, 1
      %p125 = por %p123, %p124
      %p126 = scmp.ne.s32.totalorder %s117, %s118
      %p127 = scmp.eq.s32.totalorder %s44, 0
      %p128 = por %p126, %p127
      %p129 = scmp.ne.s32.totalorder %s117, %s118
      %p130 = scmp.eq.s32.totalorder %s45, 1
      %p131 = por %p129, %p130
      %p133 = scmp.ne.s32.totalorder %s118, %s132
      %p134 = scmp.eq.s32.totalorder %s45, 0
      %p135 = por %p133, %p134
      %s137 = sadd.s32 %s136, 1
      %p140 = scmp.eq.s32.totalorder %s39, 1
      %p141 = scmp.ne.s32.totalorder %s136, %s138
      %p142 = scmp.eq.s32.totalorder %s39, 0
      %p143 = por %p141, %p142
      %p144 = scmp.ne.s32.totalorder %s136, %s138
      %p145 = scmp.eq.s32.totalorder %s44, 1
      %p146 = por %p144, %p145
      %p147 = scmp.ne.s32.totalorder %s138, %s139
      %p148 = scmp.eq.s32.totalorder %s44, 0
      %p149 = por %p147, %p148
      %p150 = scmp.ne.s32.totalorder %s138, %s139
      %p151 = scmp.eq.s32.totalorder %s45, 1
      %p152 = por %p150, %p151
      %p154 = scmp.ne.s32.totalorder %s139, %s153
      %p155 = scmp.eq.s32.totalorder %s45, 0
      %p156 = por %p154, %p155
      %s158 = sadd.s32 %s157, 1
      %p161 = scmp.eq.s32.totalorder %s39, 1
      %p162 = scmp.ne.s32.totalorder %s157, %s159
      %p163 = scmp.eq.s32.totalorder %s39, 0
      %p164 = por %p162, %p163
      %p165 = scmp.ne.s32.totalorder %s157, %s159
      %p166 = scmp.eq.s32.totalorder %s44, 1
      %p167 = por %p165, %p166
      %p168 = scmp.ne.s32.totalorder %s159, %s160
      %p169 = scmp.eq.s32.totalorder %s44, 0
      %p170 = por %p168, %p169
      %p171 = scmp.ne.s32.totalorder %s159, %s160
      %p172 = scmp.eq.s32.totalorder %s45, 1
      %p173 = por %p171, %p172
      %p175 = scmp.ne.s32.totalorder %s160, %s174
      %p176 = scmp.eq.s32.totalorder %s45, 0
      %p177 = por %p175, %p176
      %s179 = sadd.s32 %s178, 1
      %p182 = scmp.eq.s32.totalorder %s39, 1
      %p183 = scmp.ne.s32.totalorder %s178, %s180
      %p184 = scmp.eq.s32.totalorder %s39, 0
      %p185 = por %p183, %p184
      %p186 = scmp.ne.s32.totalorder %s178, %s180
      %p187 = scmp.eq.s32.totalorder %s44, 1
      %p188 = por %p186, %p187
      %p189 = scmp.ne.s32.totalorder %s180, %s181
      %p190 = scmp.eq.s32.totalorder %s44, 0
      %p191 = por %p189, %p190
      %p192 = scmp.ne.s32.totalorder %s180, %s181
      %p193 = scmp.eq.s32.totalorder %s45, 1
      %p194 = por %p192, %p193
      %p196 = scmp.ne.s32.totalorder %s181, %s195
      %p197 = scmp.eq.s32.totalorder %s45, 0
      %p198 = por %p196, %p197
      %s200 = sadd.s32 %s199, 1
      %p203 = scmp.eq.s32.totalorder %s39, 1
      %p204 = scmp.ne.s32.totalorder %s199, %s201
      %p205 = scmp.eq.s32.totalorder %s39, 0
      %p206 = por %p204, %p205
      %p207 = scmp.ne.s32.totalorder %s199, %s201
      %p208 = scmp.eq.s32.totalorder %s44, 1
      %p209 = por %p207, %p208
      %p210 = scmp.ne.s32.totalorder %s201, %s202
      %p211 = scmp.eq.s32.totalorder %s44, 0
      %p212 = por %p210, %p211
      %p213 = scmp.ne.s32.totalorder %s201, %s202
      %p214 = scmp.eq.s32.totalorder %s45, 1
      %p215 = por %p213, %p214
      %p217 = scmp.ne.s32.totalorder %s202, %s216
      %p218 = scmp.eq.s32.totalorder %s45, 0
      %p219 = por %p217, %p218
      %s221 = sadd.s32 %s220, 1
      %p224 = scmp.eq.s32.totalorder %s39, 1
      %p225 = scmp.ne.s32.totalorder %s220, %s222
      %p226 = scmp.eq.s32.totalorder %s39, 0
      %p227 = por %p225, %p226
      %p228 = scmp.ne.s32.totalorder %s220, %s222
      %p229 = scmp.eq.s32.totalorder %s44, 1
      %p230 = por %p228, %p229
      %p231 = scmp.ne.s32.totalorder %s222, %s223
      %p232 = scmp.eq.s32.totalorder %s44, 0
      %p233 = por %p231, %p232
      %p234 = scmp.ne.s32.totalorder %s222, %s223
      %p235 = scmp.eq.s32.totalorder %s45, 1
      %p236 = por %p234, %p235
      %p238 = scmp.ne.s32.totalorder %s223, %s237
      %p239 = scmp.eq.s32.totalorder %s45, 0
      %p240 = por %p238, %p239
      %s242 = sadd.s32 %s241, 1
      %p245 = scmp.eq.s32.totalorder %s39, 1
      %p246 = scmp.ne.s32.totalorder %s241, %s243
      %p247 = scmp.eq.s32.totalorder %s39, 0
      %p248 = por %p246, %p247
      %p249 = scmp.ne.s32.totalorder %s241, %s243
      %p250 = scmp.eq.s32.totalorder %s44, 1
      %p251 = por %p249, %p250
      %p252 = scmp.ne.s32.totalorder %s243, %s244
      %p253 = scmp.eq.s32.totalorder %s44, 0
      %p254 = por %p252, %p253
      %p255 = scmp.ne.s32.totalorder %s243, %s244
      %p256 = scmp.eq.s32.totalorder %s45, 1
      %p257 = por %p255, %p256
      %p259 = scmp.ne.s32.totalorder %s244, %s258
      %p260 = scmp.eq.s32.totalorder %s45, 0
      %p261 = por %p259, %p260
      %s263 = sadd.s32 %s262, 1
      %p266 = scmp.eq.s32.totalorder %s39, 1
      %p267 = scmp.ne.s32.totalorder %s262, %s264
      %p268 = scmp.eq.s32.totalorder %s39, 0
      %p269 = por %p267, %p268
      %p270 = scmp.ne.s32.totalorder %s262, %s264
      %p271 = scmp.eq.s32.totalorder %s44, 1
      %p272 = por %p270, %p271
      %p273 = scmp.ne.s32.totalorder %s264, %s265
      %p274 = scmp.eq.s32.totalorder %s44, 0
      %p275 = por %p273, %p274
      %p276 = scmp.ne.s32.totalorder %s264, %s265
      %p277 = scmp.eq.s32.totalorder %s45, 1
      %p278 = por %p276, %p277
      %p280 = scmp.ne.s32.totalorder %s265, %s279
      %p281 = scmp.eq.s32.totalorder %s45, 0
      %p282 = por %p280, %p281
      %s284 = sadd.s32 %s283, 1
      %p287 = scmp.eq.s32.totalorder %s39, 1
      %p288 = scmp.ne.s32.totalorder %s283, %s285
      %p289 = scmp.eq.s32.totalorder %s39, 0
      %p290 = por %p288, %p289
      %p291 = scmp.ne.s32.totalorder %s283, %s285
      %p292 = scmp.eq.s32.totalorder %s44, 1
      %p293 = por %p291, %p292
      %p294 = scmp.ne.s32.totalorder %s285, %s286
      %p295 = scmp.eq.s32.totalorder %s44, 0
      %p296 = por %p294, %p295
      %p297 = scmp.ne.s32.totalorder %s285, %s286
      %p298 = scmp.eq.s32.totalorder %s45, 1
      %p299 = por %p297, %p298
      %p301 = scmp.ne.s32.totalorder %s286, %s300
      %p302 = scmp.eq.s32.totalorder %s45, 0
      %p303 = por %p301, %p302
      %s305 = sadd.s32 %s304, 1
      %p308 = scmp.eq.s32.totalorder %s39, 1
      %p309 = scmp.ne.s32.totalorder %s304, %s306
      %p310 = scmp.eq.s32.totalorder %s39, 0
      %p311 = por %p309, %p310
      %p312 = scmp.ne.s32.totalorder %s304, %s306
      %p313 = scmp.eq.s32.totalorder %s44, 1
      %p314 = por %p312, %p313
      %p315 = scmp.ne.s32.totalorder %s306, %s307
      %p316 = scmp.eq.s32.totalorder %s44, 0
      %p317 = por %p315, %p316
      %p318 = scmp.ne.s32.totalorder %s306, %s307
      %p319 = scmp.eq.s32.totalorder %s45, 1
      %p320 = por %p318, %p319
      %p322 = scmp.ne.s32.totalorder %s307, %s321
      %p323 = scmp.eq.s32.totalorder %s45, 0
      %p324 = por %p322, %p323
      %s326 = sadd.s32 %s325, 1
      %p329 = scmp.eq.s32.totalorder %s39, 1
      %p330 = scmp.ne.s32.totalorder %s325, %s327
      %p331 = scmp.eq.s32.totalorder %s39, 0
      %p332 = por %p330, %p331
      %p333 = scmp.ne.s32.totalorder %s325, %s327
      %p334 = scmp.eq.s32.totalorder %s44, 1
      %p335 = por %p333, %p334
      %p336 = scmp.ne.s32.totalorder %s327, %s328
      %p337 = scmp.eq.s32.totalorder %s44, 0
      %p338 = por %p336, %p337
      %p339 = scmp.ne.s32.totalorder %s327, %s328
      %p340 = scmp.eq.s32.totalorder %s45, 1
      %p341 = por %p339, %p340
      %p343 = scmp.ne.s32.totalorder %s328, %s342
      %p344 = scmp.eq.s32.totalorder %s45, 0
      %p345 = por %p343, %p344
      %s347 = sadd.s32 %s346, 1
      %p350 = scmp.eq.s32.totalorder %s39, 1
      %p351 = scmp.ne.s32.totalorder %s346, %s348
      %p352 = scmp.eq.s32.totalorder %s39, 0
      %p353 = por %p351, %p352
      %p354 = scmp.ne.s32.totalorder %s346, %s348
      %p355 = scmp.eq.s32.totalorder %s44, 1
      %p356 = por %p354, %p355
      %p357 = scmp.ne.s32.totalorder %s348, %s349
      %p358 = scmp.eq.s32.totalorder %s44, 0
      %p359 = por %p357, %p358
      %p360 = scmp.ne.s32.totalorder %s348, %s349
      %p361 = scmp.eq.s32.totalorder %s45, 1
      %p362 = por %p360, %p361
      %p364 = scmp.ne.s32.totalorder %s349, %s363
      %p365 = scmp.eq.s32.totalorder %s45, 0
      %p366 = por %p364, %p365
      %s368 = sadd.s32 %s367, 1
      %p371 = scmp.eq.s32.totalorder %s39, 1
      %p372 = scmp.ne.s32.totalorder %s367, %s369
      %p373 = scmp.eq.s32.totalorder %s39, 0
      %p374 = por %p372, %p373
      %p375 = scmp.ne.s32.totalorder %s367, %s369
      %p376 = scmp.eq.s32.totalorder %s44, 1
      %p377 = por %p375, %p376
      %p378 = scmp.ne.s32.totalorder %s369, %s370
      %p379 = scmp.eq.s32.totalorder %s44, 0
      %p380 = por %p378, %p379
      %p381 = scmp.ne.s32.totalorder %s369, %s370
      %p382 = scmp.eq.s32.totalorder %s45, 1
      %p383 = por %p381, %p382
      %p385 = scmp.ne.s32.totalorder %s370, %s384
      %p386 = scmp.eq.s32.totalorder %s45, 0
      %p387 = por %p385, %p386
      %s389 = sadd.s32 %s388, 1
      %p392 = scmp.eq.s32.totalorder %s39, 1
      %p393 = scmp.ne.s32.totalorder %s388, %s390
      %p394 = scmp.eq.s32.totalorder %s39, 0
      %p395 = por %p393, %p394
      %p396 = scmp.ne.s32.totalorder %s388, %s390
      %p397 = scmp.eq.s32.totalorder %s44, 1
      %p398 = por %p396, %p397
      %p399 = scmp.ne.s32.totalorder %s390, %s391
      %p400 = scmp.eq.s32.totalorder %s44, 0
      %p401 = por %p399, %p400
      %p402 = scmp.ne.s32.totalorder %s390, %s391
      %p403 = scmp.eq.s32.totalorder %s45, 1
      %p404 = por %p402, %p403
      %p406 = scmp.ne.s32.totalorder %s391, %s405
      %p407 = scmp.eq.s32.totalorder %s45, 0
      %p408 = por %p406, %p407
      %s410 = sadd.s32 %s409, 1
      %p413 = scmp.eq.s32.totalorder %s39, 1
      %p414 = scmp.ne.s32.totalorder %s409, %s411
      %p415 = scmp.eq.s32.totalorder %s39, 0
      %p416 = por %p414, %p415
      %p417 = scmp.ne.s32.totalorder %s409, %s411
      %p418 = scmp.eq.s32.totalorder %s44, 1
      %p419 = por %p417, %p418
      %p420 = scmp.ne.s32.totalorder %s411, %s412
      %p421 = scmp.eq.s32.totalorder %s44, 0
      %p422 = por %p420, %p421
      %p423 = scmp.ne.s32.totalorder %s411, %s412
      %p424 = scmp.eq.s32.totalorder %s45, 1
      %p425 = por %p423, %p424
      %p427 = scmp.ne.s32.totalorder %s412, %s426
      %p428 = scmp.eq.s32.totalorder %s45, 0
      %p429 = por %p427, %p428
      %s431 = sadd.s32 %s430, 1
      %p434 = scmp.eq.s32.totalorder %s39, 1
      %p435 = scmp.ne.s32.totalorder %s430, %s432
      %p436 = scmp.eq.s32.totalorder %s39, 0
      %p437 = por %p435, %p436
      %p438 = scmp.ne.s32.totalorder %s430, %s432
      %p439 = scmp.eq.s32.totalorder %s44, 1
      %p440 = por %p438, %p439
      %p441 = scmp.ne.s32.totalorder %s432, %s433
      %p442 = scmp.eq.s32.totalorder %s44, 0
      %p443 = por %p441, %p442
      %p444 = scmp.ne.s32.totalorder %s432, %s433
      %p445 = scmp.eq.s32.totalorder %s45, 1
      %p446 = por %p444, %p445
      %p448 = scmp.ne.s32.totalorder %s433, %s447
      %p449 = scmp.eq.s32.totalorder %s45, 0
      %p450 = por %p448, %p449
      %s452 = sadd.s32 %s451, 1
      %p455 = scmp.eq.s32.totalorder %s39, 1
      %p456 = scmp.ne.s32.totalorder %s451, %s453
      %p457 = scmp.eq.s32.totalorder %s39, 0
      %p458 = por %p456, %p457
      %p459 = scmp.ne.s32.totalorder %s451, %s453
      %p460 = scmp.eq.s32.totalorder %s44, 1
      %p461 = por %p459, %p460
      %p462 = scmp.ne.s32.totalorder %s453, %s454
      %p463 = scmp.eq.s32.totalorder %s44, 0
      %p464 = por %p462, %p463
      %p465 = scmp.ne.s32.totalorder %s453, %s454
      %p466 = scmp.eq.s32.totalorder %s45, 1
      %p467 = por %p465, %p466
      %p469 = scmp.ne.s32.totalorder %s454, %s468
      %p470 = scmp.eq.s32.totalorder %s45, 0
      %p471 = por %p469, %p470
      %s473 = sadd.s32 %s472, 1
      %p476 = scmp.eq.s32.totalorder %s39, 1
      %p477 = scmp.ne.s32.totalorder %s472, %s474
      %p478 = scmp.eq.s32.totalorder %s39, 0
      %p479 = por %p477, %p478
      %p480 = scmp.ne.s32.totalorder %s472, %s474
      %p481 = scmp.eq.s32.totalorder %s44, 1
      %p482 = por %p480, %p481
      %p483 = scmp.ne.s32.totalorder %s474, %s475
      %p484 = scmp.eq.s32.totalorder %s44, 0
      %p485 = por %p483, %p484
      %p486 = scmp.ne.s32.totalorder %s474, %s475
      %p487 = scmp.eq.s32.totalorder %s45, 1
      %p488 = por %p486, %p487
      %p490 = scmp.ne.s32.totalorder %s475, %s489
      %p491 = scmp.eq.s32.totalorder %s45, 0
      %p492 = por %p490, %p491
      %s494 = sadd.s32 %s493, 1
      %p497 = scmp.eq.s32.totalorder %s39, 1
      %p498 = scmp.ne.s32.totalorder %s493, %s495
      %p499 = scmp.eq.s32.totalorder %s39, 0
      %p500 = por %p498, %p499
      %p501 = scmp.ne.s32.totalorder %s493, %s495
      %p502 = scmp.eq.s32.totalorder %s44, 1
      %p503 = por %p501, %p502
      %p504 = scmp.ne.s32.totalorder %s495, %s496
      %p505 = scmp.eq.s32.totalorder %s44, 0
      %p506 = por %p504, %p505
      %p507 = scmp.ne.s32.totalorder %s495, %s496
      %p508 = scmp.eq.s32.totalorder %s45, 1
      %p509 = por %p507, %p508
      %p511 = scmp.ne.s32.totalorder %s496, %s510
      %p512 = scmp.eq.s32.totalorder %s45, 0
      %p513 = por %p511, %p512
      %s515 = sadd.s32 %s514, 1
      %p518 = scmp.eq.s32.totalorder %s39, 1
      %p519 = scmp.ne.s32.totalorder %s514, %s516
      %p520 = scmp.eq.s32.totalorder %s39, 0
      %p521 = por %p519, %p520
      %p522 = scmp.ne.s32.totalorder %s514, %s516
      %p523 = scmp.eq.s32.totalorder %s44, 1
      %p524 = por %p522, %p523
      %p525 = scmp.ne.s32.totalorder %s516, %s517
      %p526 = scmp.eq.s32.totalorder %s44, 0
      %p527 = por %p525, %p526
      %p528 = scmp.ne.s32.totalorder %s516, %s517
      %p529 = scmp.eq.s32.totalorder %s45, 1
      %p530 = por %p528, %p529
      %p532 = scmp.ne.s32.totalorder %s517, %s531
      %p533 = scmp.eq.s32.totalorder %s45, 0
      %p534 = por %p532, %p533
      %s536 = sadd.s32 %s535, 1
      %p539 = scmp.eq.s32.totalorder %s39, 1
      %p540 = scmp.ne.s32.totalorder %s535, %s537
      %p541 = scmp.eq.s32.totalorder %s39, 0
      %p542 = por %p540, %p541
      %p543 = scmp.ne.s32.totalorder %s535, %s537
      %p544 = scmp.eq.s32.totalorder %s44, 1
      %p545 = por %p543, %p544
      %p546 = scmp.ne.s32.totalorder %s537, %s538
      %p547 = scmp.eq.s32.totalorder %s44, 0
      %p548 = por %p546, %p547
      %p549 = scmp.ne.s32.totalorder %s537, %s538
      %p550 = scmp.eq.s32.totalorder %s45, 1
      %p551 = por %p549, %p550
      %p553 = scmp.ne.s32.totalorder %s538, %s552
      %p554 = scmp.eq.s32.totalorder %s45, 0
      %p555 = por %p553, %p554
      %s557 = sadd.s32 %s556, 1
      %p560 = scmp.eq.s32.totalorder %s39, 1
      %p561 = scmp.ne.s32.totalorder %s556, %s558
      %p562 = scmp.eq.s32.totalorder %s39, 0
      %p563 = por %p561, %p562
      %p564 = scmp.ne.s32.totalorder %s556, %s558
      %p565 = scmp.eq.s32.totalorder %s44, 1
      %p566 = por %p564, %p565
      %p567 = scmp.ne.s32.totalorder %s558, %s559
      %p568 = scmp.eq.s32.totalorder %s44, 0
      %p569 = por %p567, %p568
      %p570 = scmp.ne.s32.totalorder %s558, %s559
      %p571 = scmp.eq.s32.totalorder %s45, 1
      %p572 = por %p570, %p571
      %p574 = scmp.ne.s32.totalorder %s559, %s573
      %p575 = scmp.eq.s32.totalorder %s45, 0
      %p576 = por %p574, %p575
      %s578 = sadd.s32 %s577, 1
      %p581 = scmp.eq.s32.totalorder %s39, 1
      %p582 = scmp.ne.s32.totalorder %s577, %s579
      %p583 = scmp.eq.s32.totalorder %s39, 0
      %p584 = por %p582, %p583
      %p585 = scmp.ne.s32.totalorder %s577, %s579
      %p586 = scmp.eq.s32.totalorder %s44, 1
      %p587 = por %p585, %p586
      %p588 = scmp.ne.s32.totalorder %s579, %s580
      %p589 = scmp.eq.s32.totalorder %s44, 0
      %p590 = por %p588, %p589
      %p591 = scmp.ne.s32.totalorder %s579, %s580
      %p592 = scmp.eq.s32.totalorder %s45, 1
      %p593 = por %p591, %p592
      %p595 = scmp.ne.s32.totalorder %s580, %s594
      %p596 = scmp.eq.s32.totalorder %s45, 0
      %p597 = por %p595, %p596
      %s598 = ssub.s32 %s39, %s46
      %p599 = scmp.eq.s32.totalorder %s598, 0
      %s601 = sadd.s32 %s600, 1
      %s602 = scalar_select %p599, %s600, %s601
      %p605 = pneg %p599
      %p606 = scmp.eq.s32.totalorder %s39, 1
      %p607 = por %p605, %p606
      %p608 = scmp.ne.s32.totalorder %s600, %s603
      %p609 = scmp.eq.s32.totalorder %s39, 0
      %p610 = por %p608, %p609
      %p611 = scmp.ne.s32.totalorder %s600, %s603
      %p612 = scmp.eq.s32.totalorder %s44, 1
      %p613 = por %p611, %p612
      %p614 = scmp.ne.s32.totalorder %s603, %s604
      %p615 = scmp.eq.s32.totalorder %s44, 0
      %p616 = por %p614, %p615
      %p617 = scmp.ne.s32.totalorder %s603, %s604
      %p618 = scmp.eq.s32.totalorder %s45, 1
      %p619 = por %p617, %p618
      %p621 = scmp.ne.s32.totalorder %s604, %s620
      %p622 = scmp.eq.s32.totalorder %s45, 0
      %p623 = por %p621, %p622
      %s624 = ssub.s32 %s39, %s46
      %p625 = scmp.eq.s32.totalorder %s624, 0
      %s627 = sadd.s32 %s626, 1
      %s628 = scalar_select %p625, %s626, %s627
      %p631 = pneg %p625
      %p632 = scmp.eq.s32.totalorder %s39, 1
      %p633 = por %p631, %p632
      %p634 = scmp.ne.s32.totalorder %s626, %s629
      %p635 = scmp.eq.s32.totalorder %s39, 0
      %p636 = por %p634, %p635
      %p637 = scmp.ne.s32.totalorder %s626, %s629
      %p638 = scmp.eq.s32.totalorder %s44, 1
      %p639 = por %p637, %p638
      %p640 = scmp.ne.s32.totalorder %s629, %s630
      %p641 = scmp.eq.s32.totalorder %s44, 0
      %p642 = por %p640, %p641
      %p643 = scmp.ne.s32.totalorder %s629, %s630
      %p644 = scmp.eq.s32.totalorder %s45, 1
      %p645 = por %p643, %p644
      %p647 = scmp.ne.s32.totalorder %s630, %s646
      %p648 = scmp.eq.s32.totalorder %s45, 0
      %p649 = por %p647, %p648
      %p650 = scmp.le.s32.totalorder 1, %s39
      %p651 = scmp.lt.s32.totalorder %s39, 3
      %p652 = pnand %p650, %p651
      %p653 = pneg %p652
      // Predicated region
      $region9: #{clip_model_forward.1} parent=5 // pred_check
        _
      $region10: #{clip_model_forward.1} parent=5 // pred_check_branch
        %655 = sbr.rel (%p652) target = $region12
      $region11: #{clip_model_forward.1} parent=5 // pred_region
        %s656 = ssub.s32 %s39, 1
        // Predicated region
        $region13: #{clip_model_forward.1} parent=11 // pred_check
          %p657 = pneg %p86
        $region14: #{clip_model_forward.1} parent=11 // pred_check_branch
          %659 = sbr.rel (%p657) target = $region16
        $region15: #{clip_model_forward.1} parent=11 // pred_region
          _
        $region16: #{clip_model_forward.1} parent=11 // pred_fallthru
          _
        // Predicated region
        $region17: #{clip_model_forward.1} parent=11 // pred_check
          %p660 = pneg %p107
        $region18: #{clip_model_forward.1} parent=11 // pred_check_branch
          %662 = sbr.rel (%p660) target = $region20
        $region19: #{clip_model_forward.1} parent=11 // pred_region
          _
        $region20: #{clip_model_forward.1} parent=11 // pred_fallthru
          _
        // Predicated region
        $region21: #{clip_model_forward.1} parent=11 // pred_check
          %p663 = pneg %p128
        $region22: #{clip_model_forward.1} parent=11 // pred_check_branch
          %665 = sbr.rel (%p663) target = $region24
        $region23: #{clip_model_forward.1} parent=11 // pred_region
          _
        $region24: #{clip_model_forward.1} parent=11 // pred_fallthru
          _
        // Predicated region
        $region25: #{clip_model_forward.1} parent=11 // pred_check
          %p666 = pneg %p149
        $region26: #{clip_model_forward.1} parent=11 // pred_check_branch
          %668 = sbr.rel (%p666) target = $region28
        $region27: #{clip_model_forward.1} parent=11 // pred_region
          _
        $region28: #{clip_model_forward.1} parent=11 // pred_fallthru
          _
        // Predicated region
        $region29: #{clip_model_forward.1} parent=11 // pred_check
          %p669 = pneg %p170
        $region30: #{clip_model_forward.1} parent=11 // pred_check_branch
          %671 = sbr.rel (%p669) target = $region32
        $region31: #{clip_model_forward.1} parent=11 // pred_region
          _
        $region32: #{clip_model_forward.1} parent=11 // pred_fallthru
          _
        // Predicated region
        $region33: #{clip_model_forward.1} parent=11 // pred_check
          %p672 = pneg %p191
        $region34: #{clip_model_forward.1} parent=11 // pred_check_branch
          %674 = sbr.rel (%p672) target = $region36
        $region35: #{clip_model_forward.1} parent=11 // pred_region
          _
        $region36: #{clip_model_forward.1} parent=11 // pred_fallthru
          _
        // Predicated region
        $region37: #{clip_model_forward.1} parent=11 // pred_check
          %p675 = pneg %p212
        $region38: #{clip_model_forward.1} parent=11 // pred_check_branch
          %677 = sbr.rel (%p675) target = $region40
        $region39: #{clip_model_forward.1} parent=11 // pred_region
          _
        $region40: #{clip_model_forward.1} parent=11 // pred_fallthru
          _
        // Predicated region
        $region41: #{clip_model_forward.1} parent=11 // pred_check
          %p678 = pneg %p233
        $region42: #{clip_model_forward.1} parent=11 // pred_check_branch
          %680 = sbr.rel (%p678) target = $region44
        $region43: #{clip_model_forward.1} parent=11 // pred_region
          _
        $region44: #{clip_model_forward.1} parent=11 // pred_fallthru
          _
        // Predicated region
        $region45: #{clip_model_forward.1} parent=11 // pred_check
          %p681 = pneg %p254
        $region46: #{clip_model_forward.1} parent=11 // pred_check_branch
          %683 = sbr.rel (%p681) target = $region48
        $region47: #{clip_model_forward.1} parent=11 // pred_region
          _
        $region48: #{clip_model_forward.1} parent=11 // pred_fallthru
          _
        // Predicated region
        $region49: #{clip_model_forward.1} parent=11 // pred_check
          %p684 = pneg %p275
        $region50: #{clip_model_forward.1} parent=11 // pred_check_branch
          %686 = sbr.rel (%p684) target = $region52
        $region51: #{clip_model_forward.1} parent=11 // pred_region
          _
        $region52: #{clip_model_forward.1} parent=11 // pred_fallthru
          _
        // Predicated region
        $region53: #{clip_model_forward.1} parent=11 // pred_check
          %p687 = pneg %p296
        $region54: #{clip_model_forward.1} parent=11 // pred_check_branch
          %689 = sbr.rel (%p687) target = $region56
        $region55: #{clip_model_forward.1} parent=11 // pred_region
          _
        $region56: #{clip_model_forward.1} parent=11 // pred_fallthru
          _
        // Predicated region
        $region57: #{clip_model_forward.1} parent=11 // pred_check
          %p690 = pneg %p317
        $region58: #{clip_model_forward.1} parent=11 // pred_check_branch
          %692 = sbr.rel (%p690) target = $region60
        $region59: #{clip_model_forward.1} parent=11 // pred_region
          _
        $region60: #{clip_model_forward.1} parent=11 // pred_fallthru
          _
        // Predicated region
        $region61: #{clip_model_forward.1} parent=11 // pred_check
          %p693 = pneg %p338
        $region62: #{clip_model_forward.1} parent=11 // pred_check_branch
          %695 = sbr.rel (%p693) target = $region64
        $region63: #{clip_model_forward.1} parent=11 // pred_region
          _
        $region64: #{clip_model_forward.1} parent=11 // pred_fallthru
          _
        // Predicated region
        $region65: #{clip_model_forward.1} parent=11 // pred_check
          %p696 = pneg %p359
        $region66: #{clip_model_forward.1} parent=11 // pred_check_branch
          %698 = sbr.rel (%p696) target = $region68
        $region67: #{clip_model_forward.1} parent=11 // pred_region
          _
        $region68: #{clip_model_forward.1} parent=11 // pred_fallthru
          _
        // Predicated region
        $region69: #{clip_model_forward.1} parent=11 // pred_check
          %p699 = pneg %p380
        $region70: #{clip_model_forward.1} parent=11 // pred_check_branch
          %701 = sbr.rel (%p699) target = $region72
        $region71: #{clip_model_forward.1} parent=11 // pred_region
          _
        $region72: #{clip_model_forward.1} parent=11 // pred_fallthru
          _
        // Predicated region
        $region73: #{clip_model_forward.1} parent=11 // pred_check
          %p702 = pneg %p401
        $region74: #{clip_model_forward.1} parent=11 // pred_check_branch
          %704 = sbr.rel (%p702) target = $region76
        $region75: #{clip_model_forward.1} parent=11 // pred_region
          _
        $region76: #{clip_model_forward.1} parent=11 // pred_fallthru
          _
        // Predicated region
        $region77: #{clip_model_forward.1} parent=11 // pred_check
          %p705 = pneg %p422
        $region78: #{clip_model_forward.1} parent=11 // pred_check_branch
          %707 = sbr.rel (%p705) target = $region80
        $region79: #{clip_model_forward.1} parent=11 // pred_region
          _
        $region80: #{clip_model_forward.1} parent=11 // pred_fallthru
          _
        // Predicated region
        $region81: #{clip_model_forward.1} parent=11 // pred_check
          %p708 = pneg %p443
        $region82: #{clip_model_forward.1} parent=11 // pred_check_branch
          %710 = sbr.rel (%p708) target = $region84
        $region83: #{clip_model_forward.1} parent=11 // pred_region
          _
        $region84: #{clip_model_forward.1} parent=11 // pred_fallthru
          _
        // Predicated region
        $region85: #{clip_model_forward.1} parent=11 // pred_check
          %p711 = pneg %p464
        $region86: #{clip_model_forward.1} parent=11 // pred_check_branch
          %713 = sbr.rel (%p711) target = $region88
        $region87: #{clip_model_forward.1} parent=11 // pred_region
          _
        $region88: #{clip_model_forward.1} parent=11 // pred_fallthru
          _
        // Predicated region
        $region89: #{clip_model_forward.1} parent=11 // pred_check
          %p714 = pneg %p485
        $region90: #{clip_model_forward.1} parent=11 // pred_check_branch
          %716 = sbr.rel (%p714) target = $region92
        $region91: #{clip_model_forward.1} parent=11 // pred_region
          _
        $region92: #{clip_model_forward.1} parent=11 // pred_fallthru
          _
        // Predicated region
        $region93: #{clip_model_forward.1} parent=11 // pred_check
          %p717 = pneg %p506
        $region94: #{clip_model_forward.1} parent=11 // pred_check_branch
          %719 = sbr.rel (%p717) target = $region96
        $region95: #{clip_model_forward.1} parent=11 // pred_region
          _
        $region96: #{clip_model_forward.1} parent=11 // pred_fallthru
          _
        // Predicated region
        $region97: #{clip_model_forward.1} parent=11 // pred_check
          %p720 = pneg %p527
        $region98: #{clip_model_forward.1} parent=11 // pred_check_branch
          %722 = sbr.rel (%p720) target = $region100
        $region99: #{clip_model_forward.1} parent=11 // pred_region
          _
        $region100: #{clip_model_forward.1} parent=11 // pred_fallthru
          _
        // Predicated region
        $region101: #{clip_model_forward.1} parent=11 // pred_check
          %p723 = pneg %p548
        $region102: #{clip_model_forward.1} parent=11 // pred_check_branch
          %725 = sbr.rel (%p723) target = $region104
        $region103: #{clip_model_forward.1} parent=11 // pred_region
          _
        $region104: #{clip_model_forward.1} parent=11 // pred_fallthru
          _
        // Predicated region
        $region105: #{clip_model_forward.1} parent=11 // pred_check
          %p726 = pneg %p569
        $region106: #{clip_model_forward.1} parent=11 // pred_check_branch
          %728 = sbr.rel (%p726) target = $region108
        $region107: #{clip_model_forward.1} parent=11 // pred_region
          _
        $region108: #{clip_model_forward.1} parent=11 // pred_fallthru
          _
        // Predicated region
        $region109: #{clip_model_forward.1} parent=11 // pred_check
          %p729 = pneg %p590
        $region110: #{clip_model_forward.1} parent=11 // pred_check_branch
          %731 = sbr.rel (%p729) target = $region112
        $region111: #{clip_model_forward.1} parent=11 // pred_region
          _
        $region112: #{clip_model_forward.1} parent=11 // pred_fallthru
          _
      $region12: #{clip_model_forward.1} parent=5 // pred_fallthru
        _
      %p732 = scmp.lt.s32.totalorder %s39, 2
      // Predicated region
      $region113: #{clip_model_forward.1} parent=5 // pred_check
        %p733 = pneg %p732
      $region114: #{clip_model_forward.1} parent=5 // pred_check_branch
        %735 = sbr.rel (%p733) target = $region116
      $region115: #{clip_model_forward.1} parent=5 // pred_region
        // Predicated region
        $region117: #{clip_model_forward.1} parent=115 // pred_check
          %p736 = pneg %p59
        $region118: #{clip_model_forward.1} parent=115 // pred_check_branch
          %738 = sbr.rel (%p736) target = $region120
        $region119: #{clip_model_forward.1} parent=115 // pred_region
          %p739 = scmp.lt.s32.totalorder %s39, 1
          %s740 = scalar_select %p739, %s39, 1
          %s741 = smul.addr %s740, 6
          %s742 = smul.addr %s741, 8
          %s743 = scalar_lea.vmem %s0, %s742
        $region120: #{clip_model_forward.1} parent=115 // pred_fallthru
          _
      $region116: #{clip_model_forward.1} parent=5 // pred_fallthru
        _
      %p744 = scmp.le.s32.totalorder 1, %s39
      %p745 = scmp.lt.s32.totalorder %s39, 3
      %p746 = pnand %p744, %p745
      %p747 = pneg %p746
      // Predicated region
      $region121: #{clip_model_forward.1} parent=5 // pred_check
        _
      $region122: #{clip_model_forward.1} parent=5 // pred_check_branch
        %749 = sbr.rel (%p746) target = $region124
      $region123: #{clip_model_forward.1} parent=5 // pred_region
        %s750 = ssub.s32 %s39, 1
        %p751 = scmp.lt.s32.totalorder %s44, 1
        %s752 = scalar_select %p751, %s44, 1
        %s753 = smul.addr %s752, 6
        %s754 = smul.addr %s753, 8
        %s755 = scalar_lea.vmem %s0, %s754
        %p756 = pneg %p65
        %p757 = pneg %p62
        %p758 = pneg %p86
        %p759 = pneg %p83
        %p760 = pneg %p107
        %p761 = pneg %p104
        %p762 = pneg %p128
        %p763 = pneg %p125
        %p764 = pneg %p149
        %p765 = pneg %p146
        %p766 = pneg %p170
        %p767 = pneg %p167
        %p768 = pneg %p191
        %p769 = pneg %p188
        %p770 = pneg %p212
        %p771 = pneg %p209
        %p772 = pneg %p233
        %p773 = pneg %p230
        %p774 = pneg %p254
        %p775 = pneg %p251
        %p776 = pneg %p275
        %p777 = pneg %p272
        %p778 = pneg %p296
        %p779 = pneg %p293
        %p780 = pneg %p317
        %p781 = pneg %p314
        %p782 = pneg %p338
        %p783 = pneg %p335
        %p784 = pneg %p359
        %p785 = pneg %p356
        %p786 = pneg %p380
        %p787 = pneg %p377
        %p788 = pneg %p401
        %p789 = pneg %p398
        %p790 = pneg %p422
        %p791 = pneg %p419
        %p792 = pneg %p443
        %p793 = pneg %p440
        %p794 = pneg %p464
        %p795 = pneg %p461
        %p796 = pneg %p485
        %p797 = pneg %p482
        %p798 = pneg %p506
        %p799 = pneg %p503
        %p800 = pneg %p527
        %p801 = pneg %p524
        %p802 = pneg %p548
        %p803 = pneg %p545
        %p804 = pneg %p569
        %p805 = pneg %p566
        %p806 = pneg %p590
        %p807 = pneg %p587
        %p808 = pneg %p616
        %p809 = pneg %p613
        %s810 = sand.u32 %s603, 1
        %s811 = scalar_lea.sflag [#allocation4], %s810
        %s812 = sand.u32 %s603, 1
        %s813 = scalar_lea.vmem [#allocation3], %s812
        %p814 = pneg %p642
        %p815 = pneg %p639
        %p816 = scmp.lt.s32.totalorder %s44, 1
        %s817 = scalar_select %p816, %s44, 1
        %s818 = scalar_lea.vmem %s27, %s817
        %p819 = scmp.lt.s32.totalorder %s44, 1
        %s820 = scalar_select %p819, %s44, 1
        %s821 = smul.addr %s820, 6
        %s822 = smul.addr %s821, 8
        %s823 = scalar_lea.vmem %s0, %s822
        %p824 = scmp.lt.s32.totalorder %s44, 1
        %s825 = scalar_select %p824, %s44, 1
        %s826 = scalar_lea.vmem %s27, %s825
        %v827 = vld [vmem:[%s823] sm:$0xff]
        %v828 = vld [vmem:[%s823 + $0x8] sm:$0xff]
        %v829 = vld [vmem:[%s823 + $0x10] sm:$0xff]
        %v830 = vld [vmem:[%s823 + $0x18] sm:$0xff]
        %v831 = vld [vmem:[%s823 + $0x20] sm:$0x1]
        %v832 = vld [vmem:[%s823 + $0x28] sm:$0x1]
        %v833 = vld [vmem:[%s1] sm:$0xff]
        %v834 = vld [vmem:[%s1 + $0x8] sm:$0xff]
        %v835 = vld [vmem:[%s1 + $0x10] sm:$0xff]
        %v836 = vld [vmem:[%s1 + $0x18] sm:$0xff]
        %v837 = vld [vmem:[%s1 + $0x20] sm:$0xff]
        %v838 = vld [vmem:[%s1 + $0x28] sm:$0xff]
        %v839 = vld [vmem:[%s1 + $0x30] sm:$0xff]
        %v840 = vld [vmem:[%s1 + $0x38] sm:$0xff]
        %v841 = vld [vmem:[%s1 + $0x40] sm:$0xff]
        %v842 = vld [vmem:[%s1 + $0x48] sm:$0xff]
        %v843 = vld [vmem:[%s1 + $0x50] sm:$0xff]
        %v844 = vld [vmem:[%s1 + $0x58] sm:$0xff]
        %v845 = vld [vmem:[%s1 + $0x60] sm:$0xff]
        %v846 = vld [vmem:[%s1 + $0x68] sm:$0xff]
        %v847 = vld [vmem:[%s1 + $0x70] sm:$0xff]
        %v848 = vld [vmem:[%s1 + $0x78] sm:$0xff]
        %v849 = vld [vmem:[%s1 + $0x80] sm:$0xff]
        %v850 = vld [vmem:[%s1 + $0x88] sm:$0xff]
        %v851 = vld [vmem:[%s1 + $0x90] sm:$0xff]
        %v852 = vld [vmem:[%s1 + $0x98] sm:$0xff]
        %v853 = vld [vmem:[%s1 + $0xa0] sm:$0xff]
        %v854 = vld [vmem:[%s1 + $0xa8] sm:$0xff]
        %v855 = vld [vmem:[%s1 + $0xb0] sm:$0xff]
        %v856 = vld [vmem:[%s1 + $0xb8] sm:$0xff]
        %v857 = vld [vmem:[%s2] sm:$0xff]
        %v858 = vld [vmem:[%s2 + $0x8] sm:$0xff]
        %v859 = vld [vmem:[%s2 + $0x10] sm:$0x1]
        %vm860 = vcmask 523264
        %v862 = vsel %vm860, %v828, 0
        %v865 = vsel %vm860, %v830, 0
        %v868 = vsel %vm860, %v832, 0
        %870 = vmatpush.msra.mxu0 %v848
        %871 = vmatpush.msra.mxu0 %v847
        %872 = vmatpush.msra.mxu0 %v846
        %873 = vmatpush.msra.mxu0 %v845
        %874 = vmatpush.msra.mxu0 %v844
        %875 = vmatpush.msra.mxu0 %v843
        %876 = vmatpush.msra.mxu0 %v842
        %877 = vmatpush.msra.mxu0 %v841
        %878 = vmatpush.msra.mxu0 %v840
        %879 = vmatpush.msra.mxu0 %v839
        %880 = vmatpush.msra.mxu0 %v838
        %881 = vmatpush.msra.mxu0 %v837
        %882 = vmatpush.msra.mxu0 %v836
        %883 = vmatpush.msra.mxu0 %v835
        %884 = vmatpush.msra.mxu0 %v834
        %885 = vmatpush.msra.mxu0 %v833
        %886 = vmatmul.f32.gmra.mxu0 %v827
        %v887 = vpop.f32.mrf.mxu0
        %v888 = vadd.f32 %v857, %v887
        %889 = vmatmul.f32.gmra.mxu0 %v829
        %v890 = vpop.f32.mrf.mxu0
        %v891 = vadd.f32 %v858, %v890
        %892 = vmatmul.f32.gmra.mxu0 %v831
        %v893 = vpop.f32.mrf.mxu0
        %v894 = vadd.f32 %v859, %v893
        %895 = vdwg.mxu0
        %896 = vmatpush.msra.mxu0 0.0
        %897 = vmatpush.msra.mxu0 0.0
        %898 = vmatpush.msra.mxu0 0.0
        %899 = vmatpush.msra.mxu0 0.0
        %900 = vmatpush.msra.mxu0 0.0
        %901 = vmatpush.msra.mxu0 0.0
        %902 = vmatpush.msra.mxu0 0.0
        %903 = vmatpush.msra.mxu0 0.0
        %904 = vmatpush.msra.mxu0 %v856
        %905 = vmatpush.msra.mxu0 %v855
        %906 = vmatpush.msra.mxu0 %v854
        %907 = vmatpush.msra.mxu0 %v853
        %908 = vmatpush.msra.mxu0 %v852
        %909 = vmatpush.msra.mxu0 %v851
        %910 = vmatpush.msra.mxu0 %v850
        %911 = vmatpush.msra.mxu0 %v849
        %912 = vmatmul.f32.gmra.mxu0 %v862
        %v913 = vpop.f32.mrf.mxu0
        %v914 = vadd.f32 %v888, %v913
        %915 = vmatmul.f32.gmra.mxu0 %v865
        %v916 = vpop.f32.mrf.mxu0
        %v917 = vadd.f32 %v891, %v916
        %918 = vmatmul.f32.gmra.mxu0 %v868
        %v919 = vpop.f32.mrf.mxu0
        %v920 = vadd.f32 %v894, %v919
        %921 = vdwg.mxu0
        %v922 = vld [vmem:[%s3] sm:$0x1]
        %v923 = vld [vmem:[%s4] sm:$0x1]
        %vm924 = vcmask 261120
        %v925 = vsel %vm924, %v914, 0.0
        %926 = vadd.xlane.f32.xlu0 %v925
        %v927 = vpop.xlane.xlu0 %926
        %v928 = vsel %vm924, %v917, 0.0
        %929 = vadd.xlane.f32.xlu0 %v928
        %v930 = vpop.xlane.xlu0 %929
        %vm931 = vcmask 253952
        %v932 = vsel %vm931, %v920, 0.0
        %933 = vadd.xlane.f32.xlu0 %v932
        %v934 = vpop.xlane.xlu0 %933
        %v935 = vrcp.pop 32.0
        %v936 = vmul.f32 32.0, %v935
        %v937 = vsub.f32 1.0, %v936
        %v938 = vmul.f32 %v935, %v937
        %v939 = vadd.f32 %v935, %v938
        %vm940 = vweird.f32 %v935
        %v941 = vsel %vm940, %v935, %v939
        %v942 = vmul.f32 %v927, %v941
        %v943 = vmul.f32 %v930, %v941
        %v944 = vmul.f32 %v934, %v941
        %v945 = vsub.f32 %v914, %v942
        %v946 = vsub.f32 %v917, %v943
        %v947 = vsub.f32 %v920, %v944
        %v948 = vmul.f32 %v945, %v945
        %v949 = vmul.f32 %v946, %v946
        %v950 = vmul.f32 %v947, %v947
        %v951 = vsel %vm924, %v948, 0.0
        %952 = vadd.xlane.f32.xlu0 %v951
        %v953 = vpop.xlane.xlu0 %952
        %v954 = vsel %vm924, %v949, 0.0
        %955 = vadd.xlane.f32.xlu0 %v954
        %v956 = vpop.xlane.xlu0 %955
        %v957 = vsel %vm931, %v950, 0.0
        %958 = vadd.xlane.f32.xlu0 %v957
        %v959 = vpop.xlane.xlu0 %958
        %v960 = vmul.f32 %v953, %v941
        %v961 = vmul.f32 %v956, %v941
        %v962 = vmul.f32 %v959, %v941
        %v963 = vadd.f32 %v960, 1e-05
        %v964 = vadd.f32 %v961, 1e-05
        %v965 = vadd.f32 %v962, 1e-05
        %v966 = vrsqrt.pop %v963
        %v967 = vmul.f32 %v966, %v963
        %v968 = vmul.f32 %v967, %v966
        %v969 = vmul.f32 0.5, %v968
        %v970 = vsub.f32 1.5, %v969
        %v971 = vmul.f32 %v966, %v970
        %vm972 = vweird.f32 %v963
        %vm973 = vweird.f32 %v966
        %vm974 = vmor %vm972, %vm973
        %v975 = vsel %vm974, %v966, %v971
        %v976 = vrsqrt.pop %v964
        %v977 = vmul.f32 %v976, %v964
        %v978 = vmul.f32 %v977, %v976
        %v979 = vmul.f32 0.5, %v978
        %v980 = vsub.f32 1.5, %v979
        %v981 = vmul.f32 %v976, %v980
        %vm982 = vweird.f32 %v964
        %vm983 = vweird.f32 %v976
        %vm984 = vmor %vm982, %vm983
        %v985 = vsel %vm984, %v976, %v981
        %v986 = vrsqrt.pop %v965
        %v987 = vmul.f32 %v986, %v965
        %v988 = vmul.f32 %v987, %v986
        %v989 = vmul.f32 0.5, %v988
        %v990 = vsub.f32 1.5, %v989
        %v991 = vmul.f32 %v986, %v990
        %vm992 = vweird.f32 %v965
        %vm993 = vweird.f32 %v986
        %vm994 = vmor %vm992, %vm993
        %v995 = vsel %vm994, %v986, %v991
        %v996 = vmul.f32 %v945, %v975
        %v997 = vmul.f32 %v946, %v985
        %v998 = vmul.f32 %v947, %v995
        %v1000 = vperm.slane %v922, 0
        %v1002 = vmul.f32 %v996, %v1000
        %v1003 = vmul.f32 %v997, %v1000
        %v1004 = vmul.f32 %v998, %v1000
        %v1006 = vperm.slane %v923, 0
        %v1008 = vadd.f32 %v1002, %v1006
        %v1009 = vadd.f32 %v1003, %v1006
        %v1010 = vadd.f32 %v1004, %v1006
        %v1011 = vld [vmem:[%s10] sm:$0x1]
        %v1012 = vld [vmem:[%s11] sm:$0x1]
        %v1013 = vsel %vm924, %v1008, 0.0
        %1014 = vadd.xlane.f32.xlu0 %v1013
        %v1015 = vpop.xlane.xlu0 %1014
        %v1016 = vsel %vm924, %v1009, 0.0
        %1017 = vadd.xlane.f32.xlu0 %v1016
        %v1018 = vpop.xlane.xlu0 %1017
        %v1019 = vsel %vm931, %v1010, 0.0
        %1020 = vadd.xlane.f32.xlu0 %v1019
        %v1021 = vpop.xlane.xlu0 %1020
        %v1022 = vmul.f32 %v1015, %v941
        %v1023 = vmul.f32 %v1018, %v941
        %v1024 = vmul.f32 %v1021, %v941
        %v1025 = vsub.f32 %v1008, %v1022
        %v1026 = vsub.f32 %v1009, %v1023
        %v1027 = vsub.f32 %v1010, %v1024
        %v1028 = vmul.f32 %v1025, %v1025
        %v1029 = vmul.f32 %v1026, %v1026
        %v1030 = vmul.f32 %v1027, %v1027
        %v1031 = vsel %vm924, %v1028, 0.0
        %1032 = vadd.xlane.f32.xlu0 %v1031
        %v1033 = vpop.xlane.xlu0 %1032
        %v1034 = vsel %vm924, %v1029, 0.0
        %1035 = vadd.xlane.f32.xlu0 %v1034
        %v1036 = vpop.xlane.xlu0 %1035
        %v1037 = vsel %vm931, %v1030, 0.0
        %1038 = vadd.xlane.f32.xlu0 %v1037
        %v1039 = vpop.xlane.xlu0 %1038
        %v1040 = vmul.f32 %v1033, %v941
        %v1041 = vmul.f32 %v1036, %v941
        %v1042 = vmul.f32 %v1039, %v941
        %v1043 = vadd.f32 %v1040, 1e-05
        %v1044 = vadd.f32 %v1041, 1e-05
        %v1045 = vadd.f32 %v1042, 1e-05
        %v1046 = vrsqrt.pop %v1043
        %v1047 = vmul.f32 %v1046, %v1043
        %v1048 = vmul.f32 %v1047, %v1046
        %v1049 = vmul.f32 0.5, %v1048
        %v1050 = vsub.f32 1.5, %v1049
        %v1051 = vmul.f32 %v1046, %v1050
        %vm1052 = vweird.f32 %v1043
        %vm1053 = vweird.f32 %v1046
        %vm1054 = vmor %vm1052, %vm1053
        %v1055 = vsel %vm1054, %v1046, %v1051
        %v1056 = vrsqrt.pop %v1044
        %v1057 = vmul.f32 %v1056, %v1044
        %v1058 = vmul.f32 %v1057, %v1056
        %v1059 = vmul.f32 0.5, %v1058
        %v1060 = vsub.f32 1.5, %v1059
        %v1061 = vmul.f32 %v1056, %v1060
        %vm1062 = vweird.f32 %v1044
        %vm1063 = vweird.f32 %v1056
        %vm1064 = vmor %vm1062, %vm1063
        %v1065 = vsel %vm1064, %v1056, %v1061
        %v1066 = vrsqrt.pop %v1045
        %v1067 = vmul.f32 %v1066, %v1045
        %v1068 = vmul.f32 %v1067, %v1066
        %v1069 = vmul.f32 0.5, %v1068
        %v1070 = vsub.f32 1.5, %v1069
        %v1071 = vmul.f32 %v1066, %v1070
        %vm1072 = vweird.f32 %v1045
        %vm1073 = vweird.f32 %v1066
        %vm1074 = vmor %vm1072, %vm1073
        %v1075 = vsel %vm1074, %v1066, %v1071
        %v1076 = vmul.f32 %v1025, %v1055
        %v1077 = vmul.f32 %v1026, %v1065
        %v1078 = vmul.f32 %v1027, %v1075
        %v1080 = vperm.slane %v1011, 0
        %v1082 = vmul.f32 %v1076, %v1080
        %v1083 = vmul.f32 %v1077, %v1080
        %v1084 = vmul.f32 %v1078, %v1080
        %v1086 = vperm.slane %v1012, 0
        %v1088 = vadd.f32 %v1082, %v1086
        %v1089 = vadd.f32 %v1083, %v1086
        %v1090 = vadd.f32 %v1084, %v1086
        %v1091 = vld [vmem:[%s12] sm:$0xff]
        %v1092 = vld [vmem:[%s12 + $0x8] sm:$0xff]
        %v1093 = vld [vmem:[%s12 + $0x10] sm:$0xff]
        %v1094 = vld [vmem:[%s12 + $0x18] sm:$0xff]
        %v1095 = vld [vmem:[%s15] sm:$0x1]
        %v1097 = vperm.slane %v1095, 0
        %v1100 = vsel %vm924, %v1088, 0
        %v1103 = vsel %vm924, %v1089, 0
        %v1106 = vsel %vm924, %v1090, 0
        %1108 = vmatpush.msra.mxu0 0.0
        %1109 = vmatpush.msra.mxu0 0.0
        %1110 = vmatpush.msra.mxu0 0.0
        %1111 = vmatpush.msra.mxu0 0.0
        %1112 = vmatpush.msra.mxu0 0.0
        %1113 = vmatpush.msra.mxu0 0.0
        %1114 = vmatpush.msra.mxu0 0.0
        %1115 = vmatpush.msra.mxu0 0.0
        %1116 = vmatpush.msra.mxu0 0.0
        %1117 = vmatpush.msra.mxu0 0.0
        %1118 = vmatpush.msra.mxu0 0.0
        %1119 = vmatpush.msra.mxu0 0.0
        %1120 = vmatpush.msra.mxu0 %v1094
        %1121 = vmatpush.msra.mxu0 %v1093
        %1122 = vmatpush.msra.mxu0 %v1092
        %1123 = vmatpush.msra.mxu0 %v1091
        %1124 = vmatmul.f32.gmra.mxu0 %v1100
        %v1125 = vpop.f32.mrf.mxu0
        %v1126 = vadd.f32 %v1097, %v1125
        %1127 = vmatmul.f32.gmra.mxu0 %v1103
        %v1128 = vpop.f32.mrf.mxu0
        %v1129 = vadd.f32 %v1097, %v1128
        %1130 = vmatmul.f32.gmra.mxu0 %v1106
        %v1131 = vpop.f32.mrf.mxu0
        %v1132 = vadd.f32 %v1097, %v1131
        %1133 = vdwg.mxu0
        %v1134 = vld [vmem:[%s13] sm:$0xff]
        %v1135 = vld [vmem:[%s13 + $0x8] sm:$0xff]
        %v1136 = vld [vmem:[%s13 + $0x10] sm:$0xff]
        %v1137 = vld [vmem:[%s13 + $0x18] sm:$0xff]
        %v1138 = vld [vmem:[%s16] sm:$0x1]
        %v1140 = vperm.slane %v1138, 0
        %1142 = vmatpush.msra.mxu0 0.0
        %1143 = vmatpush.msra.mxu0 0.0
        %1144 = vmatpush.msra.mxu0 0.0
        %1145 = vmatpush.msra.mxu0 0.0
        %1146 = vmatpush.msra.mxu0 0.0
        %1147 = vmatpush.msra.mxu0 0.0
        %1148 = vmatpush.msra.mxu0 0.0
        %1149 = vmatpush.msra.mxu0 0.0
        %1150 = vmatpush.msra.mxu0 0.0
        %1151 = vmatpush.msra.mxu0 0.0
        %1152 = vmatpush.msra.mxu0 0.0
        %1153 = vmatpush.msra.mxu0 0.0
        %1154 = vmatpush.msra.mxu0 %v1137
        %1155 = vmatpush.msra.mxu0 %v1136
        %1156 = vmatpush.msra.mxu0 %v1135
        %1157 = vmatpush.msra.mxu0 %v1134
        %1158 = vmatmul.f32.gmra.mxu0 %v1100
        %v1159 = vpop.f32.mrf.mxu0
        %v1160 = vadd.f32 %v1140, %v1159
        %1161 = vmatmul.f32.gmra.mxu0 %v1103
        %v1162 = vpop.f32.mrf.mxu0
        %v1163 = vadd.f32 %v1140, %v1162
        %1164 = vmatmul.f32.gmra.mxu0 %v1106
        %v1165 = vpop.f32.mrf.mxu0
        %v1166 = vadd.f32 %v1140, %v1165
        %1167 = vdwg.mxu0
        %v1168 = vld [vmem:[%s14] sm:$0xff]
        %v1169 = vld [vmem:[%s14 + $0x8] sm:$0xff]
        %v1170 = vld [vmem:[%s14 + $0x10] sm:$0xff]
        %v1171 = vld [vmem:[%s14 + $0x18] sm:$0xff]
        %v1172 = vld [vmem:[%s17] sm:$0x1]
        %v1174 = vperm.slane %v1172, 0
        %1176 = vmatpush.msra.mxu0 0.0
        %1177 = vmatpush.msra.mxu0 0.0
        %1178 = vmatpush.msra.mxu0 0.0
        %1179 = vmatpush.msra.mxu0 0.0
        %1180 = vmatpush.msra.mxu0 0.0
        %1181 = vmatpush.msra.mxu0 0.0
        %1182 = vmatpush.msra.mxu0 0.0
        %1183 = vmatpush.msra.mxu0 0.0
        %1184 = vmatpush.msra.mxu0 0.0
        %1185 = vmatpush.msra.mxu0 0.0
        %1186 = vmatpush.msra.mxu0 0.0
        %1187 = vmatpush.msra.mxu0 0.0
        %1188 = vmatpush.msra.mxu0 %v1171
        %1189 = vmatpush.msra.mxu0 %v1170
        %1190 = vmatpush.msra.mxu0 %v1169
        %1191 = vmatpush.msra.mxu0 %v1168
        %1192 = vmatmul.f32.gmra.mxu0 %v1100
        %v1193 = vpop.f32.mrf.mxu0
        %v1194 = vadd.f32 %v1174, %v1193
        %1195 = vmatmul.f32.gmra.mxu0 %v1103
        %v1196 = vpop.f32.mrf.mxu0
        %v1197 = vadd.f32 %v1174, %v1196
        %1198 = vmatmul.f32.gmra.mxu0 %v1106
        %v1199 = vpop.f32.mrf.mxu0
        %v1200 = vadd.f32 %v1174, %v1199
        %1201 = vdwg.mxu0
        %vm1202 = vcmask 64512
        %v1204 = vsel %vm1202, %v1126, 0
        %v1207 = vsel %vm1202, %v1129, 0
        %v1210 = vsel %vm1202, %v1132, 0
        %v1213 = vsel %vm1202, %v1160, 0
        %v1216 = vsel %vm1202, %v1163, 0
        %v1219 = vsel %vm1202, %v1166, 0
        %1221 = vmatpush.xpose.msra.mxu0 0.0
        %1222 = vmatpush.xpose.msra.mxu0 0.0
        %1223 = vmatpush.xpose.msra.mxu0 0.0
        %1224 = vmatpush.xpose.msra.mxu0 0.0
        %1225 = vmatpush.xpose.msra.mxu0 0.0
        %1226 = vmatpush.xpose.msra.mxu0 0.0
        %1227 = vmatpush.xpose.msra.mxu0 0.0
        %1228 = vmatpush.xpose.msra.mxu0 0.0
        %1229 = vmatpush.xpose.msra.mxu0 0.0
        %1230 = vmatpush.xpose.msra.mxu0 0.0
        %1231 = vmatpush.xpose.msra.mxu0 0.0
        %1232 = vmatpush.xpose.msra.mxu0 0.0
        %1233 = vmatpush.xpose.msra.mxu0 0.0
        %1234 = vmatpush.xpose.msra.mxu0 %v1219
        %1235 = vmatpush.xpose.msra.mxu0 %v1216
        %1236 = vmatpush.xpose.msra.mxu0 %v1213
        %1237 = vmatmul.f32.gmra.mxu0 %v1204
        %v1238 = vpop.f32.mrf.mxu0
        %v1239 = vadd.f32 0.0, %v1238
        %1240 = vmatmul.f32.gmra.mxu0 %v1207
        %v1241 = vpop.f32.mrf.mxu0
        %v1242 = vadd.f32 0.0, %v1241
        %1243 = vmatmul.f32.gmra.mxu0 %v1210
        %v1244 = vpop.f32.mrf.mxu0
        %v1245 = vadd.f32 0.0, %v1244
        %1246 = vdwg.mxu0
        %v1247 = vmul.f32 %v1239, 0.35355338
        %v1248 = vmul.f32 %v1242, 0.35355338
        %v1249 = vmul.f32 %v1245, 0.35355338
        %vm1250 = vcmask 138240
        %v1251 = vsel %vm1250, %v1247, -inf
        %1252 = vmax.xlane.f32.xlu0 %v1251
        %v1253 = vpop.xlane.xlu0 %1252
        %v1254 = vsel %vm1250, %v1248, -inf
        %1255 = vmax.xlane.f32.xlu0 %v1254
        %v1256 = vpop.xlane.xlu0 %1255
        %vm1257 = vcmask 131072
        %v1258 = vsel %vm1257, %v1249, -inf
        %1259 = vmax.xlane.f32.xlu0 %v1258
        %v1260 = vpop.xlane.xlu0 %1259
        %v1261 = vsub.f32 %v1247, %v1253
        %v1262 = vsub.f32 %v1248, %v1256
        %v1263 = vsub.f32 %v1249, %v1260
        %v1264 = vmul.f32 %v1261, 1.442695
        %v1265 = vpow.pop %v1264
        %v1266 = vmul.f32 %v1262, 1.442695
        %v1267 = vpow.pop %v1266
        %v1268 = vmul.f32 %v1263, 1.442695
        %v1269 = vpow.pop %v1268
        %v1270 = vsel %vm1250, %v1265, 0.0
        %1271 = vadd.xlane.f32.xlu0 %v1270
        %v1272 = vpop.xlane.xlu0 %1271
        %v1273 = vsel %vm1250, %v1267, 0.0
        %1274 = vadd.xlane.f32.xlu0 %v1273
        %v1275 = vpop.xlane.xlu0 %1274
        %v1276 = vsel %vm1257, %v1269, 0.0
        %1277 = vadd.xlane.f32.xlu0 %v1276
        %v1278 = vpop.xlane.xlu0 %1277
        %v1279 = vrcp.pop %v1272
        %v1280 = vrcp.pop %v1275
        %v1281 = vrcp.pop %v1278
        %v1282 = vmul.f32 %v1265, %v1279
        %v1283 = vmul.f32 %v1267, %v1280
        %v1284 = vmul.f32 %v1269, %v1281
        %v1286 = vsel %vm1250, %v1282, 0
        %v1289 = vsel %vm1250, %v1283, 0
        %v1292 = vsel %vm1250, %v1284, 0
        %vm1294 = vcmask 1040384
        %v1296 = vsel %vm1294, %v1200, 0
        %1298 = vmatpush.msra.mxu0 0.0
        %1299 = vmatpush.msra.mxu0 0.0
        %1300 = vmatpush.msra.mxu0 0.0
        %1301 = vmatpush.msra.mxu0 0.0
        %1302 = vmatpush.msra.mxu0 0.0
        %1303 = vmatpush.msra.mxu0 0.0
        %1304 = vmatpush.msra.mxu0 0.0
        %1305 = vmatpush.msra.mxu0 0.0
        %1306 = vmatpush.msra.mxu0 0.0
        %1307 = vmatpush.msra.mxu0 0.0
        %1308 = vmatpush.msra.mxu0 0.0
        %1309 = vmatpush.msra.mxu0 0.0
        %1310 = vmatpush.msra.mxu0 0.0
        %1311 = vmatpush.msra.mxu0 %v1296
        %1312 = vmatpush.msra.mxu0 %v1197
        %1313 = vmatpush.msra.mxu0 %v1194
        %1314 = vmatmul.f32.gmra.mxu0 %v1286
        %v1315 = vpop.f32.mrf.mxu0
        %v1316 = vadd.f32 0.0, %v1315
        %1317 = vmatmul.f32.gmra.mxu0 %v1289
        %v1318 = vpop.f32.mrf.mxu0
        %v1319 = vadd.f32 0.0, %v1318
        %1320 = vmatmul.f32.gmra.mxu0 %v1292
        %v1321 = vpop.f32.mrf.mxu0
        %v1322 = vadd.f32 0.0, %v1321
        %1323 = vdwg.mxu0
        %v1324 = vld [vmem:[%s18] sm:$0xff]
        %s1325 = scalar_lea.vmem %s12, 32
        %v1326 = vld [vmem:[%s1325] sm:$0xff]
        %v1327 = vld [vmem:[%s1325 + $0x8] sm:$0xff]
        %v1328 = vld [vmem:[%s1325 + $0x10] sm:$0xff]
        %v1329 = vld [vmem:[%s1325 + $0x18] sm:$0xff]
        %s1330 = scalar_lea.vmem %s15, 1
        %v1331 = vld [vmem:[%s1330] sm:$0x1]
        %v1333 = vperm.slane %v1331, 0
        %1335 = vmatpush.msra.mxu0 0.0
        %1336 = vmatpush.msra.mxu0 0.0
        %1337 = vmatpush.msra.mxu0 0.0
        %1338 = vmatpush.msra.mxu0 0.0
        %1339 = vmatpush.msra.mxu0 0.0
        %1340 = vmatpush.msra.mxu0 0.0
        %1341 = vmatpush.msra.mxu0 0.0
        %1342 = vmatpush.msra.mxu0 0.0
        %1343 = vmatpush.msra.mxu0 0.0
        %1344 = vmatpush.msra.mxu0 0.0
        %1345 = vmatpush.msra.mxu0 0.0
        %1346 = vmatpush.msra.mxu0 0.0
        %1347 = vmatpush.msra.mxu0 %v1329
        %1348 = vmatpush.msra.mxu0 %v1328
        %1349 = vmatpush.msra.mxu0 %v1327
        %1350 = vmatpush.msra.mxu0 %v1326
        %1351 = vmatmul.f32.gmra.mxu0 %v1100
        %v1352 = vpop.f32.mrf.mxu0
        %v1353 = vadd.f32 %v1333, %v1352
        %1354 = vmatmul.f32.gmra.mxu0 %v1103
        %v1355 = vpop.f32.mrf.mxu0
        %v1356 = vadd.f32 %v1333, %v1355
        %1357 = vmatmul.f32.gmra.mxu0 %v1106
        %v1358 = vpop.f32.mrf.mxu0
        %v1359 = vadd.f32 %v1333, %v1358
        %1360 = vdwg.mxu0
        %s1361 = scalar_lea.vmem %s13, 32
        %v1362 = vld [vmem:[%s1361] sm:$0xff]
        %v1363 = vld [vmem:[%s1361 + $0x8] sm:$0xff]
        %v1364 = vld [vmem:[%s1361 + $0x10] sm:$0xff]
        %v1365 = vld [vmem:[%s1361 + $0x18] sm:$0xff]
        %s1366 = scalar_lea.vmem %s16, 1
        %v1367 = vld [vmem:[%s1366] sm:$0x1]
        %v1369 = vperm.slane %v1367, 0
        %1371 = vmatpush.msra.mxu0 0.0
        %1372 = vmatpush.msra.mxu0 0.0
        %1373 = vmatpush.msra.mxu0 0.0
        %1374 = vmatpush.msra.mxu0 0.0
        %1375 = vmatpush.msra.mxu0 0.0
        %1376 = vmatpush.msra.mxu0 0.0
        %1377 = vmatpush.msra.mxu0 0.0
        %1378 = vmatpush.msra.mxu0 0.0
        %1379 = vmatpush.msra.mxu0 0.0
        %1380 = vmatpush.msra.mxu0 0.0
        %1381 = vmatpush.msra.mxu0 0.0
        %1382 = vmatpush.msra.mxu0 0.0
        %1383 = vmatpush.msra.mxu0 %v1365
        %1384 = vmatpush.msra.mxu0 %v1364
        %1385 = vmatpush.msra.mxu0 %v1363
        %1386 = vmatpush.msra.mxu0 %v1362
        %1387 = vmatmul.f32.gmra.mxu0 %v1100
        %v1388 = vpop.f32.mrf.mxu0
        %v1389 = vadd.f32 %v1369, %v1388
        %1390 = vmatmul.f32.gmra.mxu0 %v1103
        %v1391 = vpop.f32.mrf.mxu0
        %v1392 = vadd.f32 %v1369, %v1391
        %1393 = vmatmul.f32.gmra.mxu0 %v1106
        %v1394 = vpop.f32.mrf.mxu0
        %v1395 = vadd.f32 %v1369, %v1394
        %1396 = vdwg.mxu0
        %s1397 = scalar_lea.vmem %s14, 32
        %v1398 = vld [vmem:[%s1397] sm:$0xff]
        %v1399 = vld [vmem:[%s1397 + $0x8] sm:$0xff]
        %v1400 = vld [vmem:[%s1397 + $0x10] sm:$0xff]
        %v1401 = vld [vmem:[%s1397 + $0x18] sm:$0xff]
        %s1402 = scalar_lea.vmem %s17, 1
        %v1403 = vld [vmem:[%s1402] sm:$0x1]
        %v1405 = vperm.slane %v1403, 0
        %1407 = vmatpush.msra.mxu0 0.0
        %1408 = vmatpush.msra.mxu0 0.0
        %1409 = vmatpush.msra.mxu0 0.0
        %1410 = vmatpush.msra.mxu0 0.0
        %1411 = vmatpush.msra.mxu0 0.0
        %1412 = vmatpush.msra.mxu0 0.0
        %1413 = vmatpush.msra.mxu0 0.0
        %1414 = vmatpush.msra.mxu0 0.0
        %1415 = vmatpush.msra.mxu0 0.0
        %1416 = vmatpush.msra.mxu0 0.0
        %1417 = vmatpush.msra.mxu0 0.0
        %1418 = vmatpush.msra.mxu0 0.0
        %1419 = vmatpush.msra.mxu0 %v1401
        %1420 = vmatpush.msra.mxu0 %v1400
        %1421 = vmatpush.msra.mxu0 %v1399
        %1422 = vmatpush.msra.mxu0 %v1398
        %1423 = vmatmul.f32.gmra.mxu0 %v1100
        %v1424 = vpop.f32.mrf.mxu0
        %v1425 = vadd.f32 %v1405, %v1424
        %1426 = vmatmul.f32.gmra.mxu0 %v1103
        %v1427 = vpop.f32.mrf.mxu0
        %v1428 = vadd.f32 %v1405, %v1427
        %1429 = vmatmul.f32.gmra.mxu0 %v1106
        %v1430 = vpop.f32.mrf.mxu0
        %v1431 = vadd.f32 %v1405, %v1430
        %1432 = vdwg.mxu0
        %v1434 = vsel %vm1202, %v1353, 0
        %v1437 = vsel %vm1202, %v1356, 0
        %v1440 = vsel %vm1202, %v1359, 0
        %v1443 = vsel %vm1202, %v1389, 0
        %v1446 = vsel %vm1202, %v1392, 0
        %v1449 = vsel %vm1202, %v1395, 0
        %1451 = vmatpush.xpose.msra.mxu0 0.0
        %1452 = vmatpush.xpose.msra.mxu0 0.0
        %1453 = vmatpush.xpose.msra.mxu0 0.0
        %1454 = vmatpush.xpose.msra.mxu0 0.0
        %1455 = vmatpush.xpose.msra.mxu0 0.0
        %1456 = vmatpush.xpose.msra.mxu0 0.0
        %1457 = vmatpush.xpose.msra.mxu0 0.0
        %1458 = vmatpush.xpose.msra.mxu0 0.0
        %1459 = vmatpush.xpose.msra.mxu0 0.0
        %1460 = vmatpush.xpose.msra.mxu0 0.0
        %1461 = vmatpush.xpose.msra.mxu0 0.0
        %1462 = vmatpush.xpose.msra.mxu0 0.0
        %1463 = vmatpush.xpose.msra.mxu0 0.0
        %1464 = vmatpush.xpose.msra.mxu0 %v1449
        %1465 = vmatpush.xpose.msra.mxu0 %v1446
        %1466 = vmatpush.xpose.msra.mxu0 %v1443
        %1467 = vmatmul.f32.gmra.mxu0 %v1434
        %v1468 = vpop.f32.mrf.mxu0
        %v1469 = vadd.f32 0.0, %v1468
        %1470 = vmatmul.f32.gmra.mxu0 %v1437
        %v1471 = vpop.f32.mrf.mxu0
        %v1472 = vadd.f32 0.0, %v1471
        %1473 = vmatmul.f32.gmra.mxu0 %v1440
        %v1474 = vpop.f32.mrf.mxu0
        %v1475 = vadd.f32 0.0, %v1474
        %1476 = vdwg.mxu0
        %v1477 = vmul.f32 %v1469, 0.35355338
        %v1478 = vmul.f32 %v1472, 0.35355338
        %v1479 = vmul.f32 %v1475, 0.35355338
        %v1480 = vsel %vm1250, %v1477, -inf
        %1481 = vmax.xlane.f32.xlu0 %v1480
        %v1482 = vpop.xlane.xlu0 %1481
        %v1483 = vsel %vm1250, %v1478, -inf
        %1484 = vmax.xlane.f32.xlu0 %v1483
        %v1485 = vpop.xlane.xlu0 %1484
        %v1486 = vsel %vm1257, %v1479, -inf
        %1487 = vmax.xlane.f32.xlu0 %v1486
        %v1488 = vpop.xlane.xlu0 %1487
        %v1489 = vsub.f32 %v1477, %v1482
        %v1490 = vsub.f32 %v1478, %v1485
        %v1491 = vsub.f32 %v1479, %v1488
        %v1492 = vmul.f32 %v1489, 1.442695
        %v1493 = vpow.pop %v1492
        %v1494 = vmul.f32 %v1490, 1.442695
        %v1495 = vpow.pop %v1494
        %v1496 = vmul.f32 %v1491, 1.442695
        %v1497 = vpow.pop %v1496
        %v1498 = vsel %vm1250, %v1493, 0.0
        %1499 = vadd.xlane.f32.xlu0 %v1498
        %v1500 = vpop.xlane.xlu0 %1499
        %v1501 = vsel %vm1250, %v1495, 0.0
        %1502 = vadd.xlane.f32.xlu0 %v1501
        %v1503 = vpop.xlane.xlu0 %1502
        %v1504 = vsel %vm1257, %v1497, 0.0
        %1505 = vadd.xlane.f32.xlu0 %v1504
        %v1506 = vpop.xlane.xlu0 %1505
        %v1507 = vrcp.pop %v1500
        %v1508 = vrcp.pop %v1503
        %v1509 = vrcp.pop %v1506
        %v1510 = vmul.f32 %v1493, %v1507
        %v1511 = vmul.f32 %v1495, %v1508
        %v1512 = vmul.f32 %v1497, %v1509
        %v1514 = vsel %vm1250, %v1510, 0
        %v1517 = vsel %vm1250, %v1511, 0
        %v1520 = vsel %vm1250, %v1512, 0
        %v1523 = vsel %vm1294, %v1431, 0
        %1525 = vmatpush.msra.mxu0 0.0
        %1526 = vmatpush.msra.mxu0 0.0
        %1527 = vmatpush.msra.mxu0 0.0
        %1528 = vmatpush.msra.mxu0 0.0
        %1529 = vmatpush.msra.mxu0 0.0
        %1530 = vmatpush.msra.mxu0 0.0
        %1531 = vmatpush.msra.mxu0 0.0
        %1532 = vmatpush.msra.mxu0 0.0
        %1533 = vmatpush.msra.mxu0 0.0
        %1534 = vmatpush.msra.mxu0 0.0
        %1535 = vmatpush.msra.mxu0 0.0
        %1536 = vmatpush.msra.mxu0 0.0
        %1537 = vmatpush.msra.mxu0 0.0
        %1538 = vmatpush.msra.mxu0 %v1523
        %1539 = vmatpush.msra.mxu0 %v1428
        %1540 = vmatpush.msra.mxu0 %v1425
        %1541 = vmatmul.f32.gmra.mxu0 %v1514
        %v1542 = vpop.f32.mrf.mxu0
        %v1543 = vadd.f32 0.0, %v1542
        %1544 = vmatmul.f32.gmra.mxu0 %v1517
        %v1545 = vpop.f32.mrf.mxu0
        %v1546 = vadd.f32 0.0, %v1545
        %1547 = vmatmul.f32.gmra.mxu0 %v1520
        %v1548 = vpop.f32.mrf.mxu0
        %v1549 = vadd.f32 0.0, %v1548
        %1550 = vdwg.mxu0
        %s1551 = scalar_lea.vmem %s18, 8
        %v1552 = vld [vmem:[%s1551] sm:$0xff]
        %v1554 = vsel %vm1202, %v1543, 0
        %v1557 = vsel %vm1202, %v1546, 0
        %v1560 = vsel %vm1202, %v1549, 0
        %1562 = vmatpush.msra.mxu0 0.0
        %1563 = vmatpush.msra.mxu0 0.0
        %1564 = vmatpush.msra.mxu0 0.0
        %1565 = vmatpush.msra.mxu0 0.0
        %1566 = vmatpush.msra.mxu0 0.0
        %1567 = vmatpush.msra.mxu0 0.0
        %1568 = vmatpush.msra.mxu0 0.0
        %1569 = vmatpush.msra.mxu0 0.0
        %1570 = vmatpush.msra.mxu0 0.0
        %1571 = vmatpush.msra.mxu0 0.0
        %1572 = vmatpush.msra.mxu0 0.0
        %1573 = vmatpush.msra.mxu0 0.0
        %1574 = vmatpush.msra.mxu0 0.0
        %1575 = vmatpush.msra.mxu0 0.0
        %1576 = vmatpush.msra.mxu0 0.0
        %1577 = vmatpush.msra.mxu0 %v1552
        %1578 = vmatmul.f32.gmra.mxu0 %v1554
        %v1579 = vpop.f32.mrf.mxu0
        %v1580 = vadd.f32 0.0, %v1579
        %1581 = vmatmul.f32.gmra.mxu0 %v1557
        %v1582 = vpop.f32.mrf.mxu0
        %v1583 = vadd.f32 0.0, %v1582
        %1584 = vmatmul.f32.gmra.mxu0 %v1560
        %v1585 = vpop.f32.mrf.mxu0
        %v1586 = vadd.f32 0.0, %v1585
        %1587 = vdwg.mxu0
        %v1589 = vsel %vm1202, %v1316, 0
        %v1592 = vsel %vm1202, %v1319, 0
        %v1595 = vsel %vm1202, %v1322, 0
        %1597 = vmatpush.msra.mxu0 0.0
        %1598 = vmatpush.msra.mxu0 0.0
        %1599 = vmatpush.msra.mxu0 0.0
        %1600 = vmatpush.msra.mxu0 0.0
        %1601 = vmatpush.msra.mxu0 0.0
        %1602 = vmatpush.msra.mxu0 0.0
        %1603 = vmatpush.msra.mxu0 0.0
        %1604 = vmatpush.msra.mxu0 0.0
        %1605 = vmatpush.msra.mxu0 0.0
        %1606 = vmatpush.msra.mxu0 0.0
        %1607 = vmatpush.msra.mxu0 0.0
        %1608 = vmatpush.msra.mxu0 0.0
        %1609 = vmatpush.msra.mxu0 0.0
        %1610 = vmatpush.msra.mxu0 0.0
        %1611 = vmatpush.msra.mxu0 0.0
        %1612 = vmatpush.msra.mxu0 %v1324
        %1613 = vmatmul.f32.gmra.mxu0 %v1589
        %v1614 = vpop.f32.mrf.mxu0
        %v1615 = vadd.f32 %v1580, %v1614
        %1616 = vmatmul.f32.gmra.mxu0 %v1592
        %v1617 = vpop.f32.mrf.mxu0
        %v1618 = vadd.f32 %v1583, %v1617
        %1619 = vmatmul.f32.gmra.mxu0 %v1595
        %v1620 = vpop.f32.mrf.mxu0
        %v1621 = vadd.f32 %v1586, %v1620
        %1622 = vdwg.mxu0
        %s1623 = scalar_lea.vmem %s12, 64
        %v1624 = vld [vmem:[%s1623] sm:$0xff]
        %v1625 = vld [vmem:[%s1623 + $0x8] sm:$0xff]
        %v1626 = vld [vmem:[%s1623 + $0x10] sm:$0xff]
        %v1627 = vld [vmem:[%s1623 + $0x18] sm:$0xff]
        %s1628 = scalar_lea.vmem %s15, 2
        %v1629 = vld [vmem:[%s1628] sm:$0x1]
        %v1631 = vperm.slane %v1629, 0
        %1633 = vmatpush.msra.mxu0 0.0
        %1634 = vmatpush.msra.mxu0 0.0
        %1635 = vmatpush.msra.mxu0 0.0
        %1636 = vmatpush.msra.mxu0 0.0
        %1637 = vmatpush.msra.mxu0 0.0
        %1638 = vmatpush.msra.mxu0 0.0
        %1639 = vmatpush.msra.mxu0 0.0
        %1640 = vmatpush.msra.mxu0 0.0
        %1641 = vmatpush.msra.mxu0 0.0
        %1642 = vmatpush.msra.mxu0 0.0
        %1643 = vmatpush.msra.mxu0 0.0
        %1644 = vmatpush.msra.mxu0 0.0
        %1645 = vmatpush.msra.mxu0 %v1627
        %1646 = vmatpush.msra.mxu0 %v1626
        %1647 = vmatpush.msra.mxu0 %v1625
        %1648 = vmatpush.msra.mxu0 %v1624
        %1649 = vmatmul.f32.gmra.mxu0 %v1100
        %v1650 = vpop.f32.mrf.mxu0
        %v1651 = vadd.f32 %v1631, %v1650
        %1652 = vmatmul.f32.gmra.mxu0 %v1103
        %v1653 = vpop.f32.mrf.mxu0
        %v1654 = vadd.f32 %v1631, %v1653
        %1655 = vmatmul.f32.gmra.mxu0 %v1106
        %v1656 = vpop.f32.mrf.mxu0
        %v1657 = vadd.f32 %v1631, %v1656
        %1658 = vdwg.mxu0
        %s1659 = scalar_lea.vmem %s13, 64
        %v1660 = vld [vmem:[%s1659] sm:$0xff]
        %v1661 = vld [vmem:[%s1659 + $0x8] sm:$0xff]
        %v1662 = vld [vmem:[%s1659 + $0x10] sm:$0xff]
        %v1663 = vld [vmem:[%s1659 + $0x18] sm:$0xff]
        %s1664 = scalar_lea.vmem %s16, 2
        %v1665 = vld [vmem:[%s1664] sm:$0x1]
        %v1667 = vperm.slane %v1665, 0
        %1669 = vmatpush.msra.mxu0 0.0
        %1670 = vmatpush.msra.mxu0 0.0
        %1671 = vmatpush.msra.mxu0 0.0
        %1672 = vmatpush.msra.mxu0 0.0
        %1673 = vmatpush.msra.mxu0 0.0
        %1674 = vmatpush.msra.mxu0 0.0
        %1675 = vmatpush.msra.mxu0 0.0
        %1676 = vmatpush.msra.mxu0 0.0
        %1677 = vmatpush.msra.mxu0 0.0
        %1678 = vmatpush.msra.mxu0 0.0
        %1679 = vmatpush.msra.mxu0 0.0
        %1680 = vmatpush.msra.mxu0 0.0
        %1681 = vmatpush.msra.mxu0 %v1663
        %1682 = vmatpush.msra.mxu0 %v1662
        %1683 = vmatpush.msra.mxu0 %v1661
        %1684 = vmatpush.msra.mxu0 %v1660
        %1685 = vmatmul.f32.gmra.mxu0 %v1100
        %v1686 = vpop.f32.mrf.mxu0
        %v1687 = vadd.f32 %v1667, %v1686
        %1688 = vmatmul.f32.gmra.mxu0 %v1103
        %v1689 = vpop.f32.mrf.mxu0
        %v1690 = vadd.f32 %v1667, %v1689
        %1691 = vmatmul.f32.gmra.mxu0 %v1106
        %v1692 = vpop.f32.mrf.mxu0
        %v1693 = vadd.f32 %v1667, %v1692
        %1694 = vdwg.mxu0
        %s1695 = scalar_lea.vmem %s14, 64
        %v1696 = vld [vmem:[%s1695] sm:$0xff]
        %v1697 = vld [vmem:[%s1695 + $0x8] sm:$0xff]
        %v1698 = vld [vmem:[%s1695 + $0x10] sm:$0xff]
        %v1699 = vld [vmem:[%s1695 + $0x18] sm:$0xff]
        %s1700 = scalar_lea.vmem %s17, 2
        %v1701 = vld [vmem:[%s1700] sm:$0x1]
        %v1703 = vperm.slane %v1701, 0
        %1705 = vmatpush.msra.mxu0 0.0
        %1706 = vmatpush.msra.mxu0 0.0
        %1707 = vmatpush.msra.mxu0 0.0
        %1708 = vmatpush.msra.mxu0 0.0
        %1709 = vmatpush.msra.mxu0 0.0
        %1710 = vmatpush.msra.mxu0 0.0
        %1711 = vmatpush.msra.mxu0 0.0
        %1712 = vmatpush.msra.mxu0 0.0
        %1713 = vmatpush.msra.mxu0 0.0
        %1714 = vmatpush.msra.mxu0 0.0
        %1715 = vmatpush.msra.mxu0 0.0
        %1716 = vmatpush.msra.mxu0 0.0
        %1717 = vmatpush.msra.mxu0 %v1699
        %1718 = vmatpush.msra.mxu0 %v1698
        %1719 = vmatpush.msra.mxu0 %v1697
        %1720 = vmatpush.msra.mxu0 %v1696
        %1721 = vmatmul.f32.gmra.mxu0 %v1100
        %v1722 = vpop.f32.mrf.mxu0
        %v1723 = vadd.f32 %v1703, %v1722
        %1724 = vmatmul.f32.gmra.mxu0 %v1103
        %v1725 = vpop.f32.mrf.mxu0
        %v1726 = vadd.f32 %v1703, %v1725
        %1727 = vmatmul.f32.gmra.mxu0 %v1106
        %v1728 = vpop.f32.mrf.mxu0
        %v1729 = vadd.f32 %v1703, %v1728
        %1730 = vdwg.mxu0
        %v1732 = vsel %vm1202, %v1651, 0
        %v1735 = vsel %vm1202, %v1654, 0
        %v1738 = vsel %vm1202, %v1657, 0
        %v1741 = vsel %vm1202, %v1687, 0
        %v1744 = vsel %vm1202, %v1690, 0
        %v1747 = vsel %vm1202, %v1693, 0
        %1749 = vmatpush.xpose.msra.mxu0 0.0
        %1750 = vmatpush.xpose.msra.mxu0 0.0
        %1751 = vmatpush.xpose.msra.mxu0 0.0
        %1752 = vmatpush.xpose.msra.mxu0 0.0
        %1753 = vmatpush.xpose.msra.mxu0 0.0
        %1754 = vmatpush.xpose.msra.mxu0 0.0
        %1755 = vmatpush.xpose.msra.mxu0 0.0
        %1756 = vmatpush.xpose.msra.mxu0 0.0
        %1757 = vmatpush.xpose.msra.mxu0 0.0
        %1758 = vmatpush.xpose.msra.mxu0 0.0
        %1759 = vmatpush.xpose.msra.mxu0 0.0
        %1760 = vmatpush.xpose.msra.mxu0 0.0
        %1761 = vmatpush.xpose.msra.mxu0 0.0
        %1762 = vmatpush.xpose.msra.mxu0 %v1747
        %1763 = vmatpush.xpose.msra.mxu0 %v1744
        %1764 = vmatpush.xpose.msra.mxu0 %v1741
        %1765 = vmatmul.f32.gmra.mxu0 %v1732
        %v1766 = vpop.f32.mrf.mxu0
        %v1767 = vadd.f32 0.0, %v1766
        %1768 = vmatmul.f32.gmra.mxu0 %v1735
        %v1769 = vpop.f32.mrf.mxu0
        %v1770 = vadd.f32 0.0, %v1769
        %1771 = vmatmul.f32.gmra.mxu0 %v1738
        %v1772 = vpop.f32.mrf.mxu0
        %v1773 = vadd.f32 0.0, %v1772
        %1774 = vdwg.mxu0
        %v1775 = vmul.f32 %v1767, 0.35355338
        %v1776 = vmul.f32 %v1770, 0.35355338
        %v1777 = vmul.f32 %v1773, 0.35355338
        %v1778 = vsel %vm1250, %v1775, -inf
        %1779 = vmax.xlane.f32.xlu0 %v1778
        %v1780 = vpop.xlane.xlu0 %1779
        %v1781 = vsel %vm1250, %v1776, -inf
        %1782 = vmax.xlane.f32.xlu0 %v1781
        %v1783 = vpop.xlane.xlu0 %1782
        %v1784 = vsel %vm1257, %v1777, -inf
        %1785 = vmax.xlane.f32.xlu0 %v1784
        %v1786 = vpop.xlane.xlu0 %1785
        %v1787 = vsub.f32 %v1775, %v1780
        %v1788 = vsub.f32 %v1776, %v1783
        %v1789 = vsub.f32 %v1777, %v1786
        %v1790 = vmul.f32 %v1787, 1.442695
        %v1791 = vpow.pop %v1790
        %v1792 = vmul.f32 %v1788, 1.442695
        %v1793 = vpow.pop %v1792
        %v1794 = vmul.f32 %v1789, 1.442695
        %v1795 = vpow.pop %v1794
        %v1796 = vsel %vm1250, %v1791, 0.0
        %1797 = vadd.xlane.f32.xlu0 %v1796
        %v1798 = vpop.xlane.xlu0 %1797
        %v1799 = vsel %vm1250, %v1793, 0.0
        %1800 = vadd.xlane.f32.xlu0 %v1799
        %v1801 = vpop.xlane.xlu0 %1800
        %v1802 = vsel %vm1257, %v1795, 0.0
        %1803 = vadd.xlane.f32.xlu0 %v1802
        %v1804 = vpop.xlane.xlu0 %1803
        %v1805 = vrcp.pop %v1798
        %v1806 = vrcp.pop %v1801
        %v1807 = vrcp.pop %v1804
        %v1808 = vmul.f32 %v1791, %v1805
        %v1809 = vmul.f32 %v1793, %v1806
        %v1810 = vmul.f32 %v1795, %v1807
        %v1812 = vsel %vm1250, %v1808, 0
        %v1815 = vsel %vm1250, %v1809, 0
        %v1818 = vsel %vm1250, %v1810, 0
        %v1821 = vsel %vm1294, %v1729, 0
        %1823 = vmatpush.msra.mxu0 0.0
        %1824 = vmatpush.msra.mxu0 0.0
        %1825 = vmatpush.msra.mxu0 0.0
        %1826 = vmatpush.msra.mxu0 0.0
        %1827 = vmatpush.msra.mxu0 0.0
        %1828 = vmatpush.msra.mxu0 0.0
        %1829 = vmatpush.msra.mxu0 0.0
        %1830 = vmatpush.msra.mxu0 0.0
        %1831 = vmatpush.msra.mxu0 0.0
        %1832 = vmatpush.msra.mxu0 0.0
        %1833 = vmatpush.msra.mxu0 0.0
        %1834 = vmatpush.msra.mxu0 0.0
        %1835 = vmatpush.msra.mxu0 0.0
        %1836 = vmatpush.msra.mxu0 %v1821
        %1837 = vmatpush.msra.mxu0 %v1726
        %1838 = vmatpush.msra.mxu0 %v1723
        %1839 = vmatmul.f32.gmra.mxu0 %v1812
        %v1840 = vpop.f32.mrf.mxu0
        %v1841 = vadd.f32 0.0, %v1840
        %1842 = vmatmul.f32.gmra.mxu0 %v1815
        %v1843 = vpop.f32.mrf.mxu0
        %v1844 = vadd.f32 0.0, %v1843
        %1845 = vmatmul.f32.gmra.mxu0 %v1818
        %v1846 = vpop.f32.mrf.mxu0
        %v1847 = vadd.f32 0.0, %v1846
        %1848 = vdwg.mxu0
        %s1849 = scalar_lea.vmem %s18, 16
        %v1850 = vld [vmem:[%s1849] sm:$0xff]
        %v1852 = vsel %vm1202, %v1841, 0
        %v1855 = vsel %vm1202, %v1844, 0
        %v1858 = vsel %vm1202, %v1847, 0
        %1860 = vmatpush.msra.mxu0 0.0
        %1861 = vmatpush.msra.mxu0 0.0
        %1862 = vmatpush.msra.mxu0 0.0
        %1863 = vmatpush.msra.mxu0 0.0
        %1864 = vmatpush.msra.mxu0 0.0
        %1865 = vmatpush.msra.mxu0 0.0
        %1866 = vmatpush.msra.mxu0 0.0
        %1867 = vmatpush.msra.mxu0 0.0
        %1868 = vmatpush.msra.mxu0 0.0
        %1869 = vmatpush.msra.mxu0 0.0
        %1870 = vmatpush.msra.mxu0 0.0
        %1871 = vmatpush.msra.mxu0 0.0
        %1872 = vmatpush.msra.mxu0 0.0
        %1873 = vmatpush.msra.mxu0 0.0
        %1874 = vmatpush.msra.mxu0 0.0
        %1875 = vmatpush.msra.mxu0 %v1850
        %1876 = vmatmul.f32.gmra.mxu0 %v1852
        %v1877 = vpop.f32.mrf.mxu0
        %v1878 = vadd.f32 0.0, %v1877
        %1879 = vmatmul.f32.gmra.mxu0 %v1855
        %v1880 = vpop.f32.mrf.mxu0
        %v1881 = vadd.f32 0.0, %v1880
        %1882 = vmatmul.f32.gmra.mxu0 %v1858
        %v1883 = vpop.f32.mrf.mxu0
        %v1884 = vadd.f32 0.0, %v1883
        %1885 = vdwg.mxu0
        %v1886 = vadd.f32 %v1615, %v1878
        %v1887 = vadd.f32 %v1618, %v1881
        %v1888 = vadd.f32 %v1621, %v1884
        %s1889 = scalar_lea.vmem %s12, 96
        %v1890 = vld [vmem:[%s1889] sm:$0xff]
        %v1891 = vld [vmem:[%s1889 + $0x8] sm:$0xff]
        %v1892 = vld [vmem:[%s1889 + $0x10] sm:$0xff]
        %v1893 = vld [vmem:[%s1889 + $0x18] sm:$0xff]
        %s1894 = scalar_lea.vmem %s15, 3
        %v1895 = vld [vmem:[%s1894] sm:$0x1]
        %v1897 = vperm.slane %v1895, 0
        %1899 = vmatpush.msra.mxu0 0.0
        %1900 = vmatpush.msra.mxu0 0.0
        %1901 = vmatpush.msra.mxu0 0.0
        %1902 = vmatpush.msra.mxu0 0.0
        %1903 = vmatpush.msra.mxu0 0.0
        %1904 = vmatpush.msra.mxu0 0.0
        %1905 = vmatpush.msra.mxu0 0.0
        %1906 = vmatpush.msra.mxu0 0.0
        %1907 = vmatpush.msra.mxu0 0.0
        %1908 = vmatpush.msra.mxu0 0.0
        %1909 = vmatpush.msra.mxu0 0.0
        %1910 = vmatpush.msra.mxu0 0.0
        %1911 = vmatpush.msra.mxu0 %v1893
        %1912 = vmatpush.msra.mxu0 %v1892
        %1913 = vmatpush.msra.mxu0 %v1891
        %1914 = vmatpush.msra.mxu0 %v1890
        %1915 = vmatmul.f32.gmra.mxu0 %v1100
        %v1916 = vpop.f32.mrf.mxu0
        %v1917 = vadd.f32 %v1897, %v1916
        %1918 = vmatmul.f32.gmra.mxu0 %v1103
        %v1919 = vpop.f32.mrf.mxu0
        %v1920 = vadd.f32 %v1897, %v1919
        %1921 = vmatmul.f32.gmra.mxu0 %v1106
        %v1922 = vpop.f32.mrf.mxu0
        %v1923 = vadd.f32 %v1897, %v1922
        %1924 = vdwg.mxu0
        %s1925 = scalar_lea.vmem %s13, 96
        %v1926 = vld [vmem:[%s1925] sm:$0xff]
        %v1927 = vld [vmem:[%s1925 + $0x8] sm:$0xff]
        %v1928 = vld [vmem:[%s1925 + $0x10] sm:$0xff]
        %v1929 = vld [vmem:[%s1925 + $0x18] sm:$0xff]
        %s1930 = scalar_lea.vmem %s16, 3
        %v1931 = vld [vmem:[%s1930] sm:$0x1]
        %v1933 = vperm.slane %v1931, 0
        %1935 = vmatpush.msra.mxu0 0.0
        %1936 = vmatpush.msra.mxu0 0.0
        %1937 = vmatpush.msra.mxu0 0.0
        %1938 = vmatpush.msra.mxu0 0.0
        %1939 = vmatpush.msra.mxu0 0.0
        %1940 = vmatpush.msra.mxu0 0.0
        %1941 = vmatpush.msra.mxu0 0.0
        %1942 = vmatpush.msra.mxu0 0.0
        %1943 = vmatpush.msra.mxu0 0.0
        %1944 = vmatpush.msra.mxu0 0.0
        %1945 = vmatpush.msra.mxu0 0.0
        %1946 = vmatpush.msra.mxu0 0.0
        %1947 = vmatpush.msra.mxu0 %v1929
        %1948 = vmatpush.msra.mxu0 %v1928
        %1949 = vmatpush.msra.mxu0 %v1927
        %1950 = vmatpush.msra.mxu0 %v1926
        %1951 = vmatmul.f32.gmra.mxu0 %v1100
        %v1952 = vpop.f32.mrf.mxu0
        %v1953 = vadd.f32 %v1933, %v1952
        %1954 = vmatmul.f32.gmra.mxu0 %v1103
        %v1955 = vpop.f32.mrf.mxu0
        %v1956 = vadd.f32 %v1933, %v1955
        %1957 = vmatmul.f32.gmra.mxu0 %v1106
        %v1958 = vpop.f32.mrf.mxu0
        %v1959 = vadd.f32 %v1933, %v1958
        %1960 = vdwg.mxu0
        %s1961 = scalar_lea.vmem %s14, 96
        %v1962 = vld [vmem:[%s1961] sm:$0xff]
        %v1963 = vld [vmem:[%s1961 + $0x8] sm:$0xff]
        %v1964 = vld [vmem:[%s1961 + $0x10] sm:$0xff]
        %v1965 = vld [vmem:[%s1961 + $0x18] sm:$0xff]
        %s1966 = scalar_lea.vmem %s17, 3
        %v1967 = vld [vmem:[%s1966] sm:$0x1]
        %v1969 = vperm.slane %v1967, 0
        %1971 = vmatpush.msra.mxu0 0.0
        %1972 = vmatpush.msra.mxu0 0.0
        %1973 = vmatpush.msra.mxu0 0.0
        %1974 = vmatpush.msra.mxu0 0.0
        %1975 = vmatpush.msra.mxu0 0.0
        %1976 = vmatpush.msra.mxu0 0.0
        %1977 = vmatpush.msra.mxu0 0.0
        %1978 = vmatpush.msra.mxu0 0.0
        %1979 = vmatpush.msra.mxu0 0.0
        %1980 = vmatpush.msra.mxu0 0.0
        %1981 = vmatpush.msra.mxu0 0.0
        %1982 = vmatpush.msra.mxu0 0.0
        %1983 = vmatpush.msra.mxu0 %v1965
        %1984 = vmatpush.msra.mxu0 %v1964
        %1985 = vmatpush.msra.mxu0 %v1963
        %1986 = vmatpush.msra.mxu0 %v1962
        %1987 = vmatmul.f32.gmra.mxu0 %v1100
        %v1988 = vpop.f32.mrf.mxu0
        %v1989 = vadd.f32 %v1969, %v1988
        %1990 = vmatmul.f32.gmra.mxu0 %v1103
        %v1991 = vpop.f32.mrf.mxu0
        %v1992 = vadd.f32 %v1969, %v1991
        %1993 = vmatmul.f32.gmra.mxu0 %v1106
        %v1994 = vpop.f32.mrf.mxu0
        %v1995 = vadd.f32 %v1969, %v1994
        %1996 = vdwg.mxu0
        %v1998 = vsel %vm1202, %v1917, 0
        %v2001 = vsel %vm1202, %v1920, 0
        %v2004 = vsel %vm1202, %v1923, 0
        %v2007 = vsel %vm1202, %v1953, 0
        %v2010 = vsel %vm1202, %v1956, 0
        %v2013 = vsel %vm1202, %v1959, 0
        %2015 = vmatpush.xpose.msra.mxu0 0.0
        %2016 = vmatpush.xpose.msra.mxu0 0.0
        %2017 = vmatpush.xpose.msra.mxu0 0.0
        %2018 = vmatpush.xpose.msra.mxu0 0.0
        %2019 = vmatpush.xpose.msra.mxu0 0.0
        %2020 = vmatpush.xpose.msra.mxu0 0.0
        %2021 = vmatpush.xpose.msra.mxu0 0.0
        %2022 = vmatpush.xpose.msra.mxu0 0.0
        %2023 = vmatpush.xpose.msra.mxu0 0.0
        %2024 = vmatpush.xpose.msra.mxu0 0.0
        %2025 = vmatpush.xpose.msra.mxu0 0.0
        %2026 = vmatpush.xpose.msra.mxu0 0.0
        %2027 = vmatpush.xpose.msra.mxu0 0.0
        %2028 = vmatpush.xpose.msra.mxu0 %v2013
        %2029 = vmatpush.xpose.msra.mxu0 %v2010
        %2030 = vmatpush.xpose.msra.mxu0 %v2007
        %2031 = vmatmul.f32.gmra.mxu0 %v1998
        %v2032 = vpop.f32.mrf.mxu0
        %v2033 = vadd.f32 0.0, %v2032
        %2034 = vmatmul.f32.gmra.mxu0 %v2001
        %v2035 = vpop.f32.mrf.mxu0
        %v2036 = vadd.f32 0.0, %v2035
        %2037 = vmatmul.f32.gmra.mxu0 %v2004
        %v2038 = vpop.f32.mrf.mxu0
        %v2039 = vadd.f32 0.0, %v2038
        %2040 = vdwg.mxu0
        %v2041 = vmul.f32 %v2033, 0.35355338
        %v2042 = vmul.f32 %v2036, 0.35355338
        %v2043 = vmul.f32 %v2039, 0.35355338
        %v2044 = vsel %vm1250, %v2041, -inf
        %2045 = vmax.xlane.f32.xlu0 %v2044
        %v2046 = vpop.xlane.xlu0 %2045
        %v2047 = vsel %vm1250, %v2042, -inf
        %2048 = vmax.xlane.f32.xlu0 %v2047
        %v2049 = vpop.xlane.xlu0 %2048
        %v2050 = vsel %vm1257, %v2043, -inf
        %2051 = vmax.xlane.f32.xlu0 %v2050
        %v2052 = vpop.xlane.xlu0 %2051
        %v2053 = vsub.f32 %v2041, %v2046
        %v2054 = vsub.f32 %v2042, %v2049
        %v2055 = vsub.f32 %v2043, %v2052
        %v2056 = vmul.f32 %v2053, 1.442695
        %v2057 = vpow.pop %v2056
        %v2058 = vmul.f32 %v2054, 1.442695
        %v2059 = vpow.pop %v2058
        %v2060 = vmul.f32 %v2055, 1.442695
        %v2061 = vpow.pop %v2060
        %v2062 = vsel %vm1250, %v2057, 0.0
        %2063 = vadd.xlane.f32.xlu0 %v2062
        %v2064 = vpop.xlane.xlu0 %2063
        %v2065 = vsel %vm1250, %v2059, 0.0
        %2066 = vadd.xlane.f32.xlu0 %v2065
        %v2067 = vpop.xlane.xlu0 %2066
        %v2068 = vsel %vm1257, %v2061, 0.0
        %2069 = vadd.xlane.f32.xlu0 %v2068
        %v2070 = vpop.xlane.xlu0 %2069
        %v2071 = vrcp.pop %v2064
        %v2072 = vrcp.pop %v2067
        %v2073 = vrcp.pop %v2070
        %v2074 = vmul.f32 %v2057, %v2071
        %v2075 = vmul.f32 %v2059, %v2072
        %v2076 = vmul.f32 %v2061, %v2073
        %v2078 = vsel %vm1250, %v2074, 0
        %v2081 = vsel %vm1250, %v2075, 0
        %v2084 = vsel %vm1250, %v2076, 0
        %v2087 = vsel %vm1294, %v1995, 0
        %2089 = vmatpush.msra.mxu0 0.0
        %2090 = vmatpush.msra.mxu0 0.0
        %2091 = vmatpush.msra.mxu0 0.0
        %2092 = vmatpush.msra.mxu0 0.0
        %2093 = vmatpush.msra.mxu0 0.0
        %2094 = vmatpush.msra.mxu0 0.0
        %2095 = vmatpush.msra.mxu0 0.0
        %2096 = vmatpush.msra.mxu0 0.0
        %2097 = vmatpush.msra.mxu0 0.0
        %2098 = vmatpush.msra.mxu0 0.0
        %2099 = vmatpush.msra.mxu0 0.0
        %2100 = vmatpush.msra.mxu0 0.0
        %2101 = vmatpush.msra.mxu0 0.0
        %2102 = vmatpush.msra.mxu0 %v2087
        %2103 = vmatpush.msra.mxu0 %v1992
        %2104 = vmatpush.msra.mxu0 %v1989
        %2105 = vmatmul.f32.gmra.mxu0 %v2078
        %v2106 = vpop.f32.mrf.mxu0
        %v2107 = vadd.f32 0.0, %v2106
        %2108 = vmatmul.f32.gmra.mxu0 %v2081
        %v2109 = vpop.f32.mrf.mxu0
        %v2110 = vadd.f32 0.0, %v2109
        %2111 = vmatmul.f32.gmra.mxu0 %v2084
        %v2112 = vpop.f32.mrf.mxu0
        %v2113 = vadd.f32 0.0, %v2112
        %2114 = vdwg.mxu0
        %s2115 = scalar_lea.vmem %s18, 24
        %v2116 = vld [vmem:[%s2115] sm:$0xff]
        %v2118 = vsel %vm1202, %v2107, 0
        %v2121 = vsel %vm1202, %v2110, 0
        %v2124 = vsel %vm1202, %v2113, 0
        %2126 = vmatpush.msra.mxu0 0.0
        %2127 = vmatpush.msra.mxu0 0.0
        %2128 = vmatpush.msra.mxu0 0.0
        %2129 = vmatpush.msra.mxu0 0.0
        %2130 = vmatpush.msra.mxu0 0.0
        %2131 = vmatpush.msra.mxu0 0.0
        %2132 = vmatpush.msra.mxu0 0.0
        %2133 = vmatpush.msra.mxu0 0.0
        %2134 = vmatpush.msra.mxu0 0.0
        %2135 = vmatpush.msra.mxu0 0.0
        %2136 = vmatpush.msra.mxu0 0.0
        %2137 = vmatpush.msra.mxu0 0.0
        %2138 = vmatpush.msra.mxu0 0.0
        %2139 = vmatpush.msra.mxu0 0.0
        %2140 = vmatpush.msra.mxu0 0.0
        %2141 = vmatpush.msra.mxu0 %v2116
        %2142 = vmatmul.f32.gmra.mxu0 %v2118
        %v2143 = vpop.f32.mrf.mxu0
        %v2144 = vadd.f32 0.0, %v2143
        %2145 = vmatmul.f32.gmra.mxu0 %v2121
        %v2146 = vpop.f32.mrf.mxu0
        %v2147 = vadd.f32 0.0, %v2146
        %2148 = vmatmul.f32.gmra.mxu0 %v2124
        %v2149 = vpop.f32.mrf.mxu0
        %v2150 = vadd.f32 0.0, %v2149
        %2151 = vdwg.mxu0
        %v2152 = vadd.f32 %v1886, %v2144
        %v2153 = vadd.f32 %v1887, %v2147
        %v2154 = vadd.f32 %v1888, %v2150
        %v2155 = vadd.f32 %v1008, %v2152
        %v2156 = vadd.f32 %v1009, %v2153
        %v2157 = vadd.f32 %v1010, %v2154
        %v2158 = vld [vmem:[%s19] sm:$0x1]
        %v2160 = vperm.slane %v2158, 0
        %v2162 = vadd.f32 %v2155, %v2160
        %v2163 = vadd.f32 %v2156, %v2160
        %v2164 = vadd.f32 %v2157, %v2160
        %v2165 = vld [vmem:[%s20] sm:$0x1]
        %v2166 = vld [vmem:[%s21] sm:$0x1]
        %v2167 = vsel %vm924, %v2162, 0.0
        %2168 = vadd.xlane.f32.xlu0 %v2167
        %v2169 = vpop.xlane.xlu0 %2168
        %v2170 = vsel %vm924, %v2163, 0.0
        %2171 = vadd.xlane.f32.xlu0 %v2170
        %v2172 = vpop.xlane.xlu0 %2171
        %v2173 = vsel %vm931, %v2164, 0.0
        %2174 = vadd.xlane.f32.xlu0 %v2173
        %v2175 = vpop.xlane.xlu0 %2174
        %v2176 = vmul.f32 %v2169, %v941
        %v2177 = vmul.f32 %v2172, %v941
        %v2178 = vmul.f32 %v2175, %v941
        %v2179 = vsub.f32 %v2162, %v2176
        %v2180 = vsub.f32 %v2163, %v2177
        %v2181 = vsub.f32 %v2164, %v2178
        %v2182 = vmul.f32 %v2179, %v2179
        %v2183 = vmul.f32 %v2180, %v2180
        %v2184 = vmul.f32 %v2181, %v2181
        %v2185 = vsel %vm924, %v2182, 0.0
        %2186 = vadd.xlane.f32.xlu0 %v2185
        %v2187 = vpop.xlane.xlu0 %2186
        %v2188 = vsel %vm924, %v2183, 0.0
        %2189 = vadd.xlane.f32.xlu0 %v2188
        %v2190 = vpop.xlane.xlu0 %2189
        %v2191 = vsel %vm931, %v2184, 0.0
        %2192 = vadd.xlane.f32.xlu0 %v2191
        %v2193 = vpop.xlane.xlu0 %2192
        %v2194 = vmul.f32 %v2187, %v941
        %v2195 = vmul.f32 %v2190, %v941
        %v2196 = vmul.f32 %v2193, %v941
        %v2197 = vadd.f32 %v2194, 1e-05
        %v2198 = vadd.f32 %v2195, 1e-05
        %v2199 = vadd.f32 %v2196, 1e-05
        %v2200 = vrsqrt.pop %v2197
        %v2201 = vmul.f32 %v2200, %v2197
        %v2202 = vmul.f32 %v2201, %v2200
        %v2203 = vmul.f32 0.5, %v2202
        %v2204 = vsub.f32 1.5, %v2203
        %v2205 = vmul.f32 %v2200, %v2204
        %vm2206 = vweird.f32 %v2197
        %vm2207 = vweird.f32 %v2200
        %vm2208 = vmor %vm2206, %vm2207
        %v2209 = vsel %vm2208, %v2200, %v2205
        %v2210 = vrsqrt.pop %v2198
        %v2211 = vmul.f32 %v2210, %v2198
        %v2212 = vmul.f32 %v2211, %v2210
        %v2213 = vmul.f32 0.5, %v2212
        %v2214 = vsub.f32 1.5, %v2213
        %v2215 = vmul.f32 %v2210, %v2214
        %vm2216 = vweird.f32 %v2198
        %vm2217 = vweird.f32 %v2210
        %vm2218 = vmor %vm2216, %vm2217
        %v2219 = vsel %vm2218, %v2210, %v2215
        %v2220 = vrsqrt.pop %v2199
        %v2221 = vmul.f32 %v2220, %v2199
        %v2222 = vmul.f32 %v2221, %v2220
        %v2223 = vmul.f32 0.5, %v2222
        %v2224 = vsub.f32 1.5, %v2223
        %v2225 = vmul.f32 %v2220, %v2224
        %vm2226 = vweird.f32 %v2199
        %vm2227 = vweird.f32 %v2220
        %vm2228 = vmor %vm2226, %vm2227
        %v2229 = vsel %vm2228, %v2220, %v2225
        %v2230 = vmul.f32 %v2179, %v2209
        %v2231 = vmul.f32 %v2180, %v2219
        %v2232 = vmul.f32 %v2181, %v2229
        %v2234 = vperm.slane %v2165, 0
        %v2236 = vmul.f32 %v2230, %v2234
        %v2237 = vmul.f32 %v2231, %v2234
        %v2238 = vmul.f32 %v2232, %v2234
        %v2240 = vperm.slane %v2166, 0
        %v2242 = vadd.f32 %v2236, %v2240
        %v2243 = vadd.f32 %v2237, %v2240
        %v2244 = vadd.f32 %v2238, %v2240
        %v2245 = vld [vmem:[%s22] sm:$0xff]
        %v2246 = vld [vmem:[%s22 + $0x8] sm:$0xff]
        %v2247 = vld [vmem:[%s22 + $0x10] sm:$0xff]
        %v2248 = vld [vmem:[%s22 + $0x18] sm:$0xff]
        %v2249 = vld [vmem:[%s23] sm:$0x1]
        %v2251 = vperm.slane %v2249, 0
        %v2254 = vsel %vm924, %v2242, 0
        %v2257 = vsel %vm924, %v2243, 0
        %v2260 = vsel %vm924, %v2244, 0
        %2262 = vmatpush.msra.mxu0 0.0
        %2263 = vmatpush.msra.mxu0 0.0
        %2264 = vmatpush.msra.mxu0 0.0
        %2265 = vmatpush.msra.mxu0 0.0
        %2266 = vmatpush.msra.mxu0 0.0
        %2267 = vmatpush.msra.mxu0 0.0
        %2268 = vmatpush.msra.mxu0 0.0
        %2269 = vmatpush.msra.mxu0 0.0
        %2270 = vmatpush.msra.mxu0 0.0
        %2271 = vmatpush.msra.mxu0 0.0
        %2272 = vmatpush.msra.mxu0 0.0
        %2273 = vmatpush.msra.mxu0 0.0
        %2274 = vmatpush.msra.mxu0 %v2248
        %2275 = vmatpush.msra.mxu0 %v2247
        %2276 = vmatpush.msra.mxu0 %v2246
        %2277 = vmatpush.msra.mxu0 %v2245
        %2278 = vmatmul.f32.gmra.mxu0 %v2254
        %v2279 = vpop.f32.mrf.mxu0
        %v2280 = vadd.f32 %v2251, %v2279
        %2281 = vmatmul.f32.gmra.mxu0 %v2257
        %v2282 = vpop.f32.mrf.mxu0
        %v2283 = vadd.f32 %v2251, %v2282
        %2284 = vmatmul.f32.gmra.mxu0 %v2260
        %v2285 = vpop.f32.mrf.mxu0
        %v2286 = vadd.f32 %v2251, %v2285
        %2287 = vdwg.mxu0
        %v2288 = vmul.f32 %v2280, 1.702
        %v2289 = vmul.f32 %v2283, 1.702
        %v2290 = vmul.f32 %v2286, 1.702
        %v2291 = vxor.u32 %v2288, 2147483648
        %v2292 = vxor.u32 %v2289, 2147483648
        %v2293 = vxor.u32 %v2290, 2147483648
        %v2294 = vmul.f32 %v2291, 1.442695
        %v2295 = vpow.pop %v2294
        %v2296 = vmul.f32 %v2292, 1.442695
        %v2297 = vpow.pop %v2296
        %v2298 = vmul.f32 %v2293, 1.442695
        %v2299 = vpow.pop %v2298
        %v2300 = vadd.f32 %v2295, 1.0
        %v2301 = vadd.f32 %v2297, 1.0
        %v2302 = vadd.f32 %v2299, 1.0
        %v2303 = vrcp.pop %v2300
        %v2304 = vmul.f32 %v2300, %v2303
        %v2305 = vsub.f32 1.0, %v2304
        %v2306 = vmul.f32 %v2303, %v2305
        %v2307 = vadd.f32 %v2303, %v2306
        %vm2308 = vweird.f32 %v2300
        %vm2309 = vweird.f32 %v2303
        %vm2310 = vmor %vm2308, %vm2309
        %v2311 = vsel %vm2310, %v2303, %v2307
        %v2312 = vand.u32 2147483647, %v2300
        %vm2313 = vcmp.eq.f32.partialorder %v2312, 8.507059e+37
        %v2314 = vand.u32 %v2300, 2147483648
        %v2315 = vor.u32 1.1754944e-38, %v2314
        %v2316 = vsel %vm2313, %v2315, %v2311
        %v2317 = vmul.f32 1.0, %v2316
        %v2318 = vrcp.pop %v2301
        %v2319 = vmul.f32 %v2301, %v2318
        %v2320 = vsub.f32 1.0, %v2319
        %v2321 = vmul.f32 %v2318, %v2320
        %v2322 = vadd.f32 %v2318, %v2321
        %vm2323 = vweird.f32 %v2301
        %vm2324 = vweird.f32 %v2318
        %vm2325 = vmor %vm2323, %vm2324
        %v2326 = vsel %vm2325, %v2318, %v2322
        %v2327 = vand.u32 2147483647, %v2301
        %vm2328 = vcmp.eq.f32.partialorder %v2327, 8.507059e+37
        %v2329 = vand.u32 %v2301, 2147483648
        %v2330 = vor.u32 1.1754944e-38, %v2329
        %v2331 = vsel %vm2328, %v2330, %v2326
        %v2332 = vmul.f32 1.0, %v2331
        %v2333 = vrcp.pop %v2302
        %v2334 = vmul.f32 %v2302, %v2333
        %v2335 = vsub.f32 1.0, %v2334
        %v2336 = vmul.f32 %v2333, %v2335
        %v2337 = vadd.f32 %v2333, %v2336
        %vm2338 = vweird.f32 %v2302
        %vm2339 = vweird.f32 %v2333
        %vm2340 = vmor %vm2338, %vm2339
        %v2341 = vsel %vm2340, %v2333, %v2337
        %v2342 = vand.u32 2147483647, %v2302
        %vm2343 = vcmp.eq.f32.partialorder %v2342, 8.507059e+37
        %v2344 = vand.u32 %v2302, 2147483648
        %v2345 = vor.u32 1.1754944e-38, %v2344
        %v2346 = vsel %vm2343, %v2345, %v2341
        %v2347 = vmul.f32 1.0, %v2346
        %v2348 = vmul.f32 %v2280, %v2317
        %v2349 = vmul.f32 %v2283, %v2332
        %v2350 = vmul.f32 %v2286, %v2347
        %v2351 = vld [vmem:[%s24] sm:$0xff]
        %v2352 = vld [vmem:[%s24 + $0x8] sm:$0xff]
        %v2353 = vld [vmem:[%s24 + $0x10] sm:$0xff]
        %v2354 = vld [vmem:[%s24 + $0x18] sm:$0xff]
        %v2355 = vld [vmem:[%s24 + $0x20] sm:$0xff]
        %v2356 = vld [vmem:[%s24 + $0x28] sm:$0xff]
        %v2357 = vld [vmem:[%s24 + $0x30] sm:$0xff]
        %v2358 = vld [vmem:[%s24 + $0x38] sm:$0xff]
        %v2359 = vld [vmem:[%s24 + $0x40] sm:$0xff]
        %v2360 = vld [vmem:[%s24 + $0x48] sm:$0xff]
        %v2361 = vld [vmem:[%s24 + $0x50] sm:$0xff]
        %v2362 = vld [vmem:[%s24 + $0x58] sm:$0xff]
        %v2363 = vld [vmem:[%s24 + $0x60] sm:$0xff]
        %v2364 = vld [vmem:[%s24 + $0x68] sm:$0xff]
        %v2365 = vld [vmem:[%s24 + $0x70] sm:$0xff]
        %v2366 = vld [vmem:[%s24 + $0x78] sm:$0xff]
        %v2367 = vld [vmem:[%s25] sm:$0x1]
        %v2369 = vperm.slane %v2367, 0
        %2371 = vmatpush.msra.mxu0 %v2366
        %2372 = vmatpush.msra.mxu0 %v2365
        %2373 = vmatpush.msra.mxu0 %v2364
        %2374 = vmatpush.msra.mxu0 %v2363
        %2375 = vmatpush.msra.mxu0 %v2362
        %2376 = vmatpush.msra.mxu0 %v2361
        %2377 = vmatpush.msra.mxu0 %v2360
        %2378 = vmatpush.msra.mxu0 %v2359
        %2379 = vmatpush.msra.mxu0 %v2358
        %2380 = vmatpush.msra.mxu0 %v2357
        %2381 = vmatpush.msra.mxu0 %v2356
        %2382 = vmatpush.msra.mxu0 %v2355
        %2383 = vmatpush.msra.mxu0 %v2354
        %2384 = vmatpush.msra.mxu0 %v2353
        %2385 = vmatpush.msra.mxu0 %v2352
        %2386 = vmatpush.msra.mxu0 %v2351
        %2387 = vmatmul.f32.gmra.mxu0 %v2348
        %v2388 = vpop.f32.mrf.mxu0
        %v2389 = vadd.f32 %v2369, %v2388
        %2390 = vmatmul.f32.gmra.mxu0 %v2349
        %v2391 = vpop.f32.mrf.mxu0
        %v2392 = vadd.f32 %v2369, %v2391
        %2393 = vmatmul.f32.gmra.mxu0 %v2350
        %v2394 = vpop.f32.mrf.mxu0
        %v2395 = vadd.f32 %v2369, %v2394
        %2396 = vdwg.mxu0
        %v2397 = vadd.f32 %v2162, %v2389
        %v2398 = vadd.f32 %v2163, %v2392
        %v2399 = vadd.f32 %v2164, %v2395
        %s2400 = scalar_lea.vmem %s10, 1
        %v2401 = vld [vmem:[%s2400] sm:$0x1]
        %s2402 = scalar_lea.vmem %s11, 1
        %v2403 = vld [vmem:[%s2402] sm:$0x1]
        %v2404 = vsel %vm924, %v2397, 0.0
        %2405 = vadd.xlane.f32.xlu0 %v2404
        %v2406 = vpop.xlane.xlu0 %2405
        %v2407 = vsel %vm924, %v2398, 0.0
        %2408 = vadd.xlane.f32.xlu0 %v2407
        %v2409 = vpop.xlane.xlu0 %2408
        %v2410 = vsel %vm931, %v2399, 0.0
        %2411 = vadd.xlane.f32.xlu0 %v2410
        %v2412 = vpop.xlane.xlu0 %2411
        %v2413 = vmul.f32 %v2406, %v941
        %v2414 = vmul.f32 %v2409, %v941
        %v2415 = vmul.f32 %v2412, %v941
        %v2416 = vsub.f32 %v2397, %v2413
        %v2417 = vsub.f32 %v2398, %v2414
        %v2418 = vsub.f32 %v2399, %v2415
        %v2419 = vmul.f32 %v2416, %v2416
        %v2420 = vmul.f32 %v2417, %v2417
        %v2421 = vmul.f32 %v2418, %v2418
        %v2422 = vsel %vm924, %v2419, 0.0
        %2423 = vadd.xlane.f32.xlu0 %v2422
        %v2424 = vpop.xlane.xlu0 %2423
        %v2425 = vsel %vm924, %v2420, 0.0
        %2426 = vadd.xlane.f32.xlu0 %v2425
        %v2427 = vpop.xlane.xlu0 %2426
        %v2428 = vsel %vm931, %v2421, 0.0
        %2429 = vadd.xlane.f32.xlu0 %v2428
        %v2430 = vpop.xlane.xlu0 %2429
        %v2431 = vmul.f32 %v2424, %v941
        %v2432 = vmul.f32 %v2427, %v941
        %v2433 = vmul.f32 %v2430, %v941
        %v2434 = vadd.f32 %v2431, 1e-05
        %v2435 = vadd.f32 %v2432, 1e-05
        %v2436 = vadd.f32 %v2433, 1e-05
        %v2437 = vrsqrt.pop %v2434
        %v2438 = vmul.f32 %v2437, %v2434
        %v2439 = vmul.f32 %v2438, %v2437
        %v2440 = vmul.f32 0.5, %v2439
        %v2441 = vsub.f32 1.5, %v2440
        %v2442 = vmul.f32 %v2437, %v2441
        %vm2443 = vweird.f32 %v2434
        %vm2444 = vweird.f32 %v2437
        %vm2445 = vmor %vm2443, %vm2444
        %v2446 = vsel %vm2445, %v2437, %v2442
        %v2447 = vrsqrt.pop %v2435
        %v2448 = vmul.f32 %v2447, %v2435
        %v2449 = vmul.f32 %v2448, %v2447
        %v2450 = vmul.f32 0.5, %v2449
        %v2451 = vsub.f32 1.5, %v2450
        %v2452 = vmul.f32 %v2447, %v2451
        %vm2453 = vweird.f32 %v2435
        %vm2454 = vweird.f32 %v2447
        %vm2455 = vmor %vm2453, %vm2454
        %v2456 = vsel %vm2455, %v2447, %v2452
        %v2457 = vrsqrt.pop %v2436
        %v2458 = vmul.f32 %v2457, %v2436
        %v2459 = vmul.f32 %v2458, %v2457
        %v2460 = vmul.f32 0.5, %v2459
        %v2461 = vsub.f32 1.5, %v2460
        %v2462 = vmul.f32 %v2457, %v2461
        %vm2463 = vweird.f32 %v2436
        %vm2464 = vweird.f32 %v2457
        %vm2465 = vmor %vm2463, %vm2464
        %v2466 = vsel %vm2465, %v2457, %v2462
        %v2467 = vmul.f32 %v2416, %v2446
        %v2468 = vmul.f32 %v2417, %v2456
        %v2469 = vmul.f32 %v2418, %v2466
        %v2471 = vperm.slane %v2401, 0
        %v2473 = vmul.f32 %v2467, %v2471
        %v2474 = vmul.f32 %v2468, %v2471
        %v2475 = vmul.f32 %v2469, %v2471
        %v2477 = vperm.slane %v2403, 0
        %v2479 = vadd.f32 %v2473, %v2477
        %v2480 = vadd.f32 %v2474, %v2477
        %v2481 = vadd.f32 %v2475, %v2477
        %s2482 = scalar_lea.vmem %s12, 128
        %v2483 = vld [vmem:[%s2482] sm:$0xff]
        %v2484 = vld [vmem:[%s2482 + $0x8] sm:$0xff]
        %v2485 = vld [vmem:[%s2482 + $0x10] sm:$0xff]
        %v2486 = vld [vmem:[%s2482 + $0x18] sm:$0xff]
        %s2487 = scalar_lea.vmem %s15, 4
        %v2488 = vld [vmem:[%s2487] sm:$0x1]
        %v2490 = vperm.slane %v2488, 0
        %v2493 = vsel %vm924, %v2479, 0
        %v2496 = vsel %vm924, %v2480, 0
        %v2499 = vsel %vm924, %v2481, 0
        %2501 = vmatpush.msra.mxu0 0.0
        %2502 = vmatpush.msra.mxu0 0.0
        %2503 = vmatpush.msra.mxu0 0.0
        %2504 = vmatpush.msra.mxu0 0.0
        %2505 = vmatpush.msra.mxu0 0.0
        %2506 = vmatpush.msra.mxu0 0.0
        %2507 = vmatpush.msra.mxu0 0.0
        %2508 = vmatpush.msra.mxu0 0.0
        %2509 = vmatpush.msra.mxu0 0.0
        %2510 = vmatpush.msra.mxu0 0.0
        %2511 = vmatpush.msra.mxu0 0.0
        %2512 = vmatpush.msra.mxu0 0.0
        %2513 = vmatpush.msra.mxu0 %v2486
        %2514 = vmatpush.msra.mxu0 %v2485
        %2515 = vmatpush.msra.mxu0 %v2484
        %2516 = vmatpush.msra.mxu0 %v2483
        %2517 = vmatmul.f32.gmra.mxu0 %v2493
        %v2518 = vpop.f32.mrf.mxu0
        %v2519 = vadd.f32 %v2490, %v2518
        %2520 = vmatmul.f32.gmra.mxu0 %v2496
        %v2521 = vpop.f32.mrf.mxu0
        %v2522 = vadd.f32 %v2490, %v2521
        %2523 = vmatmul.f32.gmra.mxu0 %v2499
        %v2524 = vpop.f32.mrf.mxu0
        %v2525 = vadd.f32 %v2490, %v2524
        %2526 = vdwg.mxu0
        %s2527 = scalar_lea.vmem %s13, 128
        %v2528 = vld [vmem:[%s2527] sm:$0xff]
        %v2529 = vld [vmem:[%s2527 + $0x8] sm:$0xff]
        %v2530 = vld [vmem:[%s2527 + $0x10] sm:$0xff]
        %v2531 = vld [vmem:[%s2527 + $0x18] sm:$0xff]
        %s2532 = scalar_lea.vmem %s16, 4
        %v2533 = vld [vmem:[%s2532] sm:$0x1]
        %v2535 = vperm.slane %v2533, 0
        %2537 = vmatpush.msra.mxu0 0.0
        %2538 = vmatpush.msra.mxu0 0.0
        %2539 = vmatpush.msra.mxu0 0.0
        %2540 = vmatpush.msra.mxu0 0.0
        %2541 = vmatpush.msra.mxu0 0.0
        %2542 = vmatpush.msra.mxu0 0.0
        %2543 = vmatpush.msra.mxu0 0.0
        %2544 = vmatpush.msra.mxu0 0.0
        %2545 = vmatpush.msra.mxu0 0.0
        %2546 = vmatpush.msra.mxu0 0.0
        %2547 = vmatpush.msra.mxu0 0.0
        %2548 = vmatpush.msra.mxu0 0.0
        %2549 = vmatpush.msra.mxu0 %v2531
        %2550 = vmatpush.msra.mxu0 %v2530
        %2551 = vmatpush.msra.mxu0 %v2529
        %2552 = vmatpush.msra.mxu0 %v2528
        %2553 = vmatmul.f32.gmra.mxu0 %v2493
        %v2554 = vpop.f32.mrf.mxu0
        %v2555 = vadd.f32 %v2535, %v2554
        %2556 = vmatmul.f32.gmra.mxu0 %v2496
        %v2557 = vpop.f32.mrf.mxu0
        %v2558 = vadd.f32 %v2535, %v2557
        %2559 = vmatmul.f32.gmra.mxu0 %v2499
        %v2560 = vpop.f32.mrf.mxu0
        %v2561 = vadd.f32 %v2535, %v2560
        %2562 = vdwg.mxu0
        %s2563 = scalar_lea.vmem %s14, 128
        %v2564 = vld [vmem:[%s2563] sm:$0xff]
        %v2565 = vld [vmem:[%s2563 + $0x8] sm:$0xff]
        %v2566 = vld [vmem:[%s2563 + $0x10] sm:$0xff]
        %v2567 = vld [vmem:[%s2563 + $0x18] sm:$0xff]
        %s2568 = scalar_lea.vmem %s17, 4
        %v2569 = vld [vmem:[%s2568] sm:$0x1]
        %v2571 = vperm.slane %v2569, 0
        %2573 = vmatpush.msra.mxu0 0.0
        %2574 = vmatpush.msra.mxu0 0.0
        %2575 = vmatpush.msra.mxu0 0.0
        %2576 = vmatpush.msra.mxu0 0.0
        %2577 = vmatpush.msra.mxu0 0.0
        %2578 = vmatpush.msra.mxu0 0.0
        %2579 = vmatpush.msra.mxu0 0.0
        %2580 = vmatpush.msra.mxu0 0.0
        %2581 = vmatpush.msra.mxu0 0.0
        %2582 = vmatpush.msra.mxu0 0.0
        %2583 = vmatpush.msra.mxu0 0.0
        %2584 = vmatpush.msra.mxu0 0.0
        %2585 = vmatpush.msra.mxu0 %v2567
        %2586 = vmatpush.msra.mxu0 %v2566
        %2587 = vmatpush.msra.mxu0 %v2565
        %2588 = vmatpush.msra.mxu0 %v2564
        %2589 = vmatmul.f32.gmra.mxu0 %v2493
        %v2590 = vpop.f32.mrf.mxu0
        %v2591 = vadd.f32 %v2571, %v2590
        %2592 = vmatmul.f32.gmra.mxu0 %v2496
        %v2593 = vpop.f32.mrf.mxu0
        %v2594 = vadd.f32 %v2571, %v2593
        %2595 = vmatmul.f32.gmra.mxu0 %v2499
        %v2596 = vpop.f32.mrf.mxu0
        %v2597 = vadd.f32 %v2571, %v2596
        %2598 = vdwg.mxu0
        %v2600 = vsel %vm1202, %v2519, 0
        %v2603 = vsel %vm1202, %v2522, 0
        %v2606 = vsel %vm1202, %v2525, 0
        %v2609 = vsel %vm1202, %v2555, 0
        %v2612 = vsel %vm1202, %v2558, 0
        %v2615 = vsel %vm1202, %v2561, 0
        %2617 = vmatpush.xpose.msra.mxu0 0.0
        %2618 = vmatpush.xpose.msra.mxu0 0.0
        %2619 = vmatpush.xpose.msra.mxu0 0.0
        %2620 = vmatpush.xpose.msra.mxu0 0.0
        %2621 = vmatpush.xpose.msra.mxu0 0.0
        %2622 = vmatpush.xpose.msra.mxu0 0.0
        %2623 = vmatpush.xpose.msra.mxu0 0.0
        %2624 = vmatpush.xpose.msra.mxu0 0.0
        %2625 = vmatpush.xpose.msra.mxu0 0.0
        %2626 = vmatpush.xpose.msra.mxu0 0.0
        %2627 = vmatpush.xpose.msra.mxu0 0.0
        %2628 = vmatpush.xpose.msra.mxu0 0.0
        %2629 = vmatpush.xpose.msra.mxu0 0.0
        %2630 = vmatpush.xpose.msra.mxu0 %v2615
        %2631 = vmatpush.xpose.msra.mxu0 %v2612
        %2632 = vmatpush.xpose.msra.mxu0 %v2609
        %2633 = vmatmul.f32.gmra.mxu0 %v2600
        %v2634 = vpop.f32.mrf.mxu0
        %v2635 = vadd.f32 0.0, %v2634
        %2636 = vmatmul.f32.gmra.mxu0 %v2603
        %v2637 = vpop.f32.mrf.mxu0
        %v2638 = vadd.f32 0.0, %v2637
        %2639 = vmatmul.f32.gmra.mxu0 %v2606
        %v2640 = vpop.f32.mrf.mxu0
        %v2641 = vadd.f32 0.0, %v2640
        %2642 = vdwg.mxu0
        %v2643 = vmul.f32 %v2635, 0.35355338
        %v2644 = vmul.f32 %v2638, 0.35355338
        %v2645 = vmul.f32 %v2641, 0.35355338
        %v2646 = vsel %vm1250, %v2643, -inf
        %2647 = vmax.xlane.f32.xlu0 %v2646
        %v2648 = vpop.xlane.xlu0 %2647
        %v2649 = vsel %vm1250, %v2644, -inf
        %2650 = vmax.xlane.f32.xlu0 %v2649
        %v2651 = vpop.xlane.xlu0 %2650
        %v2652 = vsel %vm1257, %v2645, -inf
        %2653 = vmax.xlane.f32.xlu0 %v2652
        %v2654 = vpop.xlane.xlu0 %2653
        %v2655 = vsub.f32 %v2643, %v2648
        %v2656 = vsub.f32 %v2644, %v2651
        %v2657 = vsub.f32 %v2645, %v2654
        %v2658 = vmul.f32 %v2655, 1.442695
        %v2659 = vpow.pop %v2658
        %v2660 = vmul.f32 %v2656, 1.442695
        %v2661 = vpow.pop %v2660
        %v2662 = vmul.f32 %v2657, 1.442695
        %v2663 = vpow.pop %v2662
        %v2664 = vsel %vm1250, %v2659, 0.0
        %2665 = vadd.xlane.f32.xlu0 %v2664
        %v2666 = vpop.xlane.xlu0 %2665
        %v2667 = vsel %vm1250, %v2661, 0.0
        %2668 = vadd.xlane.f32.xlu0 %v2667
        %v2669 = vpop.xlane.xlu0 %2668
        %v2670 = vsel %vm1257, %v2663, 0.0
        %2671 = vadd.xlane.f32.xlu0 %v2670
        %v2672 = vpop.xlane.xlu0 %2671
        %v2673 = vrcp.pop %v2666
        %v2674 = vrcp.pop %v2669
        %v2675 = vrcp.pop %v2672
        %v2676 = vmul.f32 %v2659, %v2673
        %v2677 = vmul.f32 %v2661, %v2674
        %v2678 = vmul.f32 %v2663, %v2675
        %v2680 = vsel %vm1250, %v2676, 0
        %v2683 = vsel %vm1250, %v2677, 0
        %v2686 = vsel %vm1250, %v2678, 0
        %v2689 = vsel %vm1294, %v2597, 0
        %2691 = vmatpush.msra.mxu0 0.0
        %2692 = vmatpush.msra.mxu0 0.0
        %2693 = vmatpush.msra.mxu0 0.0
        %2694 = vmatpush.msra.mxu0 0.0
        %2695 = vmatpush.msra.mxu0 0.0
        %2696 = vmatpush.msra.mxu0 0.0
        %2697 = vmatpush.msra.mxu0 0.0
        %2698 = vmatpush.msra.mxu0 0.0
        %2699 = vmatpush.msra.mxu0 0.0
        %2700 = vmatpush.msra.mxu0 0.0
        %2701 = vmatpush.msra.mxu0 0.0
        %2702 = vmatpush.msra.mxu0 0.0
        %2703 = vmatpush.msra.mxu0 0.0
        %2704 = vmatpush.msra.mxu0 %v2689
        %2705 = vmatpush.msra.mxu0 %v2594
        %2706 = vmatpush.msra.mxu0 %v2591
        %2707 = vmatmul.f32.gmra.mxu0 %v2680
        %v2708 = vpop.f32.mrf.mxu0
        %v2709 = vadd.f32 0.0, %v2708
        %2710 = vmatmul.f32.gmra.mxu0 %v2683
        %v2711 = vpop.f32.mrf.mxu0
        %v2712 = vadd.f32 0.0, %v2711
        %2713 = vmatmul.f32.gmra.mxu0 %v2686
        %v2714 = vpop.f32.mrf.mxu0
        %v2715 = vadd.f32 0.0, %v2714
        %2716 = vdwg.mxu0
        %s2717 = scalar_lea.vmem %s18, 32
        %v2718 = vld [vmem:[%s2717] sm:$0xff]
        %s2719 = scalar_lea.vmem %s12, 160
        %v2720 = vld [vmem:[%s2719] sm:$0xff]
        %v2721 = vld [vmem:[%s2719 + $0x8] sm:$0xff]
        %v2722 = vld [vmem:[%s2719 + $0x10] sm:$0xff]
        %v2723 = vld [vmem:[%s2719 + $0x18] sm:$0xff]
        %s2724 = scalar_lea.vmem %s15, 5
        %v2725 = vld [vmem:[%s2724] sm:$0x1]
        %v2727 = vperm.slane %v2725, 0
        %2729 = vmatpush.msra.mxu0 0.0
        %2730 = vmatpush.msra.mxu0 0.0
        %2731 = vmatpush.msra.mxu0 0.0
        %2732 = vmatpush.msra.mxu0 0.0
        %2733 = vmatpush.msra.mxu0 0.0
        %2734 = vmatpush.msra.mxu0 0.0
        %2735 = vmatpush.msra.mxu0 0.0
        %2736 = vmatpush.msra.mxu0 0.0
        %2737 = vmatpush.msra.mxu0 0.0
        %2738 = vmatpush.msra.mxu0 0.0
        %2739 = vmatpush.msra.mxu0 0.0
        %2740 = vmatpush.msra.mxu0 0.0
        %2741 = vmatpush.msra.mxu0 %v2723
        %2742 = vmatpush.msra.mxu0 %v2722
        %2743 = vmatpush.msra.mxu0 %v2721
        %2744 = vmatpush.msra.mxu0 %v2720
        %2745 = vmatmul.f32.gmra.mxu0 %v2493
        %v2746 = vpop.f32.mrf.mxu0
        %v2747 = vadd.f32 %v2727, %v2746
        %2748 = vmatmul.f32.gmra.mxu0 %v2496
        %v2749 = vpop.f32.mrf.mxu0
        %v2750 = vadd.f32 %v2727, %v2749
        %2751 = vmatmul.f32.gmra.mxu0 %v2499
        %v2752 = vpop.f32.mrf.mxu0
        %v2753 = vadd.f32 %v2727, %v2752
        %2754 = vdwg.mxu0
        %s2755 = scalar_lea.vmem %s13, 160
        %v2756 = vld [vmem:[%s2755] sm:$0xff]
        %v2757 = vld [vmem:[%s2755 + $0x8] sm:$0xff]
        %v2758 = vld [vmem:[%s2755 + $0x10] sm:$0xff]
        %v2759 = vld [vmem:[%s2755 + $0x18] sm:$0xff]
        %s2760 = scalar_lea.vmem %s16, 5
        %v2761 = vld [vmem:[%s2760] sm:$0x1]
        %v2763 = vperm.slane %v2761, 0
        %2765 = vmatpush.msra.mxu0 0.0
        %2766 = vmatpush.msra.mxu0 0.0
        %2767 = vmatpush.msra.mxu0 0.0
        %2768 = vmatpush.msra.mxu0 0.0
        %2769 = vmatpush.msra.mxu0 0.0
        %2770 = vmatpush.msra.mxu0 0.0
        %2771 = vmatpush.msra.mxu0 0.0
        %2772 = vmatpush.msra.mxu0 0.0
        %2773 = vmatpush.msra.mxu0 0.0
        %2774 = vmatpush.msra.mxu0 0.0
        %2775 = vmatpush.msra.mxu0 0.0
        %2776 = vmatpush.msra.mxu0 0.0
        %2777 = vmatpush.msra.mxu0 %v2759
        %2778 = vmatpush.msra.mxu0 %v2758
        %2779 = vmatpush.msra.mxu0 %v2757
        %2780 = vmatpush.msra.mxu0 %v2756
        %2781 = vmatmul.f32.gmra.mxu0 %v2493
        %v2782 = vpop.f32.mrf.mxu0
        %v2783 = vadd.f32 %v2763, %v2782
        %2784 = vmatmul.f32.gmra.mxu0 %v2496
        %v2785 = vpop.f32.mrf.mxu0
        %v2786 = vadd.f32 %v2763, %v2785
        %2787 = vmatmul.f32.gmra.mxu0 %v2499
        %v2788 = vpop.f32.mrf.mxu0
        %v2789 = vadd.f32 %v2763, %v2788
        %2790 = vdwg.mxu0
        %s2791 = scalar_lea.vmem %s14, 160
        %v2792 = vld [vmem:[%s2791] sm:$0xff]
        %v2793 = vld [vmem:[%s2791 + $0x8] sm:$0xff]
        %v2794 = vld [vmem:[%s2791 + $0x10] sm:$0xff]
        %v2795 = vld [vmem:[%s2791 + $0x18] sm:$0xff]
        %s2796 = scalar_lea.vmem %s17, 5
        %v2797 = vld [vmem:[%s2796] sm:$0x1]
        %v2799 = vperm.slane %v2797, 0
        %2801 = vmatpush.msra.mxu0 0.0
        %2802 = vmatpush.msra.mxu0 0.0
        %2803 = vmatpush.msra.mxu0 0.0
        %2804 = vmatpush.msra.mxu0 0.0
        %2805 = vmatpush.msra.mxu0 0.0
        %2806 = vmatpush.msra.mxu0 0.0
        %2807 = vmatpush.msra.mxu0 0.0
        %2808 = vmatpush.msra.mxu0 0.0
        %2809 = vmatpush.msra.mxu0 0.0
        %2810 = vmatpush.msra.mxu0 0.0
        %2811 = vmatpush.msra.mxu0 0.0
        %2812 = vmatpush.msra.mxu0 0.0
        %2813 = vmatpush.msra.mxu0 %v2795
        %2814 = vmatpush.msra.mxu0 %v2794
        %2815 = vmatpush.msra.mxu0 %v2793
        %2816 = vmatpush.msra.mxu0 %v2792
        %2817 = vmatmul.f32.gmra.mxu0 %v2493
        %v2818 = vpop.f32.mrf.mxu0
        %v2819 = vadd.f32 %v2799, %v2818
        %2820 = vmatmul.f32.gmra.mxu0 %v2496
        %v2821 = vpop.f32.mrf.mxu0
        %v2822 = vadd.f32 %v2799, %v2821
        %2823 = vmatmul.f32.gmra.mxu0 %v2499
        %v2824 = vpop.f32.mrf.mxu0
        %v2825 = vadd.f32 %v2799, %v2824
        %2826 = vdwg.mxu0
        %v2828 = vsel %vm1202, %v2747, 0
        %v2831 = vsel %vm1202, %v2750, 0
        %v2834 = vsel %vm1202, %v2753, 0
        %v2837 = vsel %vm1202, %v2783, 0
        %v2840 = vsel %vm1202, %v2786, 0
        %v2843 = vsel %vm1202, %v2789, 0
        %2845 = vmatpush.xpose.msra.mxu0 0.0
        %2846 = vmatpush.xpose.msra.mxu0 0.0
        %2847 = vmatpush.xpose.msra.mxu0 0.0
        %2848 = vmatpush.xpose.msra.mxu0 0.0
        %2849 = vmatpush.xpose.msra.mxu0 0.0
        %2850 = vmatpush.xpose.msra.mxu0 0.0
        %2851 = vmatpush.xpose.msra.mxu0 0.0
        %2852 = vmatpush.xpose.msra.mxu0 0.0
        %2853 = vmatpush.xpose.msra.mxu0 0.0
        %2854 = vmatpush.xpose.msra.mxu0 0.0
        %2855 = vmatpush.xpose.msra.mxu0 0.0
        %2856 = vmatpush.xpose.msra.mxu0 0.0
        %2857 = vmatpush.xpose.msra.mxu0 0.0
        %2858 = vmatpush.xpose.msra.mxu0 %v2843
        %2859 = vmatpush.xpose.msra.mxu0 %v2840
        %2860 = vmatpush.xpose.msra.mxu0 %v2837
        %2861 = vmatmul.f32.gmra.mxu0 %v2828
        %v2862 = vpop.f32.mrf.mxu0
        %v2863 = vadd.f32 0.0, %v2862
        %2864 = vmatmul.f32.gmra.mxu0 %v2831
        %v2865 = vpop.f32.mrf.mxu0
        %v2866 = vadd.f32 0.0, %v2865
        %2867 = vmatmul.f32.gmra.mxu0 %v2834
        %v2868 = vpop.f32.mrf.mxu0
        %v2869 = vadd.f32 0.0, %v2868
        %2870 = vdwg.mxu0
        %v2871 = vmul.f32 %v2863, 0.35355338
        %v2872 = vmul.f32 %v2866, 0.35355338
        %v2873 = vmul.f32 %v2869, 0.35355338
        %v2874 = vsel %vm1250, %v2871, -inf
        %2875 = vmax.xlane.f32.xlu0 %v2874
        %v2876 = vpop.xlane.xlu0 %2875
        %v2877 = vsel %vm1250, %v2872, -inf
        %2878 = vmax.xlane.f32.xlu0 %v2877
        %v2879 = vpop.xlane.xlu0 %2878
        %v2880 = vsel %vm1257, %v2873, -inf
        %2881 = vmax.xlane.f32.xlu0 %v2880
        %v2882 = vpop.xlane.xlu0 %2881
        %v2883 = vsub.f32 %v2871, %v2876
        %v2884 = vsub.f32 %v2872, %v2879
        %v2885 = vsub.f32 %v2873, %v2882
        %v2886 = vmul.f32 %v2883, 1.442695
        %v2887 = vpow.pop %v2886
        %v2888 = vmul.f32 %v2884, 1.442695
        %v2889 = vpow.pop %v2888
        %v2890 = vmul.f32 %v2885, 1.442695
        %v2891 = vpow.pop %v2890
        %v2892 = vsel %vm1250, %v2887, 0.0
        %2893 = vadd.xlane.f32.xlu0 %v2892
        %v2894 = vpop.xlane.xlu0 %2893
        %v2895 = vsel %vm1250, %v2889, 0.0
        %2896 = vadd.xlane.f32.xlu0 %v2895
        %v2897 = vpop.xlane.xlu0 %2896
        %v2898 = vsel %vm1257, %v2891, 0.0
        %2899 = vadd.xlane.f32.xlu0 %v2898
        %v2900 = vpop.xlane.xlu0 %2899
        %v2901 = vrcp.pop %v2894
        %v2902 = vrcp.pop %v2897
        %v2903 = vrcp.pop %v2900
        %v2904 = vmul.f32 %v2887, %v2901
        %v2905 = vmul.f32 %v2889, %v2902
        %v2906 = vmul.f32 %v2891, %v2903
        %v2908 = vsel %vm1250, %v2904, 0
        %v2911 = vsel %vm1250, %v2905, 0
        %v2914 = vsel %vm1250, %v2906, 0
        %v2917 = vsel %vm1294, %v2825, 0
        %2919 = vmatpush.msra.mxu0 0.0
        %2920 = vmatpush.msra.mxu0 0.0
        %2921 = vmatpush.msra.mxu0 0.0
        %2922 = vmatpush.msra.mxu0 0.0
        %2923 = vmatpush.msra.mxu0 0.0
        %2924 = vmatpush.msra.mxu0 0.0
        %2925 = vmatpush.msra.mxu0 0.0
        %2926 = vmatpush.msra.mxu0 0.0
        %2927 = vmatpush.msra.mxu0 0.0
        %2928 = vmatpush.msra.mxu0 0.0
        %2929 = vmatpush.msra.mxu0 0.0
        %2930 = vmatpush.msra.mxu0 0.0
        %2931 = vmatpush.msra.mxu0 0.0
        %2932 = vmatpush.msra.mxu0 %v2917
        %2933 = vmatpush.msra.mxu0 %v2822
        %2934 = vmatpush.msra.mxu0 %v2819
        %2935 = vmatmul.f32.gmra.mxu0 %v2908
        %v2936 = vpop.f32.mrf.mxu0
        %v2937 = vadd.f32 0.0, %v2936
        %2938 = vmatmul.f32.gmra.mxu0 %v2911
        %v2939 = vpop.f32.mrf.mxu0
        %v2940 = vadd.f32 0.0, %v2939
        %2941 = vmatmul.f32.gmra.mxu0 %v2914
        %v2942 = vpop.f32.mrf.mxu0
        %v2943 = vadd.f32 0.0, %v2942
        %2944 = vdwg.mxu0
        %s2945 = scalar_lea.vmem %s18, 40
        %v2946 = vld [vmem:[%s2945] sm:$0xff]
        %v2948 = vsel %vm1202, %v2937, 0
        %v2951 = vsel %vm1202, %v2940, 0
        %v2954 = vsel %vm1202, %v2943, 0
        %2956 = vmatpush.msra.mxu0 0.0
        %2957 = vmatpush.msra.mxu0 0.0
        %2958 = vmatpush.msra.mxu0 0.0
        %2959 = vmatpush.msra.mxu0 0.0
        %2960 = vmatpush.msra.mxu0 0.0
        %2961 = vmatpush.msra.mxu0 0.0
        %2962 = vmatpush.msra.mxu0 0.0
        %2963 = vmatpush.msra.mxu0 0.0
        %2964 = vmatpush.msra.mxu0 0.0
        %2965 = vmatpush.msra.mxu0 0.0
        %2966 = vmatpush.msra.mxu0 0.0
        %2967 = vmatpush.msra.mxu0 0.0
        %2968 = vmatpush.msra.mxu0 0.0
        %2969 = vmatpush.msra.mxu0 0.0
        %2970 = vmatpush.msra.mxu0 0.0
        %2971 = vmatpush.msra.mxu0 %v2946
        %2972 = vmatmul.f32.gmra.mxu0 %v2948
        %v2973 = vpop.f32.mrf.mxu0
        %v2974 = vadd.f32 0.0, %v2973
        %2975 = vmatmul.f32.gmra.mxu0 %v2951
        %v2976 = vpop.f32.mrf.mxu0
        %v2977 = vadd.f32 0.0, %v2976
        %2978 = vmatmul.f32.gmra.mxu0 %v2954
        %v2979 = vpop.f32.mrf.mxu0
        %v2980 = vadd.f32 0.0, %v2979
        %2981 = vdwg.mxu0
        %v2983 = vsel %vm1202, %v2709, 0
        %v2986 = vsel %vm1202, %v2712, 0
        %v2989 = vsel %vm1202, %v2715, 0
        %2991 = vmatpush.msra.mxu0 0.0
        %2992 = vmatpush.msra.mxu0 0.0
        %2993 = vmatpush.msra.mxu0 0.0
        %2994 = vmatpush.msra.mxu0 0.0
        %2995 = vmatpush.msra.mxu0 0.0
        %2996 = vmatpush.msra.mxu0 0.0
        %2997 = vmatpush.msra.mxu0 0.0
        %2998 = vmatpush.msra.mxu0 0.0
        %2999 = vmatpush.msra.mxu0 0.0
        %3000 = vmatpush.msra.mxu0 0.0
        %3001 = vmatpush.msra.mxu0 0.0
        %3002 = vmatpush.msra.mxu0 0.0
        %3003 = vmatpush.msra.mxu0 0.0
        %3004 = vmatpush.msra.mxu0 0.0
        %3005 = vmatpush.msra.mxu0 0.0
        %3006 = vmatpush.msra.mxu0 %v2718
        %3007 = vmatmul.f32.gmra.mxu0 %v2983
        %v3008 = vpop.f32.mrf.mxu0
        %v3009 = vadd.f32 %v2974, %v3008
        %3010 = vmatmul.f32.gmra.mxu0 %v2986
        %v3011 = vpop.f32.mrf.mxu0
        %v3012 = vadd.f32 %v2977, %v3011
        %3013 = vmatmul.f32.gmra.mxu0 %v2989
        %v3014 = vpop.f32.mrf.mxu0
        %v3015 = vadd.f32 %v2980, %v3014
        %3016 = vdwg.mxu0
        %s3017 = scalar_lea.vmem %s12, 192
        %v3018 = vld [vmem:[%s3017] sm:$0xff]
        %v3019 = vld [vmem:[%s3017 + $0x8] sm:$0xff]
        %v3020 = vld [vmem:[%s3017 + $0x10] sm:$0xff]
        %v3021 = vld [vmem:[%s3017 + $0x18] sm:$0xff]
        %s3022 = scalar_lea.vmem %s15, 6
        %v3023 = vld [vmem:[%s3022] sm:$0x1]
        %v3025 = vperm.slane %v3023, 0
        %3027 = vmatpush.msra.mxu0 0.0
        %3028 = vmatpush.msra.mxu0 0.0
        %3029 = vmatpush.msra.mxu0 0.0
        %3030 = vmatpush.msra.mxu0 0.0
        %3031 = vmatpush.msra.mxu0 0.0
        %3032 = vmatpush.msra.mxu0 0.0
        %3033 = vmatpush.msra.mxu0 0.0
        %3034 = vmatpush.msra.mxu0 0.0
        %3035 = vmatpush.msra.mxu0 0.0
        %3036 = vmatpush.msra.mxu0 0.0
        %3037 = vmatpush.msra.mxu0 0.0
        %3038 = vmatpush.msra.mxu0 0.0
        %3039 = vmatpush.msra.mxu0 %v3021
        %3040 = vmatpush.msra.mxu0 %v3020
        %3041 = vmatpush.msra.mxu0 %v3019
        %3042 = vmatpush.msra.mxu0 %v3018
        %3043 = vmatmul.f32.gmra.mxu0 %v2493
        %v3044 = vpop.f32.mrf.mxu0
        %v3045 = vadd.f32 %v3025, %v3044
        %3046 = vmatmul.f32.gmra.mxu0 %v2496
        %v3047 = vpop.f32.mrf.mxu0
        %v3048 = vadd.f32 %v3025, %v3047
        %3049 = vmatmul.f32.gmra.mxu0 %v2499
        %v3050 = vpop.f32.mrf.mxu0
        %v3051 = vadd.f32 %v3025, %v3050
        %3052 = vdwg.mxu0
        %s3053 = scalar_lea.vmem %s13, 192
        %v3054 = vld [vmem:[%s3053] sm:$0xff]
        %v3055 = vld [vmem:[%s3053 + $0x8] sm:$0xff]
        %v3056 = vld [vmem:[%s3053 + $0x10] sm:$0xff]
        %v3057 = vld [vmem:[%s3053 + $0x18] sm:$0xff]
        %s3058 = scalar_lea.vmem %s16, 6
        %v3059 = vld [vmem:[%s3058] sm:$0x1]
        %v3061 = vperm.slane %v3059, 0
        %3063 = vmatpush.msra.mxu0 0.0
        %3064 = vmatpush.msra.mxu0 0.0
        %3065 = vmatpush.msra.mxu0 0.0
        %3066 = vmatpush.msra.mxu0 0.0
        %3067 = vmatpush.msra.mxu0 0.0
        %3068 = vmatpush.msra.mxu0 0.0
        %3069 = vmatpush.msra.mxu0 0.0
        %3070 = vmatpush.msra.mxu0 0.0
        %3071 = vmatpush.msra.mxu0 0.0
        %3072 = vmatpush.msra.mxu0 0.0
        %3073 = vmatpush.msra.mxu0 0.0
        %3074 = vmatpush.msra.mxu0 0.0
        %3075 = vmatpush.msra.mxu0 %v3057
        %3076 = vmatpush.msra.mxu0 %v3056
        %3077 = vmatpush.msra.mxu0 %v3055
        %3078 = vmatpush.msra.mxu0 %v3054
        %3079 = vmatmul.f32.gmra.mxu0 %v2493
        %v3080 = vpop.f32.mrf.mxu0
        %v3081 = vadd.f32 %v3061, %v3080
        %3082 = vmatmul.f32.gmra.mxu0 %v2496
        %v3083 = vpop.f32.mrf.mxu0
        %v3084 = vadd.f32 %v3061, %v3083
        %3085 = vmatmul.f32.gmra.mxu0 %v2499
        %v3086 = vpop.f32.mrf.mxu0
        %v3087 = vadd.f32 %v3061, %v3086
        %3088 = vdwg.mxu0
        %s3089 = scalar_lea.vmem %s14, 192
        %v3090 = vld [vmem:[%s3089] sm:$0xff]
        %v3091 = vld [vmem:[%s3089 + $0x8] sm:$0xff]
        %v3092 = vld [vmem:[%s3089 + $0x10] sm:$0xff]
        %v3093 = vld [vmem:[%s3089 + $0x18] sm:$0xff]
        %s3094 = scalar_lea.vmem %s17, 6
        %v3095 = vld [vmem:[%s3094] sm:$0x1]
        %v3097 = vperm.slane %v3095, 0
        %3099 = vmatpush.msra.mxu0 0.0
        %3100 = vmatpush.msra.mxu0 0.0
        %3101 = vmatpush.msra.mxu0 0.0
        %3102 = vmatpush.msra.mxu0 0.0
        %3103 = vmatpush.msra.mxu0 0.0
        %3104 = vmatpush.msra.mxu0 0.0
        %3105 = vmatpush.msra.mxu0 0.0
        %3106 = vmatpush.msra.mxu0 0.0
        %3107 = vmatpush.msra.mxu0 0.0
        %3108 = vmatpush.msra.mxu0 0.0
        %3109 = vmatpush.msra.mxu0 0.0
        %3110 = vmatpush.msra.mxu0 0.0
        %3111 = vmatpush.msra.mxu0 %v3093
        %3112 = vmatpush.msra.mxu0 %v3092
        %3113 = vmatpush.msra.mxu0 %v3091
        %3114 = vmatpush.msra.mxu0 %v3090
        %3115 = vmatmul.f32.gmra.mxu0 %v2493
        %v3116 = vpop.f32.mrf.mxu0
        %v3117 = vadd.f32 %v3097, %v3116
        %3118 = vmatmul.f32.gmra.mxu0 %v2496
        %v3119 = vpop.f32.mrf.mxu0
        %v3120 = vadd.f32 %v3097, %v3119
        %3121 = vmatmul.f32.gmra.mxu0 %v2499
        %v3122 = vpop.f32.mrf.mxu0
        %v3123 = vadd.f32 %v3097, %v3122
        %3124 = vdwg.mxu0
        %v3126 = vsel %vm1202, %v3045, 0
        %v3129 = vsel %vm1202, %v3048, 0
        %v3132 = vsel %vm1202, %v3051, 0
        %v3135 = vsel %vm1202, %v3081, 0
        %v3138 = vsel %vm1202, %v3084, 0
        %v3141 = vsel %vm1202, %v3087, 0
        %3143 = vmatpush.xpose.msra.mxu0 0.0
        %3144 = vmatpush.xpose.msra.mxu0 0.0
        %3145 = vmatpush.xpose.msra.mxu0 0.0
        %3146 = vmatpush.xpose.msra.mxu0 0.0
        %3147 = vmatpush.xpose.msra.mxu0 0.0
        %3148 = vmatpush.xpose.msra.mxu0 0.0
        %3149 = vmatpush.xpose.msra.mxu0 0.0
        %3150 = vmatpush.xpose.msra.mxu0 0.0
        %3151 = vmatpush.xpose.msra.mxu0 0.0
        %3152 = vmatpush.xpose.msra.mxu0 0.0
        %3153 = vmatpush.xpose.msra.mxu0 0.0
        %3154 = vmatpush.xpose.msra.mxu0 0.0
        %3155 = vmatpush.xpose.msra.mxu0 0.0
        %3156 = vmatpush.xpose.msra.mxu0 %v3141
        %3157 = vmatpush.xpose.msra.mxu0 %v3138
        %3158 = vmatpush.xpose.msra.mxu0 %v3135
        %3159 = vmatmul.f32.gmra.mxu0 %v3126
        %v3160 = vpop.f32.mrf.mxu0
        %v3161 = vadd.f32 0.0, %v3160
        %3162 = vmatmul.f32.gmra.mxu0 %v3129
        %v3163 = vpop.f32.mrf.mxu0
        %v3164 = vadd.f32 0.0, %v3163
        %3165 = vmatmul.f32.gmra.mxu0 %v3132
        %v3166 = vpop.f32.mrf.mxu0
        %v3167 = vadd.f32 0.0, %v3166
        %3168 = vdwg.mxu0
        %v3169 = vmul.f32 %v3161, 0.35355338
        %v3170 = vmul.f32 %v3164, 0.35355338
        %v3171 = vmul.f32 %v3167, 0.35355338
        %v3172 = vsel %vm1250, %v3169, -inf
        %3173 = vmax.xlane.f32.xlu0 %v3172
        %v3174 = vpop.xlane.xlu0 %3173
        %v3175 = vsel %vm1250, %v3170, -inf
        %3176 = vmax.xlane.f32.xlu0 %v3175
        %v3177 = vpop.xlane.xlu0 %3176
        %v3178 = vsel %vm1257, %v3171, -inf
        %3179 = vmax.xlane.f32.xlu0 %v3178
        %v3180 = vpop.xlane.xlu0 %3179
        %v3181 = vsub.f32 %v3169, %v3174
        %v3182 = vsub.f32 %v3170, %v3177
        %v3183 = vsub.f32 %v3171, %v3180
        %v3184 = vmul.f32 %v3181, 1.442695
        %v3185 = vpow.pop %v3184
        %v3186 = vmul.f32 %v3182, 1.442695
        %v3187 = vpow.pop %v3186
        %v3188 = vmul.f32 %v3183, 1.442695
        %v3189 = vpow.pop %v3188
        %v3190 = vsel %vm1250, %v3185, 0.0
        %3191 = vadd.xlane.f32.xlu0 %v3190
        %v3192 = vpop.xlane.xlu0 %3191
        %v3193 = vsel %vm1250, %v3187, 0.0
        %3194 = vadd.xlane.f32.xlu0 %v3193
        %v3195 = vpop.xlane.xlu0 %3194
        %v3196 = vsel %vm1257, %v3189, 0.0
        %3197 = vadd.xlane.f32.xlu0 %v3196
        %v3198 = vpop.xlane.xlu0 %3197
        %v3199 = vrcp.pop %v3192
        %v3200 = vrcp.pop %v3195
        %v3201 = vrcp.pop %v3198
        %v3202 = vmul.f32 %v3185, %v3199
        %v3203 = vmul.f32 %v3187, %v3200
        %v3204 = vmul.f32 %v3189, %v3201
        %v3206 = vsel %vm1250, %v3202, 0
        %v3209 = vsel %vm1250, %v3203, 0
        %v3212 = vsel %vm1250, %v3204, 0
        %v3215 = vsel %vm1294, %v3123, 0
        %3217 = vmatpush.msra.mxu0 0.0
        %3218 = vmatpush.msra.mxu0 0.0
        %3219 = vmatpush.msra.mxu0 0.0
        %3220 = vmatpush.msra.mxu0 0.0
        %3221 = vmatpush.msra.mxu0 0.0
        %3222 = vmatpush.msra.mxu0 0.0
        %3223 = vmatpush.msra.mxu0 0.0
        %3224 = vmatpush.msra.mxu0 0.0
        %3225 = vmatpush.msra.mxu0 0.0
        %3226 = vmatpush.msra.mxu0 0.0
        %3227 = vmatpush.msra.mxu0 0.0
        %3228 = vmatpush.msra.mxu0 0.0
        %3229 = vmatpush.msra.mxu0 0.0
        %3230 = vmatpush.msra.mxu0 %v3215
        %3231 = vmatpush.msra.mxu0 %v3120
        %3232 = vmatpush.msra.mxu0 %v3117
        %3233 = vmatmul.f32.gmra.mxu0 %v3206
        %v3234 = vpop.f32.mrf.mxu0
        %v3235 = vadd.f32 0.0, %v3234
        %3236 = vmatmul.f32.gmra.mxu0 %v3209
        %v3237 = vpop.f32.mrf.mxu0
        %v3238 = vadd.f32 0.0, %v3237
        %3239 = vmatmul.f32.gmra.mxu0 %v3212
        %v3240 = vpop.f32.mrf.mxu0
        %v3241 = vadd.f32 0.0, %v3240
        %3242 = vdwg.mxu0
        %s3243 = scalar_lea.vmem %s18, 48
        %v3244 = vld [vmem:[%s3243] sm:$0xff]
        %v3246 = vsel %vm1202, %v3235, 0
        %v3249 = vsel %vm1202, %v3238, 0
        %v3252 = vsel %vm1202, %v3241, 0
        %3254 = vmatpush.msra.mxu0 0.0
        %3255 = vmatpush.msra.mxu0 0.0
        %3256 = vmatpush.msra.mxu0 0.0
        %3257 = vmatpush.msra.mxu0 0.0
        %3258 = vmatpush.msra.mxu0 0.0
        %3259 = vmatpush.msra.mxu0 0.0
        %3260 = vmatpush.msra.mxu0 0.0
        %3261 = vmatpush.msra.mxu0 0.0
        %3262 = vmatpush.msra.mxu0 0.0
        %3263 = vmatpush.msra.mxu0 0.0
        %3264 = vmatpush.msra.mxu0 0.0
        %3265 = vmatpush.msra.mxu0 0.0
        %3266 = vmatpush.msra.mxu0 0.0
        %3267 = vmatpush.msra.mxu0 0.0
        %3268 = vmatpush.msra.mxu0 0.0
        %3269 = vmatpush.msra.mxu0 %v3244
        %3270 = vmatmul.f32.gmra.mxu0 %v3246
        %v3271 = vpop.f32.mrf.mxu0
        %v3272 = vadd.f32 0.0, %v3271
        %3273 = vmatmul.f32.gmra.mxu0 %v3249
        %v3274 = vpop.f32.mrf.mxu0
        %v3275 = vadd.f32 0.0, %v3274
        %3276 = vmatmul.f32.gmra.mxu0 %v3252
        %v3277 = vpop.f32.mrf.mxu0
        %v3278 = vadd.f32 0.0, %v3277
        %3279 = vdwg.mxu0
        %v3280 = vadd.f32 %v3009, %v3272
        %v3281 = vadd.f32 %v3012, %v3275
        %v3282 = vadd.f32 %v3015, %v3278
        %s3283 = scalar_lea.vmem %s12, 224
        %v3284 = vld [vmem:[%s3283] sm:$0xff]
        %v3285 = vld [vmem:[%s3283 + $0x8] sm:$0xff]
        %v3286 = vld [vmem:[%s3283 + $0x10] sm:$0xff]
        %v3287 = vld [vmem:[%s3283 + $0x18] sm:$0xff]
        %s3288 = scalar_lea.vmem %s15, 7
        %v3289 = vld [vmem:[%s3288] sm:$0x1]
        %v3291 = vperm.slane %v3289, 0
        %3293 = vmatpush.msra.mxu0 0.0
        %3294 = vmatpush.msra.mxu0 0.0
        %3295 = vmatpush.msra.mxu0 0.0
        %3296 = vmatpush.msra.mxu0 0.0
        %3297 = vmatpush.msra.mxu0 0.0
        %3298 = vmatpush.msra.mxu0 0.0
        %3299 = vmatpush.msra.mxu0 0.0
        %3300 = vmatpush.msra.mxu0 0.0
        %3301 = vmatpush.msra.mxu0 0.0
        %3302 = vmatpush.msra.mxu0 0.0
        %3303 = vmatpush.msra.mxu0 0.0
        %3304 = vmatpush.msra.mxu0 0.0
        %3305 = vmatpush.msra.mxu0 %v3287
        %3306 = vmatpush.msra.mxu0 %v3286
        %3307 = vmatpush.msra.mxu0 %v3285
        %3308 = vmatpush.msra.mxu0 %v3284
        %3309 = vmatmul.f32.gmra.mxu0 %v2493
        %v3310 = vpop.f32.mrf.mxu0
        %v3311 = vadd.f32 %v3291, %v3310
        %3312 = vmatmul.f32.gmra.mxu0 %v2496
        %v3313 = vpop.f32.mrf.mxu0
        %v3314 = vadd.f32 %v3291, %v3313
        %3315 = vmatmul.f32.gmra.mxu0 %v2499
        %v3316 = vpop.f32.mrf.mxu0
        %v3317 = vadd.f32 %v3291, %v3316
        %3318 = vdwg.mxu0
        %s3319 = scalar_lea.vmem %s13, 224
        %v3320 = vld [vmem:[%s3319] sm:$0xff]
        %v3321 = vld [vmem:[%s3319 + $0x8] sm:$0xff]
        %v3322 = vld [vmem:[%s3319 + $0x10] sm:$0xff]
        %v3323 = vld [vmem:[%s3319 + $0x18] sm:$0xff]
        %s3324 = scalar_lea.vmem %s16, 7
        %v3325 = vld [vmem:[%s3324] sm:$0x1]
        %v3327 = vperm.slane %v3325, 0
        %3329 = vmatpush.msra.mxu0 0.0
        %3330 = vmatpush.msra.mxu0 0.0
        %3331 = vmatpush.msra.mxu0 0.0
        %3332 = vmatpush.msra.mxu0 0.0
        %3333 = vmatpush.msra.mxu0 0.0
        %3334 = vmatpush.msra.mxu0 0.0
        %3335 = vmatpush.msra.mxu0 0.0
        %3336 = vmatpush.msra.mxu0 0.0
        %3337 = vmatpush.msra.mxu0 0.0
        %3338 = vmatpush.msra.mxu0 0.0
        %3339 = vmatpush.msra.mxu0 0.0
        %3340 = vmatpush.msra.mxu0 0.0
        %3341 = vmatpush.msra.mxu0 %v3323
        %3342 = vmatpush.msra.mxu0 %v3322
        %3343 = vmatpush.msra.mxu0 %v3321
        %3344 = vmatpush.msra.mxu0 %v3320
        %3345 = vmatmul.f32.gmra.mxu0 %v2493
        %v3346 = vpop.f32.mrf.mxu0
        %v3347 = vadd.f32 %v3327, %v3346
        %3348 = vmatmul.f32.gmra.mxu0 %v2496
        %v3349 = vpop.f32.mrf.mxu0
        %v3350 = vadd.f32 %v3327, %v3349
        %3351 = vmatmul.f32.gmra.mxu0 %v2499
        %v3352 = vpop.f32.mrf.mxu0
        %v3353 = vadd.f32 %v3327, %v3352
        %3354 = vdwg.mxu0
        %s3355 = scalar_lea.vmem %s14, 224
        %v3356 = vld [vmem:[%s3355] sm:$0xff]
        %v3357 = vld [vmem:[%s3355 + $0x8] sm:$0xff]
        %v3358 = vld [vmem:[%s3355 + $0x10] sm:$0xff]
        %v3359 = vld [vmem:[%s3355 + $0x18] sm:$0xff]
        %s3360 = scalar_lea.vmem %s17, 7
        %v3361 = vld [vmem:[%s3360] sm:$0x1]
        %v3363 = vperm.slane %v3361, 0
        %3365 = vmatpush.msra.mxu0 0.0
        %3366 = vmatpush.msra.mxu0 0.0
        %3367 = vmatpush.msra.mxu0 0.0
        %3368 = vmatpush.msra.mxu0 0.0
        %3369 = vmatpush.msra.mxu0 0.0
        %3370 = vmatpush.msra.mxu0 0.0
        %3371 = vmatpush.msra.mxu0 0.0
        %3372 = vmatpush.msra.mxu0 0.0
        %3373 = vmatpush.msra.mxu0 0.0
        %3374 = vmatpush.msra.mxu0 0.0
        %3375 = vmatpush.msra.mxu0 0.0
        %3376 = vmatpush.msra.mxu0 0.0
        %3377 = vmatpush.msra.mxu0 %v3359
        %3378 = vmatpush.msra.mxu0 %v3358
        %3379 = vmatpush.msra.mxu0 %v3357
        %3380 = vmatpush.msra.mxu0 %v3356
        %3381 = vmatmul.f32.gmra.mxu0 %v2493
        %v3382 = vpop.f32.mrf.mxu0
        %v3383 = vadd.f32 %v3363, %v3382
        %3384 = vmatmul.f32.gmra.mxu0 %v2496
        %v3385 = vpop.f32.mrf.mxu0
        %v3386 = vadd.f32 %v3363, %v3385
        %3387 = vmatmul.f32.gmra.mxu0 %v2499
        %v3388 = vpop.f32.mrf.mxu0
        %v3389 = vadd.f32 %v3363, %v3388
        %3390 = vdwg.mxu0
        %v3392 = vsel %vm1202, %v3311, 0
        %v3395 = vsel %vm1202, %v3314, 0
        %v3398 = vsel %vm1202, %v3317, 0
        %v3401 = vsel %vm1202, %v3347, 0
        %v3404 = vsel %vm1202, %v3350, 0
        %v3407 = vsel %vm1202, %v3353, 0
        %3409 = vmatpush.xpose.msra.mxu0 0.0
        %3410 = vmatpush.xpose.msra.mxu0 0.0
        %3411 = vmatpush.xpose.msra.mxu0 0.0
        %3412 = vmatpush.xpose.msra.mxu0 0.0
        %3413 = vmatpush.xpose.msra.mxu0 0.0
        %3414 = vmatpush.xpose.msra.mxu0 0.0
        %3415 = vmatpush.xpose.msra.mxu0 0.0
        %3416 = vmatpush.xpose.msra.mxu0 0.0
        %3417 = vmatpush.xpose.msra.mxu0 0.0
        %3418 = vmatpush.xpose.msra.mxu0 0.0
        %3419 = vmatpush.xpose.msra.mxu0 0.0
        %3420 = vmatpush.xpose.msra.mxu0 0.0
        %3421 = vmatpush.xpose.msra.mxu0 0.0
        %3422 = vmatpush.xpose.msra.mxu0 %v3407
        %3423 = vmatpush.xpose.msra.mxu0 %v3404
        %3424 = vmatpush.xpose.msra.mxu0 %v3401
        %3425 = vmatmul.f32.gmra.mxu0 %v3392
        %v3426 = vpop.f32.mrf.mxu0
        %v3427 = vadd.f32 0.0, %v3426
        %3428 = vmatmul.f32.gmra.mxu0 %v3395
        %v3429 = vpop.f32.mrf.mxu0
        %v3430 = vadd.f32 0.0, %v3429
        %3431 = vmatmul.f32.gmra.mxu0 %v3398
        %v3432 = vpop.f32.mrf.mxu0
        %v3433 = vadd.f32 0.0, %v3432
        %3434 = vdwg.mxu0
        %v3435 = vmul.f32 %v3427, 0.35355338
        %v3436 = vmul.f32 %v3430, 0.35355338
        %v3437 = vmul.f32 %v3433, 0.35355338
        %v3438 = vsel %vm1250, %v3435, -inf
        %3439 = vmax.xlane.f32.xlu0 %v3438
        %v3440 = vpop.xlane.xlu0 %3439
        %v3441 = vsel %vm1250, %v3436, -inf
        %3442 = vmax.xlane.f32.xlu0 %v3441
        %v3443 = vpop.xlane.xlu0 %3442
        %v3444 = vsel %vm1257, %v3437, -inf
        %3445 = vmax.xlane.f32.xlu0 %v3444
        %v3446 = vpop.xlane.xlu0 %3445
        %v3447 = vsub.f32 %v3435, %v3440
        %v3448 = vsub.f32 %v3436, %v3443
        %v3449 = vsub.f32 %v3437, %v3446
        %v3450 = vmul.f32 %v3447, 1.442695
        %v3451 = vpow.pop %v3450
        %v3452 = vmul.f32 %v3448, 1.442695
        %v3453 = vpow.pop %v3452
        %v3454 = vmul.f32 %v3449, 1.442695
        %v3455 = vpow.pop %v3454
        %v3456 = vsel %vm1250, %v3451, 0.0
        %3457 = vadd.xlane.f32.xlu0 %v3456
        %v3458 = vpop.xlane.xlu0 %3457
        %v3459 = vsel %vm1250, %v3453, 0.0
        %3460 = vadd.xlane.f32.xlu0 %v3459
        %v3461 = vpop.xlane.xlu0 %3460
        %v3462 = vsel %vm1257, %v3455, 0.0
        %3463 = vadd.xlane.f32.xlu0 %v3462
        %v3464 = vpop.xlane.xlu0 %3463
        %v3465 = vrcp.pop %v3458
        %v3466 = vrcp.pop %v3461
        %v3467 = vrcp.pop %v3464
        %v3468 = vmul.f32 %v3451, %v3465
        %v3469 = vmul.f32 %v3453, %v3466
        %v3470 = vmul.f32 %v3455, %v3467
        %v3472 = vsel %vm1250, %v3468, 0
        %v3475 = vsel %vm1250, %v3469, 0
        %v3478 = vsel %vm1250, %v3470, 0
        %v3481 = vsel %vm1294, %v3389, 0
        %3483 = vmatpush.msra.mxu0 0.0
        %3484 = vmatpush.msra.mxu0 0.0
        %3485 = vmatpush.msra.mxu0 0.0
        %3486 = vmatpush.msra.mxu0 0.0
        %3487 = vmatpush.msra.mxu0 0.0
        %3488 = vmatpush.msra.mxu0 0.0
        %3489 = vmatpush.msra.mxu0 0.0
        %3490 = vmatpush.msra.mxu0 0.0
        %3491 = vmatpush.msra.mxu0 0.0
        %3492 = vmatpush.msra.mxu0 0.0
        %3493 = vmatpush.msra.mxu0 0.0
        %3494 = vmatpush.msra.mxu0 0.0
        %3495 = vmatpush.msra.mxu0 0.0
        %3496 = vmatpush.msra.mxu0 %v3481
        %3497 = vmatpush.msra.mxu0 %v3386
        %3498 = vmatpush.msra.mxu0 %v3383
        %3499 = vmatmul.f32.gmra.mxu0 %v3472
        %v3500 = vpop.f32.mrf.mxu0
        %v3501 = vadd.f32 0.0, %v3500
        %3502 = vmatmul.f32.gmra.mxu0 %v3475
        %v3503 = vpop.f32.mrf.mxu0
        %v3504 = vadd.f32 0.0, %v3503
        %3505 = vmatmul.f32.gmra.mxu0 %v3478
        %v3506 = vpop.f32.mrf.mxu0
        %v3507 = vadd.f32 0.0, %v3506
        %3508 = vdwg.mxu0
        %s3509 = scalar_lea.vmem %s18, 56
        %v3510 = vld [vmem:[%s3509] sm:$0xff]
        %v3512 = vsel %vm1202, %v3501, 0
        %v3515 = vsel %vm1202, %v3504, 0
        %v3518 = vsel %vm1202, %v3507, 0
        %3520 = vmatpush.msra.mxu0 0.0
        %3521 = vmatpush.msra.mxu0 0.0
        %3522 = vmatpush.msra.mxu0 0.0
        %3523 = vmatpush.msra.mxu0 0.0
        %3524 = vmatpush.msra.mxu0 0.0
        %3525 = vmatpush.msra.mxu0 0.0
        %3526 = vmatpush.msra.mxu0 0.0
        %3527 = vmatpush.msra.mxu0 0.0
        %3528 = vmatpush.msra.mxu0 0.0
        %3529 = vmatpush.msra.mxu0 0.0
        %3530 = vmatpush.msra.mxu0 0.0
        %3531 = vmatpush.msra.mxu0 0.0
        %3532 = vmatpush.msra.mxu0 0.0
        %3533 = vmatpush.msra.mxu0 0.0
        %3534 = vmatpush.msra.mxu0 0.0
        %3535 = vmatpush.msra.mxu0 %v3510
        %3536 = vmatmul.f32.gmra.mxu0 %v3512
        %v3537 = vpop.f32.mrf.mxu0
        %v3538 = vadd.f32 0.0, %v3537
        %3539 = vmatmul.f32.gmra.mxu0 %v3515
        %v3540 = vpop.f32.mrf.mxu0
        %v3541 = vadd.f32 0.0, %v3540
        %3542 = vmatmul.f32.gmra.mxu0 %v3518
        %v3543 = vpop.f32.mrf.mxu0
        %v3544 = vadd.f32 0.0, %v3543
        %3545 = vdwg.mxu0
        %v3546 = vadd.f32 %v3280, %v3538
        %v3547 = vadd.f32 %v3281, %v3541
        %v3548 = vadd.f32 %v3282, %v3544
        %v3549 = vadd.f32 %v2397, %v3546
        %v3550 = vadd.f32 %v2398, %v3547
        %v3551 = vadd.f32 %v2399, %v3548
        %s3552 = scalar_lea.vmem %s19, 1
        %v3553 = vld [vmem:[%s3552] sm:$0x1]
        %v3555 = vperm.slane %v3553, 0
        %v3557 = vadd.f32 %v3549, %v3555
        %v3558 = vadd.f32 %v3550, %v3555
        %v3559 = vadd.f32 %v3551, %v3555
        %s3560 = scalar_lea.vmem %s20, 1
        %v3561 = vld [vmem:[%s3560] sm:$0x1]
        %s3562 = scalar_lea.vmem %s21, 1
        %v3563 = vld [vmem:[%s3562] sm:$0x1]
        %v3564 = vsel %vm924, %v3557, 0.0
        %3565 = vadd.xlane.f32.xlu0 %v3564
        %v3566 = vpop.xlane.xlu0 %3565
        %v3567 = vsel %vm924, %v3558, 0.0
        %3568 = vadd.xlane.f32.xlu0 %v3567
        %v3569 = vpop.xlane.xlu0 %3568
        %v3570 = vsel %vm931, %v3559, 0.0
        %3571 = vadd.xlane.f32.xlu0 %v3570
        %v3572 = vpop.xlane.xlu0 %3571
        %v3573 = vmul.f32 %v3566, %v941
        %v3574 = vmul.f32 %v3569, %v941
        %v3575 = vmul.f32 %v3572, %v941
        %v3576 = vsub.f32 %v3557, %v3573
        %v3577 = vsub.f32 %v3558, %v3574
        %v3578 = vsub.f32 %v3559, %v3575
        %v3579 = vmul.f32 %v3576, %v3576
        %v3580 = vmul.f32 %v3577, %v3577
        %v3581 = vmul.f32 %v3578, %v3578
        %v3582 = vsel %vm924, %v3579, 0.0
        %3583 = vadd.xlane.f32.xlu0 %v3582
        %v3584 = vpop.xlane.xlu0 %3583
        %v3585 = vsel %vm924, %v3580, 0.0
        %3586 = vadd.xlane.f32.xlu0 %v3585
        %v3587 = vpop.xlane.xlu0 %3586
        %v3588 = vsel %vm931, %v3581, 0.0
        %3589 = vadd.xlane.f32.xlu0 %v3588
        %v3590 = vpop.xlane.xlu0 %3589
        %v3591 = vmul.f32 %v3584, %v941
        %v3592 = vmul.f32 %v3587, %v941
        %v3593 = vmul.f32 %v3590, %v941
        %v3594 = vadd.f32 %v3591, 1e-05
        %v3595 = vadd.f32 %v3592, 1e-05
        %v3596 = vadd.f32 %v3593, 1e-05
        %v3597 = vrsqrt.pop %v3594
        %v3598 = vmul.f32 %v3597, %v3594
        %v3599 = vmul.f32 %v3598, %v3597
        %v3600 = vmul.f32 0.5, %v3599
        %v3601 = vsub.f32 1.5, %v3600
        %v3602 = vmul.f32 %v3597, %v3601
        %vm3603 = vweird.f32 %v3594
        %vm3604 = vweird.f32 %v3597
        %vm3605 = vmor %vm3603, %vm3604
        %v3606 = vsel %vm3605, %v3597, %v3602
        %v3607 = vrsqrt.pop %v3595
        %v3608 = vmul.f32 %v3607, %v3595
        %v3609 = vmul.f32 %v3608, %v3607
        %v3610 = vmul.f32 0.5, %v3609
        %v3611 = vsub.f32 1.5, %v3610
        %v3612 = vmul.f32 %v3607, %v3611
        %vm3613 = vweird.f32 %v3595
        %vm3614 = vweird.f32 %v3607
        %vm3615 = vmor %vm3613, %vm3614
        %v3616 = vsel %vm3615, %v3607, %v3612
        %v3617 = vrsqrt.pop %v3596
        %v3618 = vmul.f32 %v3617, %v3596
        %v3619 = vmul.f32 %v3618, %v3617
        %v3620 = vmul.f32 0.5, %v3619
        %v3621 = vsub.f32 1.5, %v3620
        %v3622 = vmul.f32 %v3617, %v3621
        %vm3623 = vweird.f32 %v3596
        %vm3624 = vweird.f32 %v3617
        %vm3625 = vmor %vm3623, %vm3624
        %v3626 = vsel %vm3625, %v3617, %v3622
        %v3627 = vmul.f32 %v3576, %v3606
        %v3628 = vmul.f32 %v3577, %v3616
        %v3629 = vmul.f32 %v3578, %v3626
        %v3631 = vperm.slane %v3561, 0
        %v3633 = vmul.f32 %v3627, %v3631
        %v3634 = vmul.f32 %v3628, %v3631
        %v3635 = vmul.f32 %v3629, %v3631
        %v3637 = vperm.slane %v3563, 0
        %v3639 = vadd.f32 %v3633, %v3637
        %v3640 = vadd.f32 %v3634, %v3637
        %v3641 = vadd.f32 %v3635, %v3637
        %s3642 = scalar_lea.vmem %s22, 32
        %v3643 = vld [vmem:[%s3642] sm:$0xff]
        %v3644 = vld [vmem:[%s3642 + $0x8] sm:$0xff]
        %v3645 = vld [vmem:[%s3642 + $0x10] sm:$0xff]
        %v3646 = vld [vmem:[%s3642 + $0x18] sm:$0xff]
        %s3647 = scalar_lea.vmem %s23, 1
        %v3648 = vld [vmem:[%s3647] sm:$0x1]
        %v3650 = vperm.slane %v3648, 0
        %v3653 = vsel %vm924, %v3639, 0
        %v3656 = vsel %vm924, %v3640, 0
        %v3659 = vsel %vm924, %v3641, 0
        %3661 = vmatpush.msra.mxu0 0.0
        %3662 = vmatpush.msra.mxu0 0.0
        %3663 = vmatpush.msra.mxu0 0.0
        %3664 = vmatpush.msra.mxu0 0.0
        %3665 = vmatpush.msra.mxu0 0.0
        %3666 = vmatpush.msra.mxu0 0.0
        %3667 = vmatpush.msra.mxu0 0.0
        %3668 = vmatpush.msra.mxu0 0.0
        %3669 = vmatpush.msra.mxu0 0.0
        %3670 = vmatpush.msra.mxu0 0.0
        %3671 = vmatpush.msra.mxu0 0.0
        %3672 = vmatpush.msra.mxu0 0.0
        %3673 = vmatpush.msra.mxu0 %v3646
        %3674 = vmatpush.msra.mxu0 %v3645
        %3675 = vmatpush.msra.mxu0 %v3644
        %3676 = vmatpush.msra.mxu0 %v3643
        %3677 = vmatmul.f32.gmra.mxu0 %v3653
        %v3678 = vpop.f32.mrf.mxu0
        %v3679 = vadd.f32 %v3650, %v3678
        %3680 = vmatmul.f32.gmra.mxu0 %v3656
        %v3681 = vpop.f32.mrf.mxu0
        %v3682 = vadd.f32 %v3650, %v3681
        %3683 = vmatmul.f32.gmra.mxu0 %v3659
        %v3684 = vpop.f32.mrf.mxu0
        %v3685 = vadd.f32 %v3650, %v3684
        %3686 = vdwg.mxu0
        %v3687 = vmul.f32 %v3679, 1.702
        %v3688 = vmul.f32 %v3682, 1.702
        %v3689 = vmul.f32 %v3685, 1.702
        %v3690 = vxor.u32 %v3687, 2147483648
        %v3691 = vxor.u32 %v3688, 2147483648
        %v3692 = vxor.u32 %v3689, 2147483648
        %v3693 = vmul.f32 %v3690, 1.442695
        %v3694 = vpow.pop %v3693
        %v3695 = vmul.f32 %v3691, 1.442695
        %v3696 = vpow.pop %v3695
        %v3697 = vmul.f32 %v3692, 1.442695
        %v3698 = vpow.pop %v3697
        %v3699 = vadd.f32 %v3694, 1.0
        %v3700 = vadd.f32 %v3696, 1.0
        %v3701 = vadd.f32 %v3698, 1.0
        %v3702 = vrcp.pop %v3699
        %v3703 = vmul.f32 %v3699, %v3702
        %v3704 = vsub.f32 1.0, %v3703
        %v3705 = vmul.f32 %v3702, %v3704
        %v3706 = vadd.f32 %v3702, %v3705
        %vm3707 = vweird.f32 %v3699
        %vm3708 = vweird.f32 %v3702
        %vm3709 = vmor %vm3707, %vm3708
        %v3710 = vsel %vm3709, %v3702, %v3706
        %v3711 = vand.u32 2147483647, %v3699
        %vm3712 = vcmp.eq.f32.partialorder %v3711, 8.507059e+37
        %v3713 = vand.u32 %v3699, 2147483648
        %v3714 = vor.u32 1.1754944e-38, %v3713
        %v3715 = vsel %vm3712, %v3714, %v3710
        %v3716 = vmul.f32 1.0, %v3715
        %v3717 = vrcp.pop %v3700
        %v3718 = vmul.f32 %v3700, %v3717
        %v3719 = vsub.f32 1.0, %v3718
        %v3720 = vmul.f32 %v3717, %v3719
        %v3721 = vadd.f32 %v3717, %v3720
        %vm3722 = vweird.f32 %v3700
        %vm3723 = vweird.f32 %v3717
        %vm3724 = vmor %vm3722, %vm3723
        %v3725 = vsel %vm3724, %v3717, %v3721
        %v3726 = vand.u32 2147483647, %v3700
        %vm3727 = vcmp.eq.f32.partialorder %v3726, 8.507059e+37
        %v3728 = vand.u32 %v3700, 2147483648
        %v3729 = vor.u32 1.1754944e-38, %v3728
        %v3730 = vsel %vm3727, %v3729, %v3725
        %v3731 = vmul.f32 1.0, %v3730
        %v3732 = vrcp.pop %v3701
        %v3733 = vmul.f32 %v3701, %v3732
        %v3734 = vsub.f32 1.0, %v3733
        %v3735 = vmul.f32 %v3732, %v3734
        %v3736 = vadd.f32 %v3732, %v3735
        %vm3737 = vweird.f32 %v3701
        %vm3738 = vweird.f32 %v3732
        %vm3739 = vmor %vm3737, %vm3738
        %v3740 = vsel %vm3739, %v3732, %v3736
        %v3741 = vand.u32 2147483647, %v3701
        %vm3742 = vcmp.eq.f32.partialorder %v3741, 8.507059e+37
        %v3743 = vand.u32 %v3701, 2147483648
        %v3744 = vor.u32 1.1754944e-38, %v3743
        %v3745 = vsel %vm3742, %v3744, %v3740
        %v3746 = vmul.f32 1.0, %v3745
        %v3747 = vmul.f32 %v3679, %v3716
        %v3748 = vmul.f32 %v3682, %v3731
        %v3749 = vmul.f32 %v3685, %v3746
        %s3750 = scalar_lea.vmem %s24, 128
        %v3751 = vld [vmem:[%s3750] sm:$0xff]
        %v3752 = vld [vmem:[%s3750 + $0x8] sm:$0xff]
        %v3753 = vld [vmem:[%s3750 + $0x10] sm:$0xff]
        %v3754 = vld [vmem:[%s3750 + $0x18] sm:$0xff]
        %v3755 = vld [vmem:[%s3750 + $0x20] sm:$0xff]
        %v3756 = vld [vmem:[%s3750 + $0x28] sm:$0xff]
        %v3757 = vld [vmem:[%s3750 + $0x30] sm:$0xff]
        %v3758 = vld [vmem:[%s3750 + $0x38] sm:$0xff]
        %v3759 = vld [vmem:[%s3750 + $0x40] sm:$0xff]
        %v3760 = vld [vmem:[%s3750 + $0x48] sm:$0xff]
        %v3761 = vld [vmem:[%s3750 + $0x50] sm:$0xff]
        %v3762 = vld [vmem:[%s3750 + $0x58] sm:$0xff]
        %v3763 = vld [vmem:[%s3750 + $0x60] sm:$0xff]
        %v3764 = vld [vmem:[%s3750 + $0x68] sm:$0xff]
        %v3765 = vld [vmem:[%s3750 + $0x70] sm:$0xff]
        %v3766 = vld [vmem:[%s3750 + $0x78] sm:$0xff]
        %s3767 = scalar_lea.vmem %s25, 1
        %v3768 = vld [vmem:[%s3767] sm:$0x1]
        %v3770 = vperm.slane %v3768, 0
        %3772 = vmatpush.msra.mxu0 %v3766
        %3773 = vmatpush.msra.mxu0 %v3765
        %3774 = vmatpush.msra.mxu0 %v3764
        %3775 = vmatpush.msra.mxu0 %v3763
        %3776 = vmatpush.msra.mxu0 %v3762
        %3777 = vmatpush.msra.mxu0 %v3761
        %3778 = vmatpush.msra.mxu0 %v3760
        %3779 = vmatpush.msra.mxu0 %v3759
        %3780 = vmatpush.msra.mxu0 %v3758
        %3781 = vmatpush.msra.mxu0 %v3757
        %3782 = vmatpush.msra.mxu0 %v3756
        %3783 = vmatpush.msra.mxu0 %v3755
        %3784 = vmatpush.msra.mxu0 %v3754
        %3785 = vmatpush.msra.mxu0 %v3753
        %3786 = vmatpush.msra.mxu0 %v3752
        %3787 = vmatpush.msra.mxu0 %v3751
        %3788 = vmatmul.f32.gmra.mxu0 %v3747
        %v3789 = vpop.f32.mrf.mxu0
        %v3790 = vadd.f32 %v3770, %v3789
        %3791 = vmatmul.f32.gmra.mxu0 %v3748
        %v3792 = vpop.f32.mrf.mxu0
        %3793 = vmatmul.f32.gmra.mxu0 %v3749
        %v3794 = vpop.f32.mrf.mxu0
        %3795 = vdwg.mxu0
        %v3796 = vadd.f32 %v3557, %v3790
        %v3797 = vld [vmem:[%s5] sm:$0x1]
        %v3798 = vld [vmem:[%s6] sm:$0x1]
        %v3799 = vsel %vm931, %v3796, 0.0
        %3800 = vadd.xlane.f32.xlu0 %v3799
        %v3801 = vpop.xlane.xlu0 %3800
        %v3802 = vmul.f32 %v3801, %v941
        %v3803 = vsub.f32 %v3796, %v3802
        %v3804 = vmul.f32 %v3803, %v3803
        %v3805 = vsel %vm931, %v3804, 0.0
        %3806 = vadd.xlane.f32.xlu0 %v3805
        %v3807 = vpop.xlane.xlu0 %3806
        %v3808 = vmul.f32 %v3807, %v941
        %v3809 = vadd.f32 %v3808, 1e-05
        %v3810 = vrsqrt.pop %v3809
        %v3811 = vmul.f32 %v3810, %v3809
        %v3812 = vmul.f32 %v3811, %v3810
        %v3813 = vmul.f32 0.5, %v3812
        %v3814 = vsub.f32 1.5, %v3813
        %v3815 = vmul.f32 %v3810, %v3814
        %vm3816 = vweird.f32 %v3809
        %vm3817 = vweird.f32 %v3810
        %vm3818 = vmor %vm3816, %vm3817
        %v3819 = vsel %vm3818, %v3810, %v3815
        %v3820 = vmul.f32 %v3803, %v3819
        %v3821 = vmul.f32 %v3820, %v3797
        %v3822 = vadd.f32 %v3821, %v3798
        %v3823 = vld [vmem:[%s7] sm:$0xff]
        %v3824 = vld [vmem:[%s7 + $0x8] sm:$0xff]
        %v3825 = vld [vmem:[%s7 + $0x10] sm:$0xff]
        %v3826 = vld [vmem:[%s7 + $0x18] sm:$0xff]
        %v3828 = vsel %vm924, %v3822, 0
        %3830 = vmatpush.msra.mxu0 0.0
        %3831 = vmatpush.msra.mxu0 0.0
        %3832 = vmatpush.msra.mxu0 0.0
        %3833 = vmatpush.msra.mxu0 0.0
        %3834 = vmatpush.msra.mxu0 0.0
        %3835 = vmatpush.msra.mxu0 0.0
        %3836 = vmatpush.msra.mxu0 0.0
        %3837 = vmatpush.msra.mxu0 0.0
        %3838 = vmatpush.msra.mxu0 0.0
        %3839 = vmatpush.msra.mxu0 0.0
        %3840 = vmatpush.msra.mxu0 0.0
        %3841 = vmatpush.msra.mxu0 0.0
        %3842 = vmatpush.msra.mxu0 %v3826
        %3843 = vmatpush.msra.mxu0 %v3825
        %3844 = vmatpush.msra.mxu0 %v3824
        %3845 = vmatpush.msra.mxu0 %v3823
        %3846 = vmatmul.f32.gmra.mxu0 %v3828
        %v3847 = vpop.f32.mrf.mxu0
        %v3848 = vadd.f32 0.0, %v3847
        %3849 = vdwg.mxu0
        %vm3850 = vcmask 122880
        %3851 = vst.msk [vmem:[%s813] sm:$0x1] %vm3850, %v3848
        %v3852 = vld [vmem:[%s8] sm:$0xff]
        %v3853 = vld [vmem:[%s8 + $0x8] sm:$0xff]
        %v3854 = vld [vmem:[#allocation2] sm:$0x1]
        %vm3855 = vcmask 130048
        %v3857 = vsel %vm3855, %v3848, 0
        %3859 = vmatpush.msra.mxu0 0.0
        %3860 = vmatpush.msra.mxu0 0.0
        %3861 = vmatpush.msra.mxu0 0.0
        %3862 = vmatpush.msra.mxu0 0.0
        %3863 = vmatpush.msra.mxu0 0.0
        %3864 = vmatpush.msra.mxu0 0.0
        %3865 = vmatpush.msra.mxu0 0.0
        %3866 = vmatpush.msra.mxu0 0.0
        %3867 = vmatpush.msra.mxu0 0.0
        %3868 = vmatpush.msra.mxu0 0.0
        %3869 = vmatpush.msra.mxu0 0.0
        %3870 = vmatpush.msra.mxu0 0.0
        %3871 = vmatpush.msra.mxu0 0.0
        %3872 = vmatpush.msra.mxu0 0.0
        %3873 = vmatpush.msra.mxu0 %v3853
        %3874 = vmatpush.msra.mxu0 %v3852
        %3875 = vmatmul.f32.gmra.mxu0 %v3857
        %v3876 = vpop.f32.mrf.mxu0
        %v3877 = vadd.f32 %v3854, %v3876
        %3878 = vdwg.mxu0
        %vm3879 = vcmask 0
        %3880 = vst.msk [vmem:[%s826] sm:$0x1] %vm3879, %v3877
        %s3881 = sand.u32 %s603, 1
        %s3882 = scalar_lea.sflag [#allocation4], %s3881
        %s3883 = sand.u32 %s603, 1
        %s3884 = scalar_lea.vmem [#allocation3], %s3883
        %p3885 = scmp.lt.s32.totalorder %s44, 1
        %s3886 = scalar_select %p3885, %s44, 1
        %s3887 = scalar_lea.vmem %s27, %s3886
        // Predicated region
        $region125: #{clip_model_forward.1} parent=123 // pred_check
          %p3888 = pneg %p613
        $region126: #{clip_model_forward.1} parent=123 // pred_check_branch
          %3890 = sbr.rel (%p3888) target = $region128
        $region127: #{clip_model_forward.1} parent=123 // pred_region
          %3892 = vsyncadd %s3882, 0
          %s3893 = scalar_lea.hbm %s26, %s44
          %s3895 = sshll.u32 %s3884, 4
          %s3896 = int_to_ptr.vmem [resolvable:$true] %s3895
          %s3897 = sshll.u32 %s3893, 4
          %s3898 = int_to_ptr.hbm [resolvable:$true] %s3897
          %3900 = dma.vmem_to_hbm [thread:$0]  %s3896, 16, %s3898, %s3882
        $region128: #{clip_model_forward.1} parent=123 // pred_fallthru
          _
        // Predicated region
        $region129: #{clip_model_forward.1} parent=123 // pred_check
          %p3901 = pneg %p639
        $region130: #{clip_model_forward.1} parent=123 // pred_check_branch
          %3903 = sbr.rel (%p3901) target = $region132
        $region131: #{clip_model_forward.1} parent=123 // pred_region
          _
        $region132: #{clip_model_forward.1} parent=123 // pred_fallthru
          _
      $region124: #{clip_model_forward.1} parent=5 // pred_fallthru
        _
      %p3904 = scmp.le.s32.totalorder 2, %s39
      // Predicated region
      $region133: #{clip_model_forward.1} parent=5 // pred_check
        %p3905 = pneg %p3904
      $region134: #{clip_model_forward.1} parent=5 // pred_check_branch
        %3907 = sbr.rel (%p3905) target = $region136
      $region135: #{clip_model_forward.1} parent=5 // pred_region
        %s3908 = ssub.s32 %s39, 2
        // Predicated region
        $region137: #{clip_model_forward.1} parent=135 // pred_check
          %p3909 = pneg %p619
        $region138: #{clip_model_forward.1} parent=135 // pred_check_branch
          %3911 = sbr.rel (%p3909) target = $region140
        $region139: #{clip_model_forward.1} parent=135 // pred_region
          %s3912 = sand.u32 %s604, 1
          %s3913 = scalar_lea.sflag [#allocation4], %s3912
          %s3914 = sand.u32 %s604, 1
          %s3915 = scalar_lea.vmem [#allocation3], %s3914
          %3917 = dma.done %s3913, 16
        $region140: #{clip_model_forward.1} parent=135 // pred_fallthru
          _
        // Predicated region
        $region141: #{clip_model_forward.1} parent=135 // pred_check
          %p3918 = pneg %p645
        $region142: #{clip_model_forward.1} parent=135 // pred_check_branch
          %3920 = sbr.rel (%p3918) target = $region144
        $region143: #{clip_model_forward.1} parent=135 // pred_region
          %p3921 = scmp.lt.s32.totalorder %s45, 1
          %s3922 = scalar_select %p3921, %s45, 1
          %s3923 = scalar_lea.vmem %s27, %s3922
        $region144: #{clip_model_forward.1} parent=135 // pred_fallthru
          _
      $region136: #{clip_model_forward.1} parent=5 // pred_fallthru
        _
    $region6: #{clip_model_forward.1} parent=1 // loop_footer
      %s43 = sadd.s32 1, %s39
    $region7: #{clip_model_forward.1} parent=1 // loop_footer_branch
      %38 = sbr.rel target = $region3
    $region8: #{clip_model_forward.1} parent=1 // loop_exit
      _
    %3924 = vsyncpa [#allocation4], 1
    %s3925 = scalar_lea.sflag [#allocation4], 1
    %3926 = vsyncpa %s3925, 1

</llo_original>
